<compile_context>
chip_gen: v7x
topology: tpu7x:2x2x1
jax: 0.10.0
libtpu: 0.0.40
codegen_flags: <defaults>
</compile_context>

<pallas_src>
import functools

import jax
import jax.numpy as jnp
from jax import lax
from jax.experimental import pallas as pl
from jax.experimental.pallas import tpu as pltpu

EPS = 1e-5
VMEM_LIMIT = 48 * 1024 * 1024   # explicit: <= v7x 64 MiB, > default 32 MiB scoped


# ----------------------------- tiling helpers -----------------------------

def _pick_row_tile(m, target=256):
    """Largest divisor of m that is a multiple of 16 (bf16 sublane tile), <= target,
    and leaves >=2 grid steps (v7x megacore). Falls back to multiples of 8, then m.
    NOTE: the final fallback (m itself) can be large — VMEM hazard on v7x for odd m."""
    best = None
    for d in range(min(target, m), 0, -1):
        if m % d or d % 16:
            continue
        if m // d >= 2:
            return d
        if best is None:
            best = d
    for d in range(min(target, m), 0, -1):
        if m % d == 0 and d % 8 == 0 and m // d >= 2:
            return d
    return best if best is not None else m


def _pick_batch_tile(b, n, target_rows=256):
    """Items-per-tile gb (divisor of b): prefer gb*n <= target_rows and >=2 grid steps."""
    best = 1
    for gb in range(b, 0, -1):
        if b % gb:
            continue
        if gb * n <= target_rows:
            if (b // gb) >= 2:
                return gb
            if best == 1:
                best = gb
    return best


def _pick_lane_chunk(cout, target=512):
    """Lane chunk for the output/contraction-free dim: full if small, else the largest
    128-multiple divisor <= target (keeps stores unmasked at realistic widths)."""
    if cout <= target:
        return cout
    for d in range(target, 127, -128):
        if cout % d == 0:
            return d
    return cout


# ------------------- fused qkv Linear(+BN) + LIF + SSA attention -------------------

def _make_qkv_attn_kernel(T, N, gb, num_heads, head_dim, scale, tau, threshold, c_chunk):
    inv_tau = 1.0 / tau
    C = num_heads * head_dim
    C3 = 3 * C
    tm = gb * N
    TG = T * gb

    def kernel(x_ref, w_ref, s_ref, o_ref, spk_ref):
        # x_ref : (T, tm, C) f32      w_ref : (C, 3C) bf16     s_ref : (1, 3C) f32
        # o_ref : (T, tm, C) f32 attention output
        # spk_ref: VMEM scratch (T, tm, 3C) bf16 — qkv spikes (exact {0,1})

        # ---- phase 1: qkv projection (one (T*tm)-row bf16 matmul per lane chunk) + LIF ----
        x_all = x_ref[...].reshape(T * tm, C).astype(jnp.bfloat16)
        for c0 in range(0, C3, c_chunk):
            pre = jnp.dot(x_all, w_ref[:, c0:c0 + c_chunk],
                          preferred_element_type=jnp.float32)
            pre = (pre + s_ref[:, c0:c0 + c_chunk]).reshape(T, tm, c_chunk)  # shift once
            mem = jnp.zeros((tm, c_chunk), jnp.float32)
            for t in range(T):                      # small static T -> unrolled VPU loop
                mem = mem + (pre[t] - mem) * inv_tau
                spk = (mem >= threshold).astype(jnp.float32)
                mem = mem * (1.0 - spk)
                spk_ref[t, :, c0:c0 + c_chunk] = spk.astype(jnp.bfloat16)

        # ---- phase 2: SSA attention on the VMEM-resident spikes (no softmax) ----
        # out_h = q_h @ ((k_h^T @ v_h) * scale) — exact: k^T v are integer counts <= N,
        # scale is a power of two, so the bf16 cast of kv is lossless for N*scale <= 256.
        for h in range(num_heads):
            qlo = h * head_dim
            klo = C + h * head_dim
            vlo = 2 * C + h * head_dim
            q_h = spk_ref[:, :, qlo:qlo + head_dim].reshape(TG, N, head_dim)
            k_h = spk_ref[:, :, klo:klo + head_dim].reshape(TG, N, head_dim)
            v_h = spk_ref[:, :, vlo:vlo + head_dim].reshape(TG, N, head_dim)
            kv = lax.dot_general(k_h, v_h, (((1,), (1,)), ((0,), (0,))),
                                 preferred_element_type=jnp.float32)      # (TG, Dh, Dh)
            kv = (kv * scale).astype(jnp.bfloat16)
            out_h = lax.dot_general(q_h, kv, (((2,), (1,)), ((0,), (0,))),
                                    preferred_element_type=jnp.float32)   # (TG, N, Dh)
            # write this head directly into the output block (no list + concat)
            o_ref[:, :, qlo:qlo + head_dim] = out_h.reshape(T, tm, head_dim)

    return kernel


def qkv_ssa_attention(x, w, shift, *, T, N, num_heads, scale, tau, threshold,
                      row_target=256):
    """x: (T, M, C) f32 -> attention output (T, M, C) f32 (pre attn_lif/proj)."""
    Tdim, M, C = x.shape
    assert Tdim == T and M % N == 0
    B = M // N
    C3 = w.shape[1]
    assert C3 == 3 * C and C % num_heads == 0
    head_dim = C // num_heads
    gb = _pick_batch_tile(B, N, row_target)
    tm = gb * N
    c_chunk = _pick_lane_chunk(C3)

    kernel = _make_qkv_attn_kernel(T, N, gb, num_heads, head_dim, scale, tau,
                                   threshold, c_chunk)
    return pl.pallas_call(
        kernel,
        out_shape=jax.ShapeDtypeStruct((T, M, C), jnp.float32),
        grid=(B // gb,),
        in_specs=[
            pl.BlockSpec((T, tm, C), lambda i: (0, i, 0)),
            pl.BlockSpec((C, C3), lambda i: (0, 0)),
            pl.BlockSpec((1, C3), lambda i: (0, 0)),
        ],
        out_specs=pl.BlockSpec((T, tm, C), lambda i: (0, i, 0)),
        scratch_shapes=[pltpu.VMEM((T, tm, C3), jnp.bfloat16)],
        compiler_params=pltpu.CompilerParams(
            dimension_semantics=("parallel",),
            vmem_limit_bytes=VMEM_LIMIT),
    )(x, w, shift.reshape(1, -1))


# ------------------- fused [pre-LIF?] -> Linear(+BN) -> LIF [+ residual] -------------------

def _make_linear_lif_kernel(T, tau, threshold, *, pre_threshold, residual,
                            out_dtype, c_chunk):
    inv_tau = 1.0 / tau

    def kernel(*refs):
        if pre_threshold is not None and residual:
            x_ref, w_ref, s_ref, r_ref, o_ref, spk_ref = refs
        elif pre_threshold is not None:
            x_ref, w_ref, s_ref, o_ref, spk_ref = refs
        elif residual:
            x_ref, w_ref, s_ref, r_ref, o_ref = refs
        else:
            x_ref, w_ref, s_ref, o_ref = refs

        tm = x_ref.shape[1]
        cin = x_ref.shape[2]
        cout = w_ref.shape[1]

        # Optional preceding LIF (attn_lif, threshold 0.5) — pure-VPU recurrence over T
        # producing exact {0,1} spikes, staged in a bf16 VMEM scratch for the big matmul.
        if pre_threshold is not None:
            mem_pre = jnp.zeros((tm, cin), jnp.float32)
            for t in range(T):
                xt = x_ref[t].astype(jnp.float32)
                mem_pre = mem_pre + (xt - mem_pre) * inv_tau
                spk_pre = (mem_pre >= pre_threshold).astype(jnp.float32)
                mem_pre = mem_pre * (1.0 - spk_pre)
                spk_ref[t] = spk_pre.astype(jnp.bfloat16)
            x_all = spk_ref[...].reshape(T * tm, cin)
        else:
            x_all = x_ref[...].reshape(T * tm, cin)
            if x_all.dtype != jnp.bfloat16:
                x_all = x_all.astype(jnp.bfloat16)

        # Linear(+BN folded): ONE (T*tm)-row bf16 MXU matmul per lane chunk, f32 accum,
        # then the post-LIF recurrence (VPU) on that chunk. Chunking keeps the membrane
        # working set bounded even for hidden = 4C.
        for c0 in range(0, cout, c_chunk):
            pre = jnp.dot(x_all, w_ref[:, c0:c0 + c_chunk],
                          preferred_element_type=jnp.float32)
            pre = (pre + s_ref[:, c0:c0 + c_chunk]).reshape(T, tm, c_chunk)  # shift once
            mem = jnp.zeros((tm, c_chunk), jnp.float32)
            for t in range(T):
                mem = mem + (pre[t] - mem) * inv_tau
                spk = (mem >= threshold).astype(jnp.float32)
                mem = mem * (1.0 - spk)
                if residual:
                    out_t = spk + r_ref[t, :, c0:c0 + c_chunk].astype(jnp.float32)
                else:
                    out_t = spk
                o_ref[t, :, c0:c0 + c_chunk] = out_t.astype(out_dtype)

    return kernel


def fused_linear_lif(x, w, shift, *, T, tau, threshold, pre_threshold=None,
                     residual=None, out_dtype=jnp.float32, tm_target=256):
    """x: (T, M, Cin) -> spikes (T, M, Cout) (optionally + residual)."""
    Tdim, M, Cin = x.shape
    assert Tdim == T
    Cout = w.shape[1]
    tm = _pick_row_tile(M, tm_target)
    assert M % tm == 0
    c_chunk = _pick_lane_chunk(Cout)

    in_specs = [
        pl.BlockSpec((T, tm, Cin), lambda i: (0, i, 0)),
        pl.BlockSpec((Cin, Cout), lambda i: (0, 0)),
        pl.BlockSpec((1, Cout), lambda i: (0, 0)),
    ]
    args = [x, w, shift.reshape(1, -1)]
    if residual is not None:
        in_specs.append(pl.BlockSpec((T, tm, Cout), lambda i: (0, i, 0)))
        args.append(residual)

    scratch_shapes = []
    if pre_threshold is not None:
        scratch_shapes.append(pltpu.VMEM((T, tm, Cin), jnp.bfloat16))

    kernel = _make_linear_lif_kernel(
        T, tau, threshold, pre_threshold=pre_threshold,
        residual=residual is not None, out_dtype=out_dtype, c_chunk=c_chunk)

    return pl.pallas_call(
        kernel,
        out_shape=jax.ShapeDtypeStruct((T, M, Cout), out_dtype),
        grid=(M // tm,),
        in_specs=in_specs,
        out_specs=pl.BlockSpec((T, tm, Cout), lambda i: (0, i, 0)),
        scratch_shapes=scratch_shapes,
        compiler_params=pltpu.CompilerParams(
            dimension_semantics=("parallel",),
            vmem_limit_bytes=VMEM_LIMIT),
    )(*args)


# ----------------------------- parameters -----------------------------

def _init_linear_bn(key, cin, cout):
    k1, k2, k3, k4, k5, k6 = jax.random.split(key, 6)
    w = jax.random.normal(k1, (cin, cout), jnp.float32) * 0.05     # Linear weight (in, out)
    b = jax.random.normal(k2, (cout,), jnp.float32) * 0.05         # Linear bias
    gamma = 1.0 + 0.1 * jax.random.normal(k3, (cout,), jnp.float32)
    beta = 0.1 * jax.random.normal(k4, (cout,), jnp.float32)
    mean = 0.1 * jax.random.normal(k5, (cout,), jnp.float32)
    var = jax.random.uniform(k6, (cout,), jnp.float32, 0.8, 1.2)
    scale = gamma / jnp.sqrt(var + EPS)                            # eval-mode BN fold
    # BN(Linear(x)) = x @ (W*scale) + (b*scale + beta - mean*scale)
    w_folded = (w * scale[None, :]).astype(jnp.bfloat16)           # bf16 MXU path
    shift = b * scale + beta - mean * scale                        # keep f32
    return {"w": w_folded, "shift": shift}


def init_block_params(key, embed_dim, mlp_ratio):
    hidden = int(embed_dim * mlp_ratio)
    ks = jax.random.split(key, 6)
    q = _init_linear_bn(ks[0], embed_dim, embed_dim)
    k = _init_linear_bn(ks[1], embed_dim, embed_dim)
    v = _init_linear_bn(ks[2], embed_dim, embed_dim)
    qkv = {"w": jnp.concatenate([q["w"], k["w"], v["w"]], axis=1),
           "shift": jnp.concatenate([q["shift"], k["shift"], v["shift"]], axis=0)}
    return {
        "qkv": qkv,
        "proj": _init_linear_bn(ks[3], embed_dim, embed_dim),
        "fc1": _init_linear_bn(ks[4], embed_dim, hidden),
        "fc2": _init_linear_bn(ks[5], hidden, embed_dim),
    }


# ----------------------------- forward -----------------------------

def block_forward(x, p, *, T, num_heads, attn_scale, tau, threshold):
    TB, N, C = x.shape
    B = TB // T
    M = B * N
    x_t = x.reshape(T, M, C)                       # ((t b) n c) is t-major: pure reshape

    # --- SSA attention path ---
    # qkv Linear+BN+LIF fused with the (softmax-free) attention: (T, M, C) f32
    y = qkv_ssa_attention(x_t, p["qkv"]["w"], p["qkv"]["shift"],
                          T=T, N=N, num_heads=num_heads, scale=attn_scale,
                          tau=tau, threshold=threshold)
    # attn_lif (threshold 0.5) -> proj Linear+BN -> LIF, + residual x
    x1 = fused_linear_lif(y, p["proj"]["w"], p["proj"]["shift"],
                          T=T, tau=tau, threshold=threshold,
                          pre_threshold=0.5, residual=x_t,
                          out_dtype=jnp.float32)                   # x + attn(x)

    # --- spiking MLP path: fc1+LIF (bf16 spikes), fc2+LIF + residual ---
    h_spk = fused_linear_lif(x1, p["fc1"]["w"], p["fc1"]["shift"],
                             T=T, tau=tau, threshold=threshold,
                             out_dtype=jnp.bfloat16)               # (T, M, hidden) spikes
    out = fused_linear_lif(h_spk, p["fc2"]["w"], p["fc2"]["shift"],
                           T=T, tau=tau, threshold=threshold,
                           residual=x1, out_dtype=jnp.float32)     # x1 + mlp(x1)

    return out.reshape(TB, N, C)


# ----------------------------- main -----------------------------

if __name__ == "__main__":
    # small shapes consistent with the module: T=2, B=2, tokens N=16, embed_dim C=32,
    # 4 heads (head_dim 8), mlp hidden = 4*C = 128.  (At this toy width stores are
    # lane-masked and the MXU is under-filled; benchmark at C=384/N=64 for real numbers.)
    T, B, N, C = 2, 2, 16, 32
    num_heads = 4
    mlp_ratio = 4.0
    attn_scale = 0.125
    tau, threshold = 2.0, 1.0

    key = jax.random.PRNGKey(0)
    kx, kp = jax.random.split(key)
    x = jax.random.normal(kx, (T * B, N, C), jnp.float32)
    params = init_block_params(kp, C, mlp_ratio)

    fwd = jax.jit(functools.partial(block_forward, T=T, num_heads=num_heads,
                                    attn_scale=attn_scale, tau=tau, threshold=threshold))
    out = fwd(x, params)
    jax.block_until_ready(out)
    assert out.shape == (T * B, N, C)
    assert out.dtype == jnp.float32
    print("KERNEL_OK")
</pallas_src>

<mosaic_0001>
module attributes {stable_mosaic.version = 11 : i64} {
  func.func @kernel(%arg0: i32, %arg1: memref<2x16x32xf32, #tpu.memory_space<vmem>>, %arg2: memref<32x128xbf16, #tpu.memory_space<vmem>>, %arg3: memref<1x128xf32, #tpu.memory_space<vmem>>, %arg4: memref<2x16x128xbf16, #tpu.memory_space<vmem>>) attributes {dimension_semantics = [#tpu.dimension_semantics<parallel>], iteration_bounds = array<i64: 2>, scalar_prefetch = 0 : i64, scratch_operands = 0 : i64, tpu.core_type = #tpu.core_type<tc>, window_params = [{transform_indices = @transform_0, window_bounds = array<i64: 2, 16, 32>}, {pipeline_mode = #tpu.pipeline_mode<synchronous>, transform_indices = @transform_1, window_bounds = array<i64: 32, 128>}, {pipeline_mode = #tpu.pipeline_mode<synchronous>, transform_indices = @transform_2, window_bounds = array<i64: 1, 128>}, {transform_indices = @transform_3, window_bounds = array<i64: 2, 16, 128>}]} {
    %c0 = arith.constant 0 : index
    %c0_0 = arith.constant 0 : index
    %c0_1 = arith.constant 0 : index
    %0 = vector.load %arg1[%c0, %c0_0, %c0_1] : memref<2x16x32xf32, #tpu.memory_space<vmem>>, vector<2x16x32xf32>
    %1 = vector.shape_cast %0 : vector<2x16x32xf32> to vector<32x32xf32>
    %2 = arith.truncf %1 : vector<32x32xf32> to vector<32x32xbf16>
    %c0_2 = arith.constant 0 : index
    %c0_3 = arith.constant 0 : index
    %3 = vector.load %arg2[%c0_2, %c0_3] : memref<32x128xbf16, #tpu.memory_space<vmem>>, vector<32x128xbf16>
    %cst = arith.constant dense<0.000000e+00> : vector<32x128xf32>
    %4 = tpu.matmul %2, %3, %cst {dimension_numbers = #tpu.dot_dimension_numbers<[1], [0], [0], [1], [0, 0, 1, 1], [], []>} : vector<32x32xbf16>, vector<32x128xbf16>, vector<32x128xf32> -> vector<32x128xf32>
    %c0_4 = arith.constant 0 : index
    %c0_5 = arith.constant 0 : index
    %5 = vector.load %arg3[%c0_4, %c0_5] : memref<1x128xf32, #tpu.memory_space<vmem>>, vector<1x128xf32>
    %6 = vector.broadcast %5 : vector<1x128xf32> to vector<32x128xf32>
    %7 = arith.addf %4, %6 : vector<32x128xf32>
    %8 = vector.shape_cast %7 : vector<32x128xf32> to vector<2x16x128xf32>
    %cst_6 = arith.constant 0.000000e+00 : f32
    %9 = vector.broadcast %cst_6 : f32 to vector<16x128xf32>
    %10 = vector.extract_strided_slice %8 {offsets = [0, 0, 0], sizes = [1, 16, 128], strides = [1, 1, 1]} : vector<2x16x128xf32> to vector<1x16x128xf32>
    %11 = vector.shape_cast %10 : vector<1x16x128xf32> to vector<16x128xf32>
    %12 = arith.subf %11, %9 : vector<16x128xf32>
    %cst_7 = arith.constant 5.000000e-01 : f32
    %13 = vector.broadcast %cst_7 : f32 to vector<16x128xf32>
    %14 = arith.mulf %12, %13 : vector<16x128xf32>
    %15 = arith.addf %9, %14 : vector<16x128xf32>
    %cst_8 = arith.constant 1.000000e+00 : f32
    %16 = vector.broadcast %cst_8 : f32 to vector<16x128xf32>
    %17 = arith.cmpf oge, %15, %16 : vector<16x128xf32>
    %18 = arith.extui %17 : vector<16x128xi1> to vector<16x128xi32>
    %19 = arith.sitofp %18 : vector<16x128xi32> to vector<16x128xf32>
    %cst_9 = arith.constant 1.000000e+00 : f32
    %20 = vector.broadcast %cst_9 : f32 to vector<16x128xf32>
    %21 = arith.subf %20, %19 : vector<16x128xf32>
    %22 = arith.mulf %15, %21 : vector<16x128xf32>
    %23 = arith.truncf %19 : vector<16x128xf32> to vector<16x128xbf16>
    %c0_10 = arith.constant 0 : index
    %c0_11 = arith.constant 0 : index
    %c0_12 = arith.constant 0 : index
    %24 = vector.load %arg4[%c0_10, %c0_11, %c0_12] : memref<2x16x128xbf16, #tpu.memory_space<vmem>>, vector<1x16x128xbf16>
    %25 = vector.shape_cast %24 : vector<1x16x128xbf16> to vector<16x128xbf16>
    %26 = vector.shape_cast %23 : vector<16x128xbf16> to vector<1x16x128xbf16>
    tpu.vector_store %arg4[%c0_10, %c0_11, %c0_12], %26 {strides = array<i32>} : memref<2x16x128xbf16, #tpu.memory_space<vmem>>, vector<1x16x128xbf16>,
    %27 = vector.extract_strided_slice %8 {offsets = [1, 0, 0], sizes = [1, 16, 128], strides = [1, 1, 1]} : vector<2x16x128xf32> to vector<1x16x128xf32>
    %28 = vector.shape_cast %27 : vector<1x16x128xf32> to vector<16x128xf32>
    %29 = arith.subf %28, %22 : vector<16x128xf32>
    %cst_13 = arith.constant 5.000000e-01 : f32
    %30 = vector.broadcast %cst_13 : f32 to vector<16x128xf32>
    %31 = arith.mulf %29, %30 : vector<16x128xf32>
    %32 = arith.addf %22, %31 : vector<16x128xf32>
    %cst_14 = arith.constant 1.000000e+00 : f32
    %33 = vector.broadcast %cst_14 : f32 to vector<16x128xf32>
    %34 = arith.cmpf oge, %32, %33 : vector<16x128xf32>
    %35 = arith.extui %34 : vector<16x128xi1> to vector<16x128xi32>
    %36 = arith.sitofp %35 : vector<16x128xi32> to vector<16x128xf32>
    %37 = arith.truncf %36 : vector<16x128xf32> to vector<16x128xbf16>
    %c1 = arith.constant 1 : index
    %c0_15 = arith.constant 0 : index
    %c0_16 = arith.constant 0 : index
    %38 = vector.load %arg4[%c1, %c0_15, %c0_16] : memref<2x16x128xbf16, #tpu.memory_space<vmem>>, vector<1x16x128xbf16>
    %39 = vector.shape_cast %38 : vector<1x16x128xbf16> to vector<16x128xbf16>
    %40 = vector.shape_cast %37 : vector<16x128xbf16> to vector<1x16x128xbf16>
    tpu.vector_store %arg4[%c1, %c0_15, %c0_16], %40 {strides = array<i32>} : memref<2x16x128xbf16, #tpu.memory_space<vmem>>, vector<1x16x128xbf16>,
    return
  }
  func.func @transform_0(%arg0: i32) -> (i32, i32, i32) {
    %c0_i32 = arith.constant 0 : i32
    %c0_i32_0 = arith.constant 0 : i32
    %c0_i32_1 = arith.constant 0 : i32
    return %c0_i32, %arg0, %c0_i32_0 : i32, i32, i32
  }
  func.func @transform_1(%arg0: i32) -> (i32, i32) {
    %c0_i32 = arith.constant 0 : i32
    %c0_i32_0 = arith.constant 0 : i32
    %c0_i32_1 = arith.constant 0 : i32
    return %c0_i32, %c0_i32_0 : i32, i32
  }
  func.func @transform_2(%arg0: i32) -> (i32, i32) {
    %c0_i32 = arith.constant 0 : i32
    %c0_i32_0 = arith.constant 0 : i32
    %c0_i32_1 = arith.constant 0 : i32
    return %c0_i32, %c0_i32_0 : i32, i32
  }
  func.func @transform_3(%arg0: i32) -> (i32, i32, i32) {
    %c0_i32 = arith.constant 0 : i32
    %c0_i32_0 = arith.constant 0 : i32
    %c0_i32_1 = arith.constant 0 : i32
    return %c0_i32, %arg0, %c0_i32_0 : i32, i32, i32
  }
}

module attributes {stable_mosaic.version = 11 : i64} {
  func.func @kernel(%arg0: i32, %arg1: memref<2x16x32xf32, #tpu.memory_space<vmem>>, %arg2: memref<32x32xbf16, #tpu.memory_space<vmem>>, %arg3: memref<1x32xf32, #tpu.memory_space<vmem>>, %arg4: memref<2x16x32xf32, #tpu.memory_space<vmem>>, %arg5: memref<2x16x32xf32, #tpu.memory_space<vmem>>, %arg6: memref<2x16x32xbf16, #tpu.memory_space<vmem>>) attributes {dimension_semantics = [#tpu.dimension_semantics<parallel>], iteration_bounds = array<i64: 2>, scalar_prefetch = 0 : i64, scratch_operands = 1 : i64, tpu.core_type = #tpu.core_type<tc>, window_params = [{transform_indices = @transform_0, window_bounds = array<i64: 2, 16, 32>}, {pipeline_mode = #tpu.pipeline_mode<synchronous>, transform_indices = @transform_1, window_bounds = array<i64: 32, 32>}, {pipeline_mode = #tpu.pipeline_mode<synchronous>, transform_indices = @transform_2, window_bounds = array<i64: 1, 32>}, {transform_indices = @transform_3, window_bounds = array<i64: 2, 16, 32>}, {transform_indices = @transform_4, window_bounds = array<i64: 2, 16, 32>}]} {
    %cst = arith.constant 0.000000e+00 : f32
    %0 = vector.broadcast %cst : f32 to vector<16x32xf32>
    %c0 = arith.constant 0 : index
    %c0_0 = arith.constant 0 : index
    %c0_1 = arith.constant 0 : index
    %1 = vector.load %arg1[%c0, %c0_0, %c0_1] : memref<2x16x32xf32, #tpu.memory_space<vmem>>, vector<1x16x32xf32>
    %2 = vector.shape_cast %1 : vector<1x16x32xf32> to vector<16x32xf32>
    %3 = arith.subf %2, %0 : vector<16x32xf32>
    %cst_2 = arith.constant 5.000000e-01 : f32
    %4 = vector.broadcast %cst_2 : f32 to vector<16x32xf32>
    %5 = arith.mulf %3, %4 : vector<16x32xf32>
    %6 = arith.addf %0, %5 : vector<16x32xf32>
    %cst_3 = arith.constant 5.000000e-01 : f32
    %7 = vector.broadcast %cst_3 : f32 to vector<16x32xf32>
    %8 = arith.cmpf oge, %6, %7 : vector<16x32xf32>
    %9 = arith.extui %8 : vector<16x32xi1> to vector<16x32xi32>
    %10 = arith.sitofp %9 : vector<16x32xi32> to vector<16x32xf32>
    %cst_4 = arith.constant 1.000000e+00 : f32
    %11 = vector.broadcast %cst_4 : f32 to vector<16x32xf32>
    %12 = arith.subf %11, %10 : vector<16x32xf32>
    %13 = arith.mulf %6, %12 : vector<16x32xf32>
    %14 = arith.truncf %10 : vector<16x32xf32> to vector<16x32xbf16>
    %c0_5 = arith.constant 0 : index
    %c0_6 = arith.constant 0 : index
    %c0_7 = arith.constant 0 : index
    %15 = vector.load %arg6[%c0_5, %c0_6, %c0_7] : memref<2x16x32xbf16, #tpu.memory_space<vmem>>, vector<1x16x32xbf16>
    %16 = vector.shape_cast %15 : vector<1x16x32xbf16> to vector<16x32xbf16>
    %17 = vector.shape_cast %14 : vector<16x32xbf16> to vector<1x16x32xbf16>
    tpu.vector_store %arg6[%c0_5, %c0_6, %c0_7], %17 {strides = array<i32>} : memref<2x16x32xbf16, #tpu.memory_space<vmem>>, vector<1x16x32xbf16>,
    %c1 = arith.constant 1 : index
    %c0_8 = arith.constant 0 : index
    %c0_9 = arith.constant 0 : index
    %18 = vector.load %arg1[%c1, %c0_8, %c0_9] : memref<2x16x32xf32, #tpu.memory_space<vmem>>, vector<1x16x32xf32>
    %19 = vector.shape_cast %18 : vector<1x16x32xf32> to vector<16x32xf32>
    %20 = arith.subf %19, %13 : vector<16x32xf32>
    %cst_10 = arith.constant 5.000000e-01 : f32
    %21 = vector.broadcast %cst_10 : f32 to vector<16x32xf32>
    %22 = arith.mulf %20, %21 : vector<16x32xf32>
    %23 = arith.addf %13, %22 : vector<16x32xf32>
    %cst_11 = arith.constant 5.000000e-01 : f32
    %24 = vector.broadcast %cst_11 : f32 to vector<16x32xf32>
    %25 = arith.cmpf oge, %23, %24 : vector<16x32xf32>
    %26 = arith.extui %25 : vector<16x32xi1> to vector<16x32xi32>
    %27 = arith.sitofp %26 : vector<16x32xi32> to vector<16x32xf32>
    %28 = arith.truncf %27 : vector<16x32xf32> to vector<16x32xbf16>
    %c1_12 = arith.constant 1 : index
    %c0_13 = arith.constant 0 : index
    %c0_14 = arith.constant 0 : index
    %29 = vector.load %arg6[%c1_12, %c0_13, %c0_14] : memref<2x16x32xbf16, #tpu.memory_space<vmem>>, vector<1x16x32xbf16>
    %30 = vector.shape_cast %29 : vector<1x16x32xbf16> to vector<16x32xbf16>
    %31 = vector.shape_cast %28 : vector<16x32xbf16> to vector<1x16x32xbf16>
    tpu.vector_store %arg6[%c1_12, %c0_13, %c0_14], %31 {strides = array<i32>} : memref<2x16x32xbf16, #tpu.memory_space<vmem>>, vector<1x16x32xbf16>,
    %c0_15 = arith.constant 0 : index
    %c0_16 = arith.constant 0 : index
    %c0_17 = arith.constant 0 : index
    %32 = vector.load %arg6[%c0_15, %c0_16, %c0_17] : memref<2x16x32xbf16, #tpu.memory_space<vmem>>, vector<2x16x32xbf16>
    %33 = vector.shape_cast %32 : vector<2x16x32xbf16> to vector<32x32xbf16>
    %c0_18 = arith.constant 0 : index
    %c0_19 = arith.constant 0 : index
    %34 = vector.load %arg2[%c0_18, %c0_19] : memref<32x32xbf16, #tpu.memory_space<vmem>>, vector<32x32xbf16>
    %cst_20 = arith.constant dense<0.000000e+00> : vector<32x32xf32>
    %35 = tpu.matmul %33, %34, %cst_20 {dimension_numbers = #tpu.dot_dimension_numbers<[1], [0], [0], [1], [0, 0, 1, 1], [], []>} : vector<32x32xbf16>, vector<32x32xbf16>, vector<32x32xf32> -> vector<32x32xf32>
    %c0_21 = arith.constant 0 : index
    %c0_22 = arith.constant 0 : index
    %36 = vector.load %arg3[%c0_21, %c0_22] : memref<1x32xf32, #tpu.memory_space<vmem>>, vector<1x32xf32>
    %37 = vector.broadcast %36 : vector<1x32xf32> to vector<32x32xf32>
    %38 = arith.addf %35, %37 : vector<32x32xf32>
    %39 = vector.shape_cast %38 : vector<32x32xf32> to vector<2x16x32xf32>
    %cst_23 = arith.constant 0.000000e+00 : f32
    %40 = vector.broadcast %cst_23 : f32 to vector<16x32xf32>
    %41 = vector.extract_strided_slice %39 {offsets = [0, 0, 0], sizes = [1, 16, 32], strides = [1, 1, 1]} : vector<2x16x32xf32> to vector<1x16x32xf32>
    %42 = vector.shape_cast %41 : vector<1x16x32xf32> to vector<16x32xf32>
    %43 = arith.subf %42, %40 : vector<16x32xf32>
    %cst_24 = arith.constant 5.000000e-01 : f32
    %44 = vector.broadcast %cst_24 : f32 to vector<16x32xf32>
    %45 = arith.mulf %43, %44 : vector<16x32xf32>
    %46 = arith.addf %40, %45 : vector<16x32xf32>
    %cst_25 = arith.constant 1.000000e+00 : f32
    %47 = vector.broadcast %cst_25 : f32 to vector<16x32xf32>
    %48 = arith.cmpf oge, %46, %47 : vector<16x32xf32>
    %49 = arith.extui %48 : vector<16x32xi1> to vector<16x32xi32>
    %50 = arith.sitofp %49 : vector<16x32xi32> to vector<16x32xf32>
    %cst_26 = arith.constant 1.000000e+00 : f32
    %51 = vector.broadcast %cst_26 : f32 to vector<16x32xf32>
    %52 = arith.subf %51, %50 : vector<16x32xf32>
    %53 = arith.mulf %46, %52 : vector<16x32xf32>
    %c0_27 = arith.constant 0 : index
    %c0_28 = arith.constant 0 : index
    %c0_29 = arith.constant 0 : index
    %54 = vector.load %arg4[%c0_27, %c0_28, %c0_29] : memref<2x16x32xf32, #tpu.memory_space<vmem>>, vector<1x16x32xf32>
    %55 = vector.shape_cast %54 : vector<1x16x32xf32> to vector<16x32xf32>
    %56 = arith.addf %50, %55 : vector<16x32xf32>
    %c0_30 = arith.constant 0 : index
    %c0_31 = arith.constant 0 : index
    %c0_32 = arith.constant 0 : index
    %57 = vector.load %arg5[%c0_30, %c0_31, %c0_32] : memref<2x16x32xf32, #tpu.memory_space<vmem>>, vector<1x16x32xf32>
    %58 = vector.shape_cast %57 : vector<1x16x32xf32> to vector<16x32xf32>
    %59 = vector.shape_cast %56 : vector<16x32xf32> to vector<1x16x32xf32>
    tpu.vector_store %arg5[%c0_30, %c0_31, %c0_32], %59 {strides = array<i32>} : memref<2x16x32xf32, #tpu.memory_space<vmem>>, vector<1x16x32xf32>,
    %60 = vector.extract_strided_slice %39 {offsets = [1, 0, 0], sizes = [1, 16, 32], strides = [1, 1, 1]} : vector<2x16x32xf32> to vector<1x16x32xf32>
    %61 = vector.shape_cast %60 : vector<1x16x32xf32> to vector<16x32xf32>
    %62 = arith.subf %61, %53 : vector<16x32xf32>
    %cst_33 = arith.constant 5.000000e-01 : f32
    %63 = vector.broadcast %cst_33 : f32 to vector<16x32xf32>
    %64 = arith.mulf %62, %63 : vector<16x32xf32>
    %65 = arith.addf %53, %64 : vector<16x32xf32>
    %cst_34 = arith.constant 1.000000e+00 : f32
    %66 = vector.broadcast %cst_34 : f32 to vector<16x32xf32>
    %67 = arith.cmpf oge, %65, %66 : vector<16x32xf32>
    %68 = arith.extui %67 : vector<16x32xi1> to vector<16x32xi32>
    %69 = arith.sitofp %68 : vector<16x32xi32> to vector<16x32xf32>
    %c1_35 = arith.constant 1 : index
    %c0_36 = arith.constant 0 : index
    %c0_37 = arith.constant 0 : index
    %70 = vector.load %arg4[%c1_35, %c0_36, %c0_37] : memref<2x16x32xf32, #tpu.memory_space<vmem>>, vector<1x16x32xf32>
    %71 = vector.shape_cast %70 : vector<1x16x32xf32> to vector<16x32xf32>
    %72 = arith.addf %69, %71 : vector<16x32xf32>
    %c1_38 = arith.constant 1 : index
    %c0_39 = arith.constant 0 : index
    %c0_40 = arith.constant 0 : index
    %73 = vector.load %arg5[%c1_38, %c0_39, %c0_40] : memref<2x16x32xf32, #tpu.memory_space<vmem>>, vector<1x16x32xf32>
    %74 = vector.shape_cast %73 : vector<1x16x32xf32> to vector<16x32xf32>
    %75 = vector.shape_cast %72 : vector<16x32xf32> to vector<1x16x32xf32>
    tpu.vector_store %arg5[%c1_38, %c0_39, %c0_40], %75 {strides = array<i32>} : memref<2x16x32xf32, #tpu.memory_space<vmem>>, vector<1x16x32xf32>,
    return
  }
  func.func @transform_0(%arg0: i32) -> (i32, i32, i32) {
    %c0_i32 = arith.constant 0 : i32
    %c0_i32_0 = arith.constant 0 : i32
    %c0_i32_1 = arith.constant 0 : i32
    return %c0_i32, %arg0, %c0_i32_0 : i32, i32, i32
  }
  func.func @transform_1(%arg0: i32) -> (i32, i32) {
    %c0_i32 = arith.constant 0 : i32
    %c0_i32_0 = arith.constant 0 : i32
    %c0_i32_1 = arith.constant 0 : i32
    return %c0_i32, %c0_i32_0 : i32, i32
  }
  func.func @transform_2(%arg0: i32) -> (i32, i32) {
    %c0_i32 = arith.constant 0 : i32
    %c0_i32_0 = arith.constant 0 : i32
    %c0_i32_1 = arith.constant 0 : i32
    return %c0_i32, %c0_i32_0 : i32, i32
  }
  func.func @transform_3(%arg0: i32) -> (i32, i32, i32) {
    %c0_i32 = arith.constant 0 : i32
    %c0_i32_0 = arith.constant 0 : i32
    %c0_i32_1 = arith.constant 0 : i32
    return %c0_i32, %arg0, %c0_i32_0 : i32, i32, i32
  }
  func.func @transform_4(%arg0: i32) -> (i32, i32, i32) {
    %c0_i32 = arith.constant 0 : i32
    %c0_i32_0 = arith.constant 0 : i32
    %c0_i32_1 = arith.constant 0 : i32
    return %c0_i32, %arg0, %c0_i32_0 : i32, i32, i32
  }
}

module attributes {stable_mosaic.version = 11 : i64} {
  func.func @kernel(%arg0: i32, %arg1: memref<2x16x32xf32, #tpu.memory_space<vmem>>, %arg2: memref<32x96xbf16, #tpu.memory_space<vmem>>, %arg3: memref<1x96xf32, #tpu.memory_space<vmem>>, %arg4: memref<2x16x32xf32, #tpu.memory_space<vmem>>, %arg5: memref<2x16x96xbf16, #tpu.memory_space<vmem>>) attributes {dimension_semantics = [#tpu.dimension_semantics<parallel>], iteration_bounds = array<i64: 2>, scalar_prefetch = 0 : i64, scratch_operands = 1 : i64, tpu.core_type = #tpu.core_type<tc>, window_params = [{transform_indices = @transform_0, window_bounds = array<i64: 2, 16, 32>}, {pipeline_mode = #tpu.pipeline_mode<synchronous>, transform_indices = @transform_1, window_bounds = array<i64: 32, 96>}, {pipeline_mode = #tpu.pipeline_mode<synchronous>, transform_indices = @transform_2, window_bounds = array<i64: 1, 96>}, {transform_indices = @transform_3, window_bounds = array<i64: 2, 16, 32>}]} {
    %c0 = arith.constant 0 : index
    %c0_0 = arith.constant 0 : index
    %c0_1 = arith.constant 0 : index
    %0 = vector.load %arg1[%c0, %c0_0, %c0_1] : memref<2x16x32xf32, #tpu.memory_space<vmem>>, vector<2x16x32xf32>
    %1 = vector.shape_cast %0 : vector<2x16x32xf32> to vector<32x32xf32>
    %2 = arith.truncf %1 : vector<32x32xf32> to vector<32x32xbf16>
    %c0_2 = arith.constant 0 : index
    %c0_3 = arith.constant 0 : index
    %3 = vector.load %arg2[%c0_2, %c0_3] : memref<32x96xbf16, #tpu.memory_space<vmem>>, vector<32x96xbf16>
    %cst = arith.constant dense<0.000000e+00> : vector<32x96xf32>
    %4 = tpu.matmul %2, %3, %cst {dimension_numbers = #tpu.dot_dimension_numbers<[1], [0], [0], [1], [0, 0, 1, 1], [], []>} : vector<32x32xbf16>, vector<32x96xbf16>, vector<32x96xf32> -> vector<32x96xf32>
    %c0_4 = arith.constant 0 : index
    %c0_5 = arith.constant 0 : index
    %5 = vector.load %arg3[%c0_4, %c0_5] : memref<1x96xf32, #tpu.memory_space<vmem>>, vector<1x96xf32>
    %6 = vector.broadcast %5 : vector<1x96xf32> to vector<32x96xf32>
    %7 = arith.addf %4, %6 : vector<32x96xf32>
    %8 = vector.shape_cast %7 : vector<32x96xf32> to vector<2x16x96xf32>
    %cst_6 = arith.constant 0.000000e+00 : f32
    %9 = vector.broadcast %cst_6 : f32 to vector<16x96xf32>
    %10 = vector.extract_strided_slice %8 {offsets = [0, 0, 0], sizes = [1, 16, 96], strides = [1, 1, 1]} : vector<2x16x96xf32> to vector<1x16x96xf32>
    %11 = vector.shape_cast %10 : vector<1x16x96xf32> to vector<16x96xf32>
    %12 = arith.subf %11, %9 : vector<16x96xf32>
    %cst_7 = arith.constant 5.000000e-01 : f32
    %13 = vector.broadcast %cst_7 : f32 to vector<16x96xf32>
    %14 = arith.mulf %12, %13 : vector<16x96xf32>
    %15 = arith.addf %9, %14 : vector<16x96xf32>
    %cst_8 = arith.constant 1.000000e+00 : f32
    %16 = vector.broadcast %cst_8 : f32 to vector<16x96xf32>
    %17 = arith.cmpf oge, %15, %16 : vector<16x96xf32>
    %18 = arith.extui %17 : vector<16x96xi1> to vector<16x96xi32>
    %19 = arith.sitofp %18 : vector<16x96xi32> to vector<16x96xf32>
    %cst_9 = arith.constant 1.000000e+00 : f32
    %20 = vector.broadcast %cst_9 : f32 to vector<16x96xf32>
    %21 = arith.subf %20, %19 : vector<16x96xf32>
    %22 = arith.mulf %15, %21 : vector<16x96xf32>
    %23 = arith.truncf %19 : vector<16x96xf32> to vector<16x96xbf16>
    %c0_10 = arith.constant 0 : index
    %c0_11 = arith.constant 0 : index
    %c0_12 = arith.constant 0 : index
    %24 = vector.load %arg5[%c0_10, %c0_11, %c0_12] : memref<2x16x96xbf16, #tpu.memory_space<vmem>>, vector<1x16x96xbf16>
    %25 = vector.shape_cast %24 : vector<1x16x96xbf16> to vector<16x96xbf16>
    %26 = vector.shape_cast %23 : vector<16x96xbf16> to vector<1x16x96xbf16>
    tpu.vector_store %arg5[%c0_10, %c0_11, %c0_12], %26 {strides = array<i32>} : memref<2x16x96xbf16, #tpu.memory_space<vmem>>, vector<1x16x96xbf16>,
    %27 = vector.extract_strided_slice %8 {offsets = [1, 0, 0], sizes = [1, 16, 96], strides = [1, 1, 1]} : vector<2x16x96xf32> to vector<1x16x96xf32>
    %28 = vector.shape_cast %27 : vector<1x16x96xf32> to vector<16x96xf32>
    %29 = arith.subf %28, %22 : vector<16x96xf32>
    %cst_13 = arith.constant 5.000000e-01 : f32
    %30 = vector.broadcast %cst_13 : f32 to vector<16x96xf32>
    %31 = arith.mulf %29, %30 : vector<16x96xf32>
    %32 = arith.addf %22, %31 : vector<16x96xf32>
    %cst_14 = arith.constant 1.000000e+00 : f32
    %33 = vector.broadcast %cst_14 : f32 to vector<16x96xf32>
    %34 = arith.cmpf oge, %32, %33 : vector<16x96xf32>
    %35 = arith.extui %34 : vector<16x96xi1> to vector<16x96xi32>
    %36 = arith.sitofp %35 : vector<16x96xi32> to vector<16x96xf32>
    %37 = arith.truncf %36 : vector<16x96xf32> to vector<16x96xbf16>
    %c1 = arith.constant 1 : index
    %c0_15 = arith.constant 0 : index
    %c0_16 = arith.constant 0 : index
    %38 = vector.load %arg5[%c1, %c0_15, %c0_16] : memref<2x16x96xbf16, #tpu.memory_space<vmem>>, vector<1x16x96xbf16>
    %39 = vector.shape_cast %38 : vector<1x16x96xbf16> to vector<16x96xbf16>
    %40 = vector.shape_cast %37 : vector<16x96xbf16> to vector<1x16x96xbf16>
    tpu.vector_store %arg5[%c1, %c0_15, %c0_16], %40 {strides = array<i32>} : memref<2x16x96xbf16, #tpu.memory_space<vmem>>, vector<1x16x96xbf16>,
    %c0_17 = arith.constant 0 : index
    %c0_18 = arith.constant 0 : index
    %c0_19 = arith.constant 0 : index
    %41 = vector.load %arg5[%c0_17, %c0_18, %c0_19] : memref<2x16x96xbf16, #tpu.memory_space<vmem>>, vector<2x16x8xbf16>
    %c0_20 = arith.constant 0 : index
    %c0_21 = arith.constant 0 : index
    %c32 = arith.constant 32 : index
    %42 = vector.load %arg5[%c0_20, %c0_21, %c32] : memref<2x16x96xbf16, #tpu.memory_space<vmem>>, vector<2x16x8xbf16>
    %c0_22 = arith.constant 0 : index
    %c0_23 = arith.constant 0 : index
    %c64 = arith.constant 64 : index
    %43 = vector.load %arg5[%c0_22, %c0_23, %c64] : memref<2x16x96xbf16, #tpu.memory_space<vmem>>, vector<2x16x8xbf16>
    %cst_24 = arith.constant dense<0.000000e+00> : vector<2x8x8xf32>
    %44 = tpu.matmul %42, %43, %cst_24 {dimension_numbers = #tpu.dot_dimension_numbers<[1], [1], [2], [2], [0, 0, 0, 2, 1, 2], [0], [0]>} : vector<2x16x8xbf16>, vector<2x16x8xbf16>, vector<2x8x8xf32> -> vector<2x8x8xf32>
    %cst_25 = arith.constant 1.250000e-01 : f32
    %45 = vector.broadcast %cst_25 : f32 to vector<2x8x8xf32>
    %46 = arith.mulf %44, %45 : vector<2x8x8xf32>
    %47 = arith.truncf %46 : vector<2x8x8xf32> to vector<2x8x8xbf16>
    %cst_26 = arith.constant dense<0.000000e+00> : vector<2x16x8xf32>
    %48 = tpu.matmul %41, %47, %cst_26 {dimension_numbers = #tpu.dot_dimension_numbers<[2], [1], [1], [2], [0, 0, 0, 1, 1, 2], [0], [0]>} : vector<2x16x8xbf16>, vector<2x8x8xbf16>, vector<2x16x8xf32> -> vector<2x16x8xf32>
    %c0_27 = arith.constant 0 : index
    %c0_28 = arith.constant 0 : index
    %c0_29 = arith.constant 0 : index
    %49 = vector.load %arg4[%c0_27, %c0_28, %c0_29] : memref<2x16x32xf32, #tpu.memory_space<vmem>>, vector<2x16x8xf32>
    tpu.vector_store %arg4[%c0_27, %c0_28, %c0_29], %48 {strides = array<i32>} : memref<2x16x32xf32, #tpu.memory_space<vmem>>, vector<2x16x8xf32>,
    %c0_30 = arith.constant 0 : index
    %c0_31 = arith.constant 0 : index
    %c8 = arith.constant 8 : index
    %50 = vector.load %arg5[%c0_30, %c0_31, %c8] : memref<2x16x96xbf16, #tpu.memory_space<vmem>>, vector<2x16x8xbf16>
    %c0_32 = arith.constant 0 : index
    %c0_33 = arith.constant 0 : index
    %c40 = arith.constant 40 : index
    %51 = vector.load %arg5[%c0_32, %c0_33, %c40] : memref<2x16x96xbf16, #tpu.memory_space<vmem>>, vector<2x16x8xbf16>
    %c0_34 = arith.constant 0 : index
    %c0_35 = arith.constant 0 : index
    %c72 = arith.constant 72 : index
    %52 = vector.load %arg5[%c0_34, %c0_35, %c72] : memref<2x16x96xbf16, #tpu.memory_space<vmem>>, vector<2x16x8xbf16>
    %cst_36 = arith.constant dense<0.000000e+00> : vector<2x8x8xf32>
    %53 = tpu.matmul %51, %52, %cst_36 {dimension_numbers = #tpu.dot_dimension_numbers<[1], [1], [2], [2], [0, 0, 0, 2, 1, 2], [0], [0]>} : vector<2x16x8xbf16>, vector<2x16x8xbf16>, vector<2x8x8xf32> -> vector<2x8x8xf32>
    %cst_37 = arith.constant 1.250000e-01 : f32
    %54 = vector.broadcast %cst_37 : f32 to vector<2x8x8xf32>
    %55 = arith.mulf %53, %54 : vector<2x8x8xf32>
    %56 = arith.truncf %55 : vector<2x8x8xf32> to vector<2x8x8xbf16>
    %cst_38 = arith.constant dense<0.000000e+00> : vector<2x16x8xf32>
    %57 = tpu.matmul %50, %56, %cst_38 {dimension_numbers = #tpu.dot_dimension_numbers<[2], [1], [1], [2], [0, 0, 0, 1, 1, 2], [0], [0]>} : vector<2x16x8xbf16>, vector<2x8x8xbf16>, vector<2x16x8xf32> -> vector<2x16x8xf32>
    %c0_39 = arith.constant 0 : index
    %c0_40 = arith.constant 0 : index
    %c8_41 = arith.constant 8 : index
    %58 = vector.load %arg4[%c0_39, %c0_40, %c8_41] : memref<2x16x32xf32, #tpu.memory_space<vmem>>, vector<2x16x8xf32>
    tpu.vector_store %arg4[%c0_39, %c0_40, %c8_41], %57 {strides = array<i32>} : memref<2x16x32xf32, #tpu.memory_space<vmem>>, vector<2x16x8xf32>,
    %c0_42 = arith.constant 0 : index
    %c0_43 = arith.constant 0 : index
    %c16 = arith.constant 16 : index
    %59 = vector.load %arg5[%c0_42, %c0_43, %c16] : memref<2x16x96xbf16, #tpu.memory_space<vmem>>, vector<2x16x8xbf16>
    %c0_44 = arith.constant 0 : index
    %c0_45 = arith.constant 0 : index
    %c48 = arith.constant 48 : index
    %60 = vector.load %arg5[%c0_44, %c0_45, %c48] : memref<2x16x96xbf16, #tpu.memory_space<vmem>>, vector<2x16x8xbf16>
    %c0_46 = arith.constant 0 : index
    %c0_47 = arith.constant 0 : index
    %c80 = arith.constant 80 : index
    %61 = vector.load %arg5[%c0_46, %c0_47, %c80] : memref<2x16x96xbf16, #tpu.memory_space<vmem>>, vector<2x16x8xbf16>
    %cst_48 = arith.constant dense<0.000000e+00> : vector<2x8x8xf32>
    %62 = tpu.matmul %60, %61, %cst_48 {dimension_numbers = #tpu.dot_dimension_numbers<[1], [1], [2], [2], [0, 0, 0, 2, 1, 2], [0], [0]>} : vector<2x16x8xbf16>, vector<2x16x8xbf16>, vector<2x8x8xf32> -> vector<2x8x8xf32>
    %cst_49 = arith.constant 1.250000e-01 : f32
    %63 = vector.broadcast %cst_49 : f32 to vector<2x8x8xf32>
    %64 = arith.mulf %62, %63 : vector<2x8x8xf32>
    %65 = arith.truncf %64 : vector<2x8x8xf32> to vector<2x8x8xbf16>
    %cst_50 = arith.constant dense<0.000000e+00> : vector<2x16x8xf32>
    %66 = tpu.matmul %59, %65, %cst_50 {dimension_numbers = #tpu.dot_dimension_numbers<[2], [1], [1], [2], [0, 0, 0, 1, 1, 2], [0], [0]>} : vector<2x16x8xbf16>, vector<2x8x8xbf16>, vector<2x16x8xf32> -> vector<2x16x8xf32>
    %c0_51 = arith.constant 0 : index
    %c0_52 = arith.constant 0 : index
    %c16_53 = arith.constant 16 : index
    %67 = vector.load %arg4[%c0_51, %c0_52, %c16_53] : memref<2x16x32xf32, #tpu.memory_space<vmem>>, vector<2x16x8xf32>
    tpu.vector_store %arg4[%c0_51, %c0_52, %c16_53], %66 {strides = array<i32>} : memref<2x16x32xf32, #tpu.memory_space<vmem>>, vector<2x16x8xf32>,
    %c0_54 = arith.constant 0 : index
    %c0_55 = arith.constant 0 : index
    %c24 = arith.constant 24 : index
    %68 = vector.load %arg5[%c0_54, %c0_55, %c24] : memref<2x16x96xbf16, #tpu.memory_space<vmem>>, vector<2x16x8xbf16>
    %c0_56 = arith.constant 0 : index
    %c0_57 = arith.constant 0 : index
    %c56 = arith.constant 56 : index
    %69 = vector.load %arg5[%c0_56, %c0_57, %c56] : memref<2x16x96xbf16, #tpu.memory_space<vmem>>, vector<2x16x8xbf16>
    %c0_58 = arith.constant 0 : index
    %c0_59 = arith.constant 0 : index
    %c88 = arith.constant 88 : index
    %70 = vector.load %arg5[%c0_58, %c0_59, %c88] : memref<2x16x96xbf16, #tpu.memory_space<vmem>>, vector<2x16x8xbf16>
    %cst_60 = arith.constant dense<0.000000e+00> : vector<2x8x8xf32>
    %71 = tpu.matmul %69, %70, %cst_60 {dimension_numbers = #tpu.dot_dimension_numbers<[1], [1], [2], [2], [0, 0, 0, 2, 1, 2], [0], [0]>} : vector<2x16x8xbf16>, vector<2x16x8xbf16>, vector<2x8x8xf32> -> vector<2x8x8xf32>
    %cst_61 = arith.constant 1.250000e-01 : f32
    %72 = vector.broadcast %cst_61 : f32 to vector<2x8x8xf32>
    %73 = arith.mulf %71, %72 : vector<2x8x8xf32>
    %74 = arith.truncf %73 : vector<2x8x8xf32> to vector<2x8x8xbf16>
    %cst_62 = arith.constant dense<0.000000e+00> : vector<2x16x8xf32>
    %75 = tpu.matmul %68, %74, %cst_62 {dimension_numbers = #tpu.dot_dimension_numbers<[2], [1], [1], [2], [0, 0, 0, 1, 1, 2], [0], [0]>} : vector<2x16x8xbf16>, vector<2x8x8xbf16>, vector<2x16x8xf32> -> vector<2x16x8xf32>
    %c0_63 = arith.constant 0 : index
    %c0_64 = arith.constant 0 : index
    %c24_65 = arith.constant 24 : index
    %76 = vector.load %arg4[%c0_63, %c0_64, %c24_65] : memref<2x16x32xf32, #tpu.memory_space<vmem>>, vector<2x16x8xf32>
    tpu.vector_store %arg4[%c0_63, %c0_64, %c24_65], %75 {strides = array<i32>} : memref<2x16x32xf32, #tpu.memory_space<vmem>>, vector<2x16x8xf32>,
    return
  }
  func.func @transform_0(%arg0: i32) -> (i32, i32, i32) {
    %c0_i32 = arith.constant 0 : i32
    %c0_i32_0 = arith.constant 0 : i32
    %c0_i32_1 = arith.constant 0 : i32
    return %c0_i32, %arg0, %c0_i32_0 : i32, i32, i32
  }
  func.func @transform_1(%arg0: i32) -> (i32, i32) {
    %c0_i32 = arith.constant 0 : i32
    %c0_i32_0 = arith.constant 0 : i32
    %c0_i32_1 = arith.constant 0 : i32
    return %c0_i32, %c0_i32_0 : i32, i32
  }
  func.func @transform_2(%arg0: i32) -> (i32, i32) {
    %c0_i32 = arith.constant 0 : i32
    %c0_i32_0 = arith.constant 0 : i32
    %c0_i32_1 = arith.constant 0 : i32
    return %c0_i32, %c0_i32_0 : i32, i32
  }
  func.func @transform_3(%arg0: i32) -> (i32, i32, i32) {
    %c0_i32 = arith.constant 0 : i32
    %c0_i32_0 = arith.constant 0 : i32
    %c0_i32_1 = arith.constant 0 : i32
    return %c0_i32, %arg0, %c0_i32_0 : i32, i32, i32
  }
}

module attributes {stable_mosaic.version = 11 : i64} {
  func.func @kernel(%arg0: i32, %arg1: memref<2x16x128xbf16, #tpu.memory_space<vmem>>, %arg2: memref<128x32xbf16, #tpu.memory_space<vmem>>, %arg3: memref<1x32xf32, #tpu.memory_space<vmem>>, %arg4: memref<2x16x32xf32, #tpu.memory_space<vmem>>, %arg5: memref<2x16x32xf32, #tpu.memory_space<vmem>>) attributes {dimension_semantics = [#tpu.dimension_semantics<parallel>], iteration_bounds = array<i64: 2>, scalar_prefetch = 0 : i64, scratch_operands = 0 : i64, tpu.core_type = #tpu.core_type<tc>, window_params = [{transform_indices = @transform_0, window_bounds = array<i64: 2, 16, 128>}, {pipeline_mode = #tpu.pipeline_mode<synchronous>, transform_indices = @transform_1, window_bounds = array<i64: 128, 32>}, {pipeline_mode = #tpu.pipeline_mode<synchronous>, transform_indices = @transform_2, window_bounds = array<i64: 1, 32>}, {transform_indices = @transform_3, window_bounds = array<i64: 2, 16, 32>}, {transform_indices = @transform_4, window_bounds = array<i64: 2, 16, 32>}]} {
    %c0 = arith.constant 0 : index
    %c0_0 = arith.constant 0 : index
    %c0_1 = arith.constant 0 : index
    %0 = vector.load %arg1[%c0, %c0_0, %c0_1] : memref<2x16x128xbf16, #tpu.memory_space<vmem>>, vector<2x16x128xbf16>
    %1 = vector.shape_cast %0 : vector<2x16x128xbf16> to vector<32x128xbf16>
    %c0_2 = arith.constant 0 : index
    %c0_3 = arith.constant 0 : index
    %2 = vector.load %arg2[%c0_2, %c0_3] : memref<128x32xbf16, #tpu.memory_space<vmem>>, vector<128x32xbf16>
    %cst = arith.constant dense<0.000000e+00> : vector<32x32xf32>
    %3 = tpu.matmul %1, %2, %cst {dimension_numbers = #tpu.dot_dimension_numbers<[1], [0], [0], [1], [0, 0, 1, 1], [], []>} : vector<32x128xbf16>, vector<128x32xbf16>, vector<32x32xf32> -> vector<32x32xf32>
    %c0_4 = arith.constant 0 : index
    %c0_5 = arith.constant 0 : index
    %4 = vector.load %arg3[%c0_4, %c0_5] : memref<1x32xf32, #tpu.memory_space<vmem>>, vector<1x32xf32>
    %5 = vector.broadcast %4 : vector<1x32xf32> to vector<32x32xf32>
    %6 = arith.addf %3, %5 : vector<32x32xf32>
    %7 = vector.shape_cast %6 : vector<32x32xf32> to vector<2x16x32xf32>
    %cst_6 = arith.constant 0.000000e+00 : f32
    %8 = vector.broadcast %cst_6 : f32 to vector<16x32xf32>
    %9 = vector.extract_strided_slice %7 {offsets = [0, 0, 0], sizes = [1, 16, 32], strides = [1, 1, 1]} : vector<2x16x32xf32> to vector<1x16x32xf32>
    %10 = vector.shape_cast %9 : vector<1x16x32xf32> to vector<16x32xf32>
    %11 = arith.subf %10, %8 : vector<16x32xf32>
    %cst_7 = arith.constant 5.000000e-01 : f32
    %12 = vector.broadcast %cst_7 : f32 to vector<16x32xf32>
    %13 = arith.mulf %11, %12 : vector<16x32xf32>
    %14 = arith.addf %8, %13 : vector<16x32xf32>
    %cst_8 = arith.constant 1.000000e+00 : f32
    %15 = vector.broadcast %cst_8 : f32 to vector<16x32xf32>
    %16 = arith.cmpf oge, %14, %15 : vector<16x32xf32>
    %17 = arith.extui %16 : vector<16x32xi1> to vector<16x32xi32>
    %18 = arith.sitofp %17 : vector<16x32xi32> to vector<16x32xf32>
    %cst_9 = arith.constant 1.000000e+00 : f32
    %19 = vector.broadcast %cst_9 : f32 to vector<16x32xf32>
    %20 = arith.subf %19, %18 : vector<16x32xf32>
    %21 = arith.mulf %14, %20 : vector<16x32xf32>
    %c0_10 = arith.constant 0 : index
    %c0_11 = arith.constant 0 : index
    %c0_12 = arith.constant 0 : index
    %22 = vector.load %arg4[%c0_10, %c0_11, %c0_12] : memref<2x16x32xf32, #tpu.memory_space<vmem>>, vector<1x16x32xf32>
    %23 = vector.shape_cast %22 : vector<1x16x32xf32> to vector<16x32xf32>
    %24 = arith.addf %18, %23 : vector<16x32xf32>
    %c0_13 = arith.constant 0 : index
    %c0_14 = arith.constant 0 : index
    %c0_15 = arith.constant 0 : index
    %25 = vector.load %arg5[%c0_13, %c0_14, %c0_15] : memref<2x16x32xf32, #tpu.memory_space<vmem>>, vector<1x16x32xf32>
    %26 = vector.shape_cast %25 : vector<1x16x32xf32> to vector<16x32xf32>
    %27 = vector.shape_cast %24 : vector<16x32xf32> to vector<1x16x32xf32>
    tpu.vector_store %arg5[%c0_13, %c0_14, %c0_15], %27 {strides = array<i32>} : memref<2x16x32xf32, #tpu.memory_space<vmem>>, vector<1x16x32xf32>,
    %28 = vector.extract_strided_slice %7 {offsets = [1, 0, 0], sizes = [1, 16, 32], strides = [1, 1, 1]} : vector<2x16x32xf32> to vector<1x16x32xf32>
    %29 = vector.shape_cast %28 : vector<1x16x32xf32> to vector<16x32xf32>
    %30 = arith.subf %29, %21 : vector<16x32xf32>
    %cst_16 = arith.constant 5.000000e-01 : f32
    %31 = vector.broadcast %cst_16 : f32 to vector<16x32xf32>
    %32 = arith.mulf %30, %31 : vector<16x32xf32>
    %33 = arith.addf %21, %32 : vector<16x32xf32>
    %cst_17 = arith.constant 1.000000e+00 : f32
    %34 = vector.broadcast %cst_17 : f32 to vector<16x32xf32>
    %35 = arith.cmpf oge, %33, %34 : vector<16x32xf32>
    %36 = arith.extui %35 : vector<16x32xi1> to vector<16x32xi32>
    %37 = arith.sitofp %36 : vector<16x32xi32> to vector<16x32xf32>
    %c1 = arith.constant 1 : index
    %c0_18 = arith.constant 0 : index
    %c0_19 = arith.constant 0 : index
    %38 = vector.load %arg4[%c1, %c0_18, %c0_19] : memref<2x16x32xf32, #tpu.memory_space<vmem>>, vector<1x16x32xf32>
    %39 = vector.shape_cast %38 : vector<1x16x32xf32> to vector<16x32xf32>
    %40 = arith.addf %37, %39 : vector<16x32xf32>
    %c1_20 = arith.constant 1 : index
    %c0_21 = arith.constant 0 : index
    %c0_22 = arith.constant 0 : index
    %41 = vector.load %arg5[%c1_20, %c0_21, %c0_22] : memref<2x16x32xf32, #tpu.memory_space<vmem>>, vector<1x16x32xf32>
    %42 = vector.shape_cast %41 : vector<1x16x32xf32> to vector<16x32xf32>
    %43 = vector.shape_cast %40 : vector<16x32xf32> to vector<1x16x32xf32>
    tpu.vector_store %arg5[%c1_20, %c0_21, %c0_22], %43 {strides = array<i32>} : memref<2x16x32xf32, #tpu.memory_space<vmem>>, vector<1x16x32xf32>,
    return
  }
  func.func @transform_0(%arg0: i32) -> (i32, i32, i32) {
    %c0_i32 = arith.constant 0 : i32
    %c0_i32_0 = arith.constant 0 : i32
    %c0_i32_1 = arith.constant 0 : i32
    return %c0_i32, %arg0, %c0_i32_0 : i32, i32, i32
  }
  func.func @transform_1(%arg0: i32) -> (i32, i32) {
    %c0_i32 = arith.constant 0 : i32
    %c0_i32_0 = arith.constant 0 : i32
    %c0_i32_1 = arith.constant 0 : i32
    return %c0_i32, %c0_i32_0 : i32, i32
  }
  func.func @transform_2(%arg0: i32) -> (i32, i32) {
    %c0_i32 = arith.constant 0 : i32
    %c0_i32_0 = arith.constant 0 : i32
    %c0_i32_1 = arith.constant 0 : i32
    return %c0_i32, %c0_i32_0 : i32, i32
  }
  func.func @transform_3(%arg0: i32) -> (i32, i32, i32) {
    %c0_i32 = arith.constant 0 : i32
    %c0_i32_0 = arith.constant 0 : i32
    %c0_i32_1 = arith.constant 0 : i32
    return %c0_i32, %arg0, %c0_i32_0 : i32, i32, i32
  }
  func.func @transform_4(%arg0: i32) -> (i32, i32, i32) {
    %c0_i32 = arith.constant 0 : i32
    %c0_i32_0 = arith.constant 0 : i32
    %c0_i32_1 = arith.constant 0 : i32
    return %c0_i32, %arg0, %c0_i32_0 : i32, i32, i32
  }
}

</mosaic_0001>

<llo_original>
// kernel: block_forward.5
$region0: #{block_forward.5}
  #allocation0 [shape = 'u32[]', space=smem, size = 0x4, offset = 0x4, fixed_abs, tag = 'smem constant byte address 0x4 - core index']
  #allocation1 [shape = 'u32[144,128]{1,0:T(1,128)}', space=vmem, size = 0x12000, scoped, tag = 'internal scratch']
  #allocation2 [shape = 'bf16[2,16,32]{2,1,0:T(16,128)(2,1)}', space=vmem, size = 0x2000, scoped, tag = 'scratch operand']
  %s0 = inlined_call_operand.vmem [shape: f32[2,32,32], index: 0, kind: input, shape index: {}]
  %s1 = inlined_call_operand.vmem [shape: bf16[32,32], index: 1, kind: input, shape index: {}]
  %s2 = inlined_call_operand.vmem [shape: f32[1,32], index: 2, kind: input, shape index: {}]
  %s3 = inlined_call_operand.vmem [shape: f32[2,32,32], index: 3, kind: input, shape index: {}]
  %s4 = inlined_call_operand.vmem [shape: f32[2,32,32], index: 4, kind: output, shape index: {}]
  %s5 = sld [smem:[#allocation0]]
  $region159: #{block_forward.5} parent=0
    _
  %s7 = ssub.s32 1, %s5
  %s8 = scalar_select 0, %s7, %s5
  $region1: #{block_forward.5} parent=0
    #allocation3 [shape = 'u8[32768]{0}', space=vmem, size = 0x8000, scoped, tag = 'input window, operand 0']
    #allocation4 [shape = 'u8[32768]{0}', space=vmem, size = 0x8000, scoped, tag = 'input window, operand 3']
    #allocation5 [shape = 'u8[32768]{0}', space=vmem, size = 0x8000, scoped, tag = 'output window, operand 0']
    loop: start=0, step=1, limit=4
    $region2: #{block_forward.5} parent=1 // loop_pre_header
      _
    $region3: #{block_forward.5} parent=1 // loop_header
      %s10 = sphi 0, %s14
      %p11 = scmp.ge.s32.totalorder %s10, 4
      %s20 = sphi 0, %s22
      %s23 = sphi 0, %s20
      %s24 = sphi 0, %s23
      %s40 = sphi 0, %s24
      %s44 = sphi 0, %s44
      %s46 = sphi 0, %s44
      %s47 = sphi 0, %s46
      %s61 = sphi 0, %s47
      %s65 = sphi 0, %s65
      %s67 = sphi 0, %s65
      %s68 = sphi 0, %s67
      %s82 = sphi 0, %s68
      %s88 = sphi 0, %s90
      %s91 = sphi 0, %s88
      %s92 = sphi 0, %s91
      %s108 = sphi 0, %s92
      %s114 = sphi 0, %s116
      %s117 = sphi 0, %s114
      %s118 = sphi 0, %s117
      %s134 = sphi 0, %s118
    $region4: #{block_forward.5} parent=1 // loop_header_branch
      %13 = sbr.rel (%p11) target = $region8
    $region5: #{block_forward.5} parent=1 // loop_body
      %s15 = ssub.s32 %s10, 1
      %s16 = ssub.s32 %s10, 2
      %s17 = sadd.s32 %s10, 1
      %s18 = ssub.s32 %s10, %s17
      %p19 = scmp.eq.s32.totalorder %s18, 0
      %s21 = sadd.s32 %s20, 1
      %s22 = scalar_select %p19, %s20, %s21
      %p25 = pneg %p19
      %p26 = scmp.eq.s32.totalorder %s10, 1
      %p27 = por %p25, %p26
      %p28 = scmp.ne.s32.totalorder %s20, %s23
      %p29 = scmp.eq.s32.totalorder %s10, 0
      %p30 = por %p28, %p29
      %p31 = scmp.ne.s32.totalorder %s20, %s23
      %p32 = scmp.eq.s32.totalorder %s15, 1
      %p33 = por %p31, %p32
      %p34 = scmp.ne.s32.totalorder %s23, %s24
      %p35 = scmp.eq.s32.totalorder %s15, 0
      %p36 = por %p34, %p35
      %p37 = scmp.ne.s32.totalorder %s23, %s24
      %p38 = scmp.eq.s32.totalorder %s16, 1
      %p39 = por %p37, %p38
      %p41 = scmp.ne.s32.totalorder %s24, %s40
      %p42 = scmp.eq.s32.totalorder %s16, 0
      %p43 = por %p41, %p42
      %s45 = sadd.s32 %s44, 1
      %p48 = scmp.eq.s32.totalorder %s10, 1
      %p49 = scmp.ne.s32.totalorder %s44, %s46
      %p50 = scmp.eq.s32.totalorder %s10, 0
      %p51 = por %p49, %p50
      %p52 = scmp.ne.s32.totalorder %s44, %s46
      %p53 = scmp.eq.s32.totalorder %s15, 1
      %p54 = por %p52, %p53
      %p55 = scmp.ne.s32.totalorder %s46, %s47
      %p56 = scmp.eq.s32.totalorder %s15, 0
      %p57 = por %p55, %p56
      %p58 = scmp.ne.s32.totalorder %s46, %s47
      %p59 = scmp.eq.s32.totalorder %s16, 1
      %p60 = por %p58, %p59
      %p62 = scmp.ne.s32.totalorder %s47, %s61
      %p63 = scmp.eq.s32.totalorder %s16, 0
      %p64 = por %p62, %p63
      %s66 = sadd.s32 %s65, 1
      %p69 = scmp.eq.s32.totalorder %s10, 1
      %p70 = scmp.ne.s32.totalorder %s65, %s67
      %p71 = scmp.eq.s32.totalorder %s10, 0
      %p72 = por %p70, %p71
      %p73 = scmp.ne.s32.totalorder %s65, %s67
      %p74 = scmp.eq.s32.totalorder %s15, 1
      %p75 = por %p73, %p74
      %p76 = scmp.ne.s32.totalorder %s67, %s68
      %p77 = scmp.eq.s32.totalorder %s15, 0
      %p78 = por %p76, %p77
      %p79 = scmp.ne.s32.totalorder %s67, %s68
      %p80 = scmp.eq.s32.totalorder %s16, 1
      %p81 = por %p79, %p80
      %p83 = scmp.ne.s32.totalorder %s68, %s82
      %p84 = scmp.eq.s32.totalorder %s16, 0
      %p85 = por %p83, %p84
      %s86 = ssub.s32 %s10, %s17
      %p87 = scmp.eq.s32.totalorder %s86, 0
      %s89 = sadd.s32 %s88, 1
      %s90 = scalar_select %p87, %s88, %s89
      %p93 = pneg %p87
      %p94 = scmp.eq.s32.totalorder %s10, 1
      %p95 = por %p93, %p94
      %p96 = scmp.ne.s32.totalorder %s88, %s91
      %p97 = scmp.eq.s32.totalorder %s10, 0
      %p98 = por %p96, %p97
      %p99 = scmp.ne.s32.totalorder %s88, %s91
      %p100 = scmp.eq.s32.totalorder %s15, 1
      %p101 = por %p99, %p100
      %p102 = scmp.ne.s32.totalorder %s91, %s92
      %p103 = scmp.eq.s32.totalorder %s15, 0
      %p104 = por %p102, %p103
      %p105 = scmp.ne.s32.totalorder %s91, %s92
      %p106 = scmp.eq.s32.totalorder %s16, 1
      %p107 = por %p105, %p106
      %p109 = scmp.ne.s32.totalorder %s92, %s108
      %p110 = scmp.eq.s32.totalorder %s16, 0
      %p111 = por %p109, %p110
      %s112 = ssub.s32 %s10, %s17
      %p113 = scmp.eq.s32.totalorder %s112, 0
      %s115 = sadd.s32 %s114, 1
      %s116 = scalar_select %p113, %s114, %s115
      %p119 = pneg %p113
      %p120 = scmp.eq.s32.totalorder %s10, 1
      %p121 = por %p119, %p120
      %p122 = scmp.ne.s32.totalorder %s114, %s117
      %p123 = scmp.eq.s32.totalorder %s10, 0
      %p124 = por %p122, %p123
      %p125 = scmp.ne.s32.totalorder %s114, %s117
      %p126 = scmp.eq.s32.totalorder %s15, 1
      %p127 = por %p125, %p126
      %p128 = scmp.ne.s32.totalorder %s117, %s118
      %p129 = scmp.eq.s32.totalorder %s15, 0
      %p130 = por %p128, %p129
      %p131 = scmp.ne.s32.totalorder %s117, %s118
      %p132 = scmp.eq.s32.totalorder %s16, 1
      %p133 = por %p131, %p132
      %p135 = scmp.ne.s32.totalorder %s118, %s134
      %p136 = scmp.eq.s32.totalorder %s16, 0
      %p137 = por %p135, %p136
      %p138 = scmp.le.s32.totalorder 1, %s10
      %p139 = scmp.lt.s32.totalorder %s10, 3
      %p140 = pnand %p138, %p139
      %p141 = pneg %p140
      // Predicated region
      $region9: #{block_forward.5} parent=5 // pred_check
        _
      $region10: #{block_forward.5} parent=5 // pred_check_branch
        %143 = sbr.rel (%p140) target = $region12
      $region11: #{block_forward.5} parent=5 // pred_region
        %s144 = ssub.s32 %s10, 1
        // Predicated region
        $region13: #{block_forward.5} parent=11 // pred_check
          %p145 = pneg %p57
        $region14: #{block_forward.5} parent=11 // pred_check_branch
          %147 = sbr.rel (%p145) target = $region16
        $region15: #{block_forward.5} parent=11 // pred_region
          _
        $region16: #{block_forward.5} parent=11 // pred_fallthru
          _
        // Predicated region
        $region17: #{block_forward.5} parent=11 // pred_check
          %p148 = pneg %p78
        $region18: #{block_forward.5} parent=11 // pred_check_branch
          %150 = sbr.rel (%p148) target = $region20
        $region19: #{block_forward.5} parent=11 // pred_region
          _
        $region20: #{block_forward.5} parent=11 // pred_fallthru
          _
      $region12: #{block_forward.5} parent=5 // pred_fallthru
        _
      %p151 = scmp.lt.s32.totalorder %s10, 2
      // Predicated region
      $region21: #{block_forward.5} parent=5 // pred_check
        %p152 = pneg %p151
      $region22: #{block_forward.5} parent=5 // pred_check_branch
        %154 = sbr.rel (%p152) target = $region24
      $region23: #{block_forward.5} parent=5 // pred_region
        // Predicated region
        $region25: #{block_forward.5} parent=23 // pred_check
          %p155 = pneg %p30
        $region26: #{block_forward.5} parent=23 // pred_check_branch
          %157 = sbr.rel (%p155) target = $region28
        $region27: #{block_forward.5} parent=23 // pred_region
          %s158 = sand.u32 %s20, 1
          %s159 = sand.u32 %s20, 1
          %s160 = smul.addr %s159, 32
          %s161 = scalar_lea.vmem [#allocation3], %s160
          %s162 = smul.u32 2, %s10
          %s163 = smul.addr %s162, 8
          %s164 = scalar_lea.vmem %s0, %s163
          // Predicated region
          $region29: #{block_forward.5} parent=27 // pred_check
            _
          $region30: #{block_forward.5} parent=27 // pred_check_branch
            %166 = sbr.rel (0) target = $region32
          $region31: #{block_forward.5} parent=27 // pred_region
            // Predicated region
            $region33: #{block_forward.5} parent=31 // pred_check
              _
            $region34: #{block_forward.5} parent=31 // pred_check_branch
              %168 = sbr.rel (0) target = $region36
            $region35: #{block_forward.5} parent=31 // pred_region
              // Predicated region
              $region48: #{block_forward.5} parent=35 // pred_check
                _
              $region49: #{block_forward.5} parent=35 // pred_check_branch
                %189 = sbr.rel (0) target = $region51
              $region50: #{block_forward.5} parent=35 // pred_region
                loop: start=0, step=1, limit=1
                $region52: #{block_forward.5} parent=50 // loop_pre_header
                  _
                $region53: #{block_forward.5} parent=50 // loop_header
                  %s191 = sphi 0, %s195
                  %p192 = scmp.ge.s32.totalorder %s191, 1
                  %s196 = sphi %s164, %s164
                  %s197 = sphi %s161, %s161
                $region54: #{block_forward.5} parent=50 // loop_header_branch
                  %194 = sbr.rel (%p192) target = $region58
                $region55: #{block_forward.5} parent=50 // loop_body
                  %v198 = vld [vmem:[%s196] sm:$0xff]
                  %199 = vst [vmem:[%s197] sm:$0xff] %v198
                  %v200 = vld [vmem:[%s196 + $0x8] sm:$0xff]
                  %201 = vst [vmem:[%s197 + $0x8] sm:$0xff] %v200
                  %v202 = vld [vmem:[%s196 + $0x20] sm:$0xff]
                  %203 = vst [vmem:[%s197 + $0x10] sm:$0xff] %v202
                  %v204 = vld [vmem:[%s196 + $0x28] sm:$0xff]
                  %205 = vst [vmem:[%s197 + $0x18] sm:$0xff] %v204
                $region56: #{block_forward.5} parent=50 // loop_footer
                  %s195 = sadd.s32 1, %s191
                $region57: #{block_forward.5} parent=50 // loop_footer_branch
                  %190 = sbr.rel target = $region53
                $region58: #{block_forward.5} parent=50 // loop_exit
                  _
              $region51: #{block_forward.5} parent=35 // pred_fallthru
                _
              // Predicated region
              $region59: #{block_forward.5} parent=35 // pred_check
                _
              $region60: #{block_forward.5} parent=35 // pred_check_branch
                %207 = sbr.rel target = $region62
              $region61: #{block_forward.5} parent=35 // pred_region
                _
              $region62: #{block_forward.5} parent=35 // pred_fallthru
                _
            $region36: #{block_forward.5} parent=31 // pred_fallthru
              _
            // Predicated region
            $region37: #{block_forward.5} parent=31 // pred_check
              _
            $region38: #{block_forward.5} parent=31 // pred_check_branch
              %170 = sbr.rel target = $region40
            $region39: #{block_forward.5} parent=31 // pred_region
              loop: start=0, step=1, limit=1
              $region41: #{block_forward.5} parent=39 // loop_pre_header
                _
              $region42: #{block_forward.5} parent=39 // loop_header
                %s173 = sphi 0, %s177
                %p174 = scmp.ge.s32.totalorder %s173, 1
                %s178 = sphi %s164, %s164
                %s179 = sphi %s161, %s161
              $region43: #{block_forward.5} parent=39 // loop_header_branch
                %176 = sbr.rel (%p174) target = $region47
              $region44: #{block_forward.5} parent=39 // loop_body
                %v180 = vld [vmem:[%s178] sm:$0xff]
                %181 = vst [vmem:[%s179] sm:$0xff] %v180
                %v182 = vld [vmem:[%s178 + $0x8] sm:$0xff]
                %183 = vst [vmem:[%s179 + $0x8] sm:$0xff] %v182
                %v184 = vld [vmem:[%s178 + $0x20] sm:$0xff]
                %185 = vst [vmem:[%s179 + $0x10] sm:$0xff] %v184
                %v186 = vld [vmem:[%s178 + $0x28] sm:$0xff]
                %187 = vst [vmem:[%s179 + $0x18] sm:$0xff] %v186
              $region45: #{block_forward.5} parent=39 // loop_footer
                %s177 = sadd.s32 1, %s173
              $region46: #{block_forward.5} parent=39 // loop_footer_branch
                %172 = sbr.rel target = $region42
              $region47: #{block_forward.5} parent=39 // loop_exit
                _
            $region40: #{block_forward.5} parent=31 // pred_fallthru
              _
          $region32: #{block_forward.5} parent=27 // pred_fallthru
            _
          %208 = vnop
        $region28: #{block_forward.5} parent=23 // pred_fallthru
          _
        // Predicated region
        $region63: #{block_forward.5} parent=23 // pred_check
          %p209 = pneg %p98
        $region64: #{block_forward.5} parent=23 // pred_check_branch
          %211 = sbr.rel (%p209) target = $region66
        $region65: #{block_forward.5} parent=23 // pred_region
          %s212 = sand.u32 %s88, 1
          %s213 = sand.u32 %s88, 1
          %s214 = smul.addr %s213, 32
          %s215 = scalar_lea.vmem [#allocation4], %s214
          %s216 = smul.u32 2, %s10
          %s217 = smul.addr %s216, 8
          %s218 = scalar_lea.vmem %s3, %s217
          // Predicated region
          $region67: #{block_forward.5} parent=65 // pred_check
            _
          $region68: #{block_forward.5} parent=65 // pred_check_branch
            %220 = sbr.rel (0) target = $region70
          $region69: #{block_forward.5} parent=65 // pred_region
            // Predicated region
            $region71: #{block_forward.5} parent=69 // pred_check
              _
            $region72: #{block_forward.5} parent=69 // pred_check_branch
              %222 = sbr.rel (0) target = $region74
            $region73: #{block_forward.5} parent=69 // pred_region
              // Predicated region
              $region86: #{block_forward.5} parent=73 // pred_check
                _
              $region87: #{block_forward.5} parent=73 // pred_check_branch
                %243 = sbr.rel (0) target = $region89
              $region88: #{block_forward.5} parent=73 // pred_region
                loop: start=0, step=1, limit=1
                $region90: #{block_forward.5} parent=88 // loop_pre_header
                  _
                $region91: #{block_forward.5} parent=88 // loop_header
                  %s245 = sphi 0, %s249
                  %p246 = scmp.ge.s32.totalorder %s245, 1
                  %s250 = sphi %s218, %s218
                  %s251 = sphi %s215, %s215
                $region92: #{block_forward.5} parent=88 // loop_header_branch
                  %248 = sbr.rel (%p246) target = $region96
                $region93: #{block_forward.5} parent=88 // loop_body
                  %v252 = vld [vmem:[%s250] sm:$0xff]
                  %253 = vst [vmem:[%s251] sm:$0xff] %v252
                  %v254 = vld [vmem:[%s250 + $0x8] sm:$0xff]
                  %255 = vst [vmem:[%s251 + $0x8] sm:$0xff] %v254
                  %v256 = vld [vmem:[%s250 + $0x20] sm:$0xff]
                  %257 = vst [vmem:[%s251 + $0x10] sm:$0xff] %v256
                  %v258 = vld [vmem:[%s250 + $0x28] sm:$0xff]
                  %259 = vst [vmem:[%s251 + $0x18] sm:$0xff] %v258
                $region94: #{block_forward.5} parent=88 // loop_footer
                  %s249 = sadd.s32 1, %s245
                $region95: #{block_forward.5} parent=88 // loop_footer_branch
                  %244 = sbr.rel target = $region91
                $region96: #{block_forward.5} parent=88 // loop_exit
                  _
              $region89: #{block_forward.5} parent=73 // pred_fallthru
                _
              // Predicated region
              $region97: #{block_forward.5} parent=73 // pred_check
                _
              $region98: #{block_forward.5} parent=73 // pred_check_branch
                %261 = sbr.rel target = $region100
              $region99: #{block_forward.5} parent=73 // pred_region
                _
              $region100: #{block_forward.5} parent=73 // pred_fallthru
                _
            $region74: #{block_forward.5} parent=69 // pred_fallthru
              _
            // Predicated region
            $region75: #{block_forward.5} parent=69 // pred_check
              _
            $region76: #{block_forward.5} parent=69 // pred_check_branch
              %224 = sbr.rel target = $region78
            $region77: #{block_forward.5} parent=69 // pred_region
              loop: start=0, step=1, limit=1
              $region79: #{block_forward.5} parent=77 // loop_pre_header
                _
              $region80: #{block_forward.5} parent=77 // loop_header
                %s227 = sphi 0, %s231
                %p228 = scmp.ge.s32.totalorder %s227, 1
                %s232 = sphi %s218, %s218
                %s233 = sphi %s215, %s215
              $region81: #{block_forward.5} parent=77 // loop_header_branch
                %230 = sbr.rel (%p228) target = $region85
              $region82: #{block_forward.5} parent=77 // loop_body
                %v234 = vld [vmem:[%s232] sm:$0xff]
                %235 = vst [vmem:[%s233] sm:$0xff] %v234
                %v236 = vld [vmem:[%s232 + $0x8] sm:$0xff]
                %237 = vst [vmem:[%s233 + $0x8] sm:$0xff] %v236
                %v238 = vld [vmem:[%s232 + $0x20] sm:$0xff]
                %239 = vst [vmem:[%s233 + $0x10] sm:$0xff] %v238
                %v240 = vld [vmem:[%s232 + $0x28] sm:$0xff]
                %241 = vst [vmem:[%s233 + $0x18] sm:$0xff] %v240
              $region83: #{block_forward.5} parent=77 // loop_footer
                %s231 = sadd.s32 1, %s227
              $region84: #{block_forward.5} parent=77 // loop_footer_branch
                %226 = sbr.rel target = $region80
              $region85: #{block_forward.5} parent=77 // loop_exit
                _
            $region78: #{block_forward.5} parent=69 // pred_fallthru
              _
          $region70: #{block_forward.5} parent=65 // pred_fallthru
            _
          %262 = vnop
        $region66: #{block_forward.5} parent=23 // pred_fallthru
          _
      $region24: #{block_forward.5} parent=5 // pred_fallthru
        _
      %p263 = scmp.le.s32.totalorder 1, %s10
      %p264 = scmp.lt.s32.totalorder %s10, 3
      %p265 = pnand %p263, %p264
      %p266 = pneg %p265
      // Predicated region
      $region101: #{block_forward.5} parent=5 // pred_check
        _
      $region102: #{block_forward.5} parent=5 // pred_check_branch
        %268 = sbr.rel (%p265) target = $region104
      $region103: #{block_forward.5} parent=5 // pred_region
        %s269 = ssub.s32 %s10, 1
        %s270 = sand.u32 %s23, 1
        %s271 = sand.u32 %s23, 1
        %s272 = smul.addr %s271, 32
        %s273 = scalar_lea.vmem [#allocation3], %s272
        // Predicated region
        $region105: #{block_forward.5} parent=103 // pred_check
          %p274 = pneg %p36
        $region106: #{block_forward.5} parent=103 // pred_check_branch
          %276 = sbr.rel (%p274) target = $region108
        $region107: #{block_forward.5} parent=103 // pred_region
          _
        $region108: #{block_forward.5} parent=103 // pred_fallthru
          _
        %s277 = sand.u32 %s91, 1
        %s278 = sand.u32 %s91, 1
        %s279 = smul.addr %s278, 32
        %s280 = scalar_lea.vmem [#allocation4], %s279
        // Predicated region
        $region109: #{block_forward.5} parent=103 // pred_check
          %p281 = pneg %p104
        $region110: #{block_forward.5} parent=103 // pred_check_branch
          %283 = sbr.rel (%p281) target = $region112
        $region111: #{block_forward.5} parent=103 // pred_region
          _
        $region112: #{block_forward.5} parent=103 // pred_fallthru
          _
        %s284 = sand.u32 %s23, 1
        %s285 = sand.u32 %s23, 1
        %s286 = smul.addr %s285, 32
        %s287 = scalar_lea.vmem [#allocation3], %s286
        %p288 = pneg %p36
        %p289 = pneg %p33
        %p290 = pneg %p57
        %p291 = pneg %p54
        %p292 = pneg %p78
        %p293 = pneg %p75
        %s294 = sand.u32 %s91, 1
        %s295 = sand.u32 %s91, 1
        %s296 = smul.addr %s295, 32
        %s297 = scalar_lea.vmem [#allocation4], %s296
        %p298 = pneg %p104
        %p299 = pneg %p101
        %p300 = pneg %p130
        %p301 = pneg %p127
        %s302 = sand.u32 %s117, 1
        %s303 = sand.u32 %s117, 1
        %s304 = smul.addr %s303, 32
        %s305 = scalar_lea.vmem [#allocation5], %s304
        %s306 = smul.u32 2, %s15
        %s307 = smul.u32 2, %s15
        %s308 = smul.u32 2, %s15
        %v310 = vld [vmem:[%s273] sm:$0xff]
        %v311 = vld [vmem:[%s273 + $0x8] sm:$0xff]
        %v312 = vmul.f32 %v310, 0.5
        %v313 = vmul.f32 %v311, 0.5
        %v314 = vadd.f32 %v312, 0.0
        %v315 = vadd.f32 %v313, 0.0
        %vm316 = vcmp.ge.f32.partialorder %v314, 0.5
        %vm317 = vcmp.ge.f32.partialorder %v315, 0.5
        %v318 = vsel %vm316, 1, 0
        %v319 = vsel %vm317, 1, 0
        %v320 = vcvt.s32.f32 %v318
        %v321 = vcvt.s32.f32 %v319
        %v322 = vsub.f32 1.0, %v320
        %v323 = vsub.f32 1.0, %v321
        %v324 = vmul.f32 %v314, %v322
        %v325 = vmul.f32 %v315, %v323
        %v326 = vpack.c.bf16 %v321, %v320
        %vm327 = vcmask 261120
        %328 = vst.msk [vmem:[#allocation2] sm:$0xff] %vm327, %v326
        %s329 = scalar_lea.vmem %s273, 16 [#allocation3]
        %v330 = vld [vmem:[%s329] sm:$0xff]
        %v331 = vld [vmem:[%s329 + $0x8] sm:$0xff]
        %v332 = vsub.f32 %v330, %v324
        %v333 = vsub.f32 %v331, %v325
        %v334 = vmul.f32 %v332, 0.5
        %v335 = vmul.f32 %v333, 0.5
        %v336 = vadd.f32 %v324, %v334
        %v337 = vadd.f32 %v325, %v335
        %vm338 = vcmp.ge.f32.partialorder %v336, 0.5
        %vm339 = vcmp.ge.f32.partialorder %v337, 0.5
        %v340 = vsel %vm338, 1, 0
        %v341 = vsel %vm339, 1, 0
        %v342 = vcvt.s32.f32 %v340
        %v343 = vcvt.s32.f32 %v341
        %v344 = vpack.c.bf16 %v343, %v342
        %s345 = scalar_lea.vmem [#allocation2], 8
        %346 = vst.msk [vmem:[%s345] sm:$0xff] %vm327, %v344
        %v347 = vld [vmem:[#allocation2] sm:$0xff]
        %v348 = vld [vmem:[#allocation2 + $0x8] sm:$0xff]
        %v349 = vld [vmem:[%s1] sm:$0xf]
        %v350 = vld [vmem:[%s1 + $0x4] sm:$0xf]
        %v351 = vld [vmem:[%s1 + $0x8] sm:$0xf]
        %v352 = vld [vmem:[%s1 + $0xc] sm:$0xf]
        %v353 = vld [vmem:[%s2] sm:$0x1]
        %v355 = vlaneseq
        %v356 = vshrl.u32 %v355, 7
        %v357 = vsub.s32 0, %v356
        %v358 = vrot.slane %v353, %v357
        %v364 = vunpack.c.l.b16 %v349
        %v365 = vunpack.c.l.b16 %v350
        %v366 = vunpack.c.l.b16 %v351
        %v367 = vunpack.c.l.b16 %v352
        %v368 = vpack.c.b16 %v365, %v364
        %v369 = vpack.c.b16 %v367, %v366
        %v373 = vsel %vm327, %v347, 0
        %v376 = vsel %vm327, %v348, 0
        %378 = vmatprep.subr.bf16.mxu0 0
        %379 = vmatpush1.bf16.msra.mxu0 %v368
        %380 = vmatprep.subr.bf16.mxu0 0
        %381 = vmatpush1.bf16.msra.mxu0 %v369
        %382 = vmatprep.subr.bf16.mxu0 0
        %383 = vmatpush1.bf16.msra.mxu0 0
        %384 = vmatprep.subr.bf16.mxu0 0
        %385 = vmatpush1.bf16.msra.mxu0 0
        %386 = vmatprep.subr.bf16.mxu0 0
        %387 = vmatpush1.bf16.msra.mxu0 0
        %388 = vmatprep.subr.bf16.mxu0 0
        %389 = vmatpush1.bf16.msra.mxu0 0
        %390 = vmatprep.subr.bf16.mxu0 0
        %391 = vmatpush1.bf16.msra.mxu0 0
        %392 = vmatprep.subr.bf16.mxu0 0
        %393 = vmatpush1.bf16.msra.mxu0 0
        %394 = vmatprep.subr.bf16.mxu0 0
        %395 = vmatpush1.bf16.msra.mxu0 0
        %396 = vmatprep.subr.bf16.mxu0 0
        %397 = vmatpush1.bf16.msra.mxu0 0
        %398 = vmatprep.subr.bf16.mxu0 0
        %399 = vmatpush1.bf16.msra.mxu0 0
        %400 = vmatprep.subr.bf16.mxu0 0
        %401 = vmatpush1.bf16.msra.mxu0 0
        %402 = vmatprep.subr.bf16.mxu0 0
        %403 = vmatpush1.bf16.msra.mxu0 0
        %404 = vmatprep.subr.bf16.mxu0 0
        %405 = vmatpush1.bf16.msra.mxu0 0
        %406 = vmatprep.subr.bf16.mxu0 0
        %407 = vmatpush1.bf16.msra.mxu0 0
        %408 = vmatprep.subr.bf16.mxu0 0
        %409 = vmatpush1.bf16.msra.mxu0 0
        %410 = vmatprep.mubr.bf16.mxu0 0
        %411 = vmatmul.mubr.bf16.gmra.mrb[0].mxu0 %v373
        %v412 = vpop.f32.mrb[0].mxu0
        %v413 = vadd.f32 %v358, %v412
        %v414 = vpop.f32.mrb[0].mxu0
        %v415 = vpop.f32.mrb[0].mxu0
        %v416 = vadd.f32 %v358, %v415
        %v417 = vpop.f32.mrb[0].mxu0
        %418 = vmatprep.mubr.bf16.mxu0 0
        %419 = vmatmul.mubr.bf16.gmra.mrb[0].mxu0 %v376
        %v420 = vpop.f32.mrb[0].mxu0
        %v421 = vadd.f32 %v358, %v420
        %v422 = vpop.f32.mrb[0].mxu0
        %v423 = vpop.f32.mrb[0].mxu0
        %v424 = vadd.f32 %v358, %v423
        %v425 = vpop.f32.mrb[0].mxu0
        %426 = vdwg.mxu0
        %v427 = vmul.f32 %v413, 0.5
        %v428 = vmul.f32 %v416, 0.5
        %v429 = vadd.f32 %v427, 0.0
        %v430 = vadd.f32 %v428, 0.0
        %vm431 = vcmp.ge.f32.partialorder %v429, 1.0
        %vm432 = vcmp.ge.f32.partialorder %v430, 1.0
        %v433 = vsel %vm431, 1, 0
        %v434 = vsel %vm432, 1, 0
        %v435 = vcvt.s32.f32 %v433
        %v436 = vcvt.s32.f32 %v434
        %v437 = vsub.f32 1.0, %v435
        %v438 = vsub.f32 1.0, %v436
        %v439 = vmul.f32 %v429, %v437
        %v440 = vmul.f32 %v430, %v438
        %v441 = vld [vmem:[%s280] sm:$0xff]
        %v442 = vld [vmem:[%s280 + $0x8] sm:$0xff]
        %v443 = vadd.f32 %v435, %v441
        %v444 = vadd.f32 %v436, %v442
        %445 = vst.msk [vmem:[%s305] sm:$0xff] %vm327, %v443
        %446 = vst.msk [vmem:[%s305 + $0x8] sm:$0xff] %vm327, %v444
        %v447 = vsub.f32 %v421, %v439
        %v448 = vsub.f32 %v424, %v440
        %v449 = vmul.f32 %v447, 0.5
        %v450 = vmul.f32 %v448, 0.5
        %v451 = vadd.f32 %v439, %v449
        %v452 = vadd.f32 %v440, %v450
        %vm453 = vcmp.ge.f32.partialorder %v451, 1.0
        %vm454 = vcmp.ge.f32.partialorder %v452, 1.0
        %v455 = vsel %vm453, 1, 0
        %v456 = vsel %vm454, 1, 0
        %v457 = vcvt.s32.f32 %v455
        %v458 = vcvt.s32.f32 %v456
        %s459 = scalar_lea.vmem %s280, 16 [#allocation4]
        %v460 = vld [vmem:[%s459] sm:$0xff]
        %v461 = vld [vmem:[%s459 + $0x8] sm:$0xff]
        %v462 = vadd.f32 %v457, %v460
        %v463 = vadd.f32 %v458, %v461
        %s464 = scalar_lea.vmem %s305, 16 [#allocation5]
        %465 = vst.msk [vmem:[%s464] sm:$0xff] %vm327, %v462
        %466 = vst.msk [vmem:[%s464 + $0x8] sm:$0xff] %vm327, %v463
        %s467 = sand.u32 %s117, 1
        %s468 = sand.u32 %s117, 1
        %s469 = smul.addr %s468, 32
        %s470 = scalar_lea.vmem [#allocation5], %s469
        // Predicated region
        $region113: #{block_forward.5} parent=103 // pred_check
          %p471 = pneg %p127
        $region114: #{block_forward.5} parent=103 // pred_check_branch
          %473 = sbr.rel (%p471) target = $region116
        $region115: #{block_forward.5} parent=103 // pred_region
          %s474 = smul.u32 2, %s15
          %s475 = smul.addr %s474, 8
          %s476 = scalar_lea.vmem %s4, %s475
          // Predicated region
          $region117: #{block_forward.5} parent=115 // pred_check
            _
          $region118: #{block_forward.5} parent=115 // pred_check_branch
            %478 = sbr.rel (0) target = $region120
          $region119: #{block_forward.5} parent=115 // pred_region
            // Predicated region
            $region121: #{block_forward.5} parent=119 // pred_check
              _
            $region122: #{block_forward.5} parent=119 // pred_check_branch
              %480 = sbr.rel (0) target = $region124
            $region123: #{block_forward.5} parent=119 // pred_region
              // Predicated region
              $region136: #{block_forward.5} parent=123 // pred_check
                _
              $region137: #{block_forward.5} parent=123 // pred_check_branch
                %501 = sbr.rel (0) target = $region139
              $region138: #{block_forward.5} parent=123 // pred_region
                loop: start=0, step=1, limit=1
                $region140: #{block_forward.5} parent=138 // loop_pre_header
                  _
                $region141: #{block_forward.5} parent=138 // loop_header
                  %s503 = sphi 0, %s507
                  %p504 = scmp.ge.s32.totalorder %s503, 1
                  %s508 = sphi %s470, %s470
                  %s509 = sphi %s476, %s476
                $region142: #{block_forward.5} parent=138 // loop_header_branch
                  %506 = sbr.rel (%p504) target = $region146
                $region143: #{block_forward.5} parent=138 // loop_body
                  %v510 = vld [vmem:[%s508] sm:$0xff]
                  %511 = vst [vmem:[%s509] sm:$0xff] %v510
                  %v512 = vld [vmem:[%s508 + $0x8] sm:$0xff]
                  %513 = vst [vmem:[%s509 + $0x8] sm:$0xff] %v512
                  %v514 = vld [vmem:[%s508 + $0x10] sm:$0xff]
                  %515 = vst [vmem:[%s509 + $0x20] sm:$0xff] %v514
                  %v516 = vld [vmem:[%s508 + $0x18] sm:$0xff]
                  %517 = vst [vmem:[%s509 + $0x28] sm:$0xff] %v516
                $region144: #{block_forward.5} parent=138 // loop_footer
                  %s507 = sadd.s32 1, %s503
                $region145: #{block_forward.5} parent=138 // loop_footer_branch
                  %502 = sbr.rel target = $region141
                $region146: #{block_forward.5} parent=138 // loop_exit
                  _
              $region139: #{block_forward.5} parent=123 // pred_fallthru
                _
              // Predicated region
              $region147: #{block_forward.5} parent=123 // pred_check
                _
              $region148: #{block_forward.5} parent=123 // pred_check_branch
                %519 = sbr.rel target = $region150
              $region149: #{block_forward.5} parent=123 // pred_region
                _
              $region150: #{block_forward.5} parent=123 // pred_fallthru
                _
            $region124: #{block_forward.5} parent=119 // pred_fallthru
              _
            // Predicated region
            $region125: #{block_forward.5} parent=119 // pred_check
              _
            $region126: #{block_forward.5} parent=119 // pred_check_branch
              %482 = sbr.rel target = $region128
            $region127: #{block_forward.5} parent=119 // pred_region
              loop: start=0, step=1, limit=1
              $region129: #{block_forward.5} parent=127 // loop_pre_header
                _
              $region130: #{block_forward.5} parent=127 // loop_header
                %s485 = sphi 0, %s489
                %p486 = scmp.ge.s32.totalorder %s485, 1
                %s490 = sphi %s470, %s470
                %s491 = sphi %s476, %s476
              $region131: #{block_forward.5} parent=127 // loop_header_branch
                %488 = sbr.rel (%p486) target = $region135
              $region132: #{block_forward.5} parent=127 // loop_body
                %v492 = vld [vmem:[%s490] sm:$0xff]
                %493 = vst [vmem:[%s491] sm:$0xff] %v492
                %v494 = vld [vmem:[%s490 + $0x8] sm:$0xff]
                %495 = vst [vmem:[%s491 + $0x8] sm:$0xff] %v494
                %v496 = vld [vmem:[%s490 + $0x10] sm:$0xff]
                %497 = vst [vmem:[%s491 + $0x20] sm:$0xff] %v496
                %v498 = vld [vmem:[%s490 + $0x18] sm:$0xff]
                %499 = vst [vmem:[%s491 + $0x28] sm:$0xff] %v498
              $region133: #{block_forward.5} parent=127 // loop_footer
                %s489 = sadd.s32 1, %s485
              $region134: #{block_forward.5} parent=127 // loop_footer_branch
                %484 = sbr.rel target = $region130
              $region135: #{block_forward.5} parent=127 // loop_exit
                _
            $region128: #{block_forward.5} parent=119 // pred_fallthru
              _
          $region120: #{block_forward.5} parent=115 // pred_fallthru
            _
          %520 = vnop
        $region116: #{block_forward.5} parent=103 // pred_fallthru
          _
      $region104: #{block_forward.5} parent=5 // pred_fallthru
        _
      %p521 = scmp.le.s32.totalorder 2, %s10
      // Predicated region
      $region151: #{block_forward.5} parent=5 // pred_check
        %p522 = pneg %p521
      $region152: #{block_forward.5} parent=5 // pred_check_branch
        %524 = sbr.rel (%p522) target = $region154
      $region153: #{block_forward.5} parent=5 // pred_region
        %s525 = ssub.s32 %s10, 2
        // Predicated region
        $region155: #{block_forward.5} parent=153 // pred_check
          %p526 = pneg %p133
        $region156: #{block_forward.5} parent=153 // pred_check_branch
          %528 = sbr.rel (%p526) target = $region158
        $region157: #{block_forward.5} parent=153 // pred_region
          %s529 = sand.u32 %s118, 1
          %s530 = sand.u32 %s118, 1
          %s531 = smul.addr %s530, 32
          %s532 = scalar_lea.vmem [#allocation5], %s531
        $region158: #{block_forward.5} parent=153 // pred_fallthru
          _
      $region154: #{block_forward.5} parent=5 // pred_fallthru
        _
    $region6: #{block_forward.5} parent=1 // loop_footer
      %s14 = sadd.s32 1, %s10
    $region7: #{block_forward.5} parent=1 // loop_footer_branch
      %9 = sbr.rel target = $region3
    $region8: #{block_forward.5} parent=1 // loop_exit
      _

// kernel: block_forward.6
$region0: #{block_forward.6}
  #allocation0 [shape = 'u32[]', space=smem, size = 0x4, offset = 0x4, fixed_abs, tag = 'smem constant byte address 0x4 - core index']
  #allocation1 [shape = 'u32[144,128]{1,0:T(1,128)}', space=vmem, size = 0x12000, scoped, tag = 'internal scratch']
  %s0 = inlined_call_operand.vmem [shape: f32[2,32,32], index: 0, kind: input, shape index: {}]
  %s1 = inlined_call_operand.vmem [shape: bf16[32,128], index: 1, kind: input, shape index: {}]
  %s2 = inlined_call_operand.vmem [shape: f32[1,128], index: 2, kind: input, shape index: {}]
  %s3 = inlined_call_operand.vmem [shape: bf16[2,32,128], index: 3, kind: output, shape index: {}]
  %s4 = sld [smem:[#allocation0]]
  $region120: #{block_forward.6} parent=0
    _
  %s6 = ssub.s32 1, %s4
  %s7 = scalar_select 0, %s6, %s4
  $region1: #{block_forward.6} parent=0
    #allocation2 [shape = 'u8[32768]{0}', space=vmem, size = 0x8000, scoped, tag = 'input window, operand 0']
    #allocation3 [shape = 'u8[16384]{0}', space=vmem, size = 0x4000, scoped, tag = 'output window, operand 0']
    loop: start=0, step=1, limit=4
    $region2: #{block_forward.6} parent=1 // loop_pre_header
      _
    $region3: #{block_forward.6} parent=1 // loop_header
      %s9 = sphi 0, %s13
      %p10 = scmp.ge.s32.totalorder %s9, 4
      %s19 = sphi 0, %s21
      %s22 = sphi 0, %s19
      %s23 = sphi 0, %s22
      %s39 = sphi 0, %s23
      %s43 = sphi 0, %s43
      %s45 = sphi 0, %s43
      %s46 = sphi 0, %s45
      %s60 = sphi 0, %s46
      %s64 = sphi 0, %s64
      %s66 = sphi 0, %s64
      %s67 = sphi 0, %s66
      %s81 = sphi 0, %s67
      %s87 = sphi 0, %s89
      %s90 = sphi 0, %s87
      %s91 = sphi 0, %s90
      %s107 = sphi 0, %s91
    $region4: #{block_forward.6} parent=1 // loop_header_branch
      %12 = sbr.rel (%p10) target = $region8
    $region5: #{block_forward.6} parent=1 // loop_body
      %s14 = ssub.s32 %s9, 1
      %s15 = ssub.s32 %s9, 2
      %s16 = sadd.s32 %s9, 1
      %s17 = ssub.s32 %s9, %s16
      %p18 = scmp.eq.s32.totalorder %s17, 0
      %s20 = sadd.s32 %s19, 1
      %s21 = scalar_select %p18, %s19, %s20
      %p24 = pneg %p18
      %p25 = scmp.eq.s32.totalorder %s9, 1
      %p26 = por %p24, %p25
      %p27 = scmp.ne.s32.totalorder %s19, %s22
      %p28 = scmp.eq.s32.totalorder %s9, 0
      %p29 = por %p27, %p28
      %p30 = scmp.ne.s32.totalorder %s19, %s22
      %p31 = scmp.eq.s32.totalorder %s14, 1
      %p32 = por %p30, %p31
      %p33 = scmp.ne.s32.totalorder %s22, %s23
      %p34 = scmp.eq.s32.totalorder %s14, 0
      %p35 = por %p33, %p34
      %p36 = scmp.ne.s32.totalorder %s22, %s23
      %p37 = scmp.eq.s32.totalorder %s15, 1
      %p38 = por %p36, %p37
      %p40 = scmp.ne.s32.totalorder %s23, %s39
      %p41 = scmp.eq.s32.totalorder %s15, 0
      %p42 = por %p40, %p41
      %s44 = sadd.s32 %s43, 1
      %p47 = scmp.eq.s32.totalorder %s9, 1
      %p48 = scmp.ne.s32.totalorder %s43, %s45
      %p49 = scmp.eq.s32.totalorder %s9, 0
      %p50 = por %p48, %p49
      %p51 = scmp.ne.s32.totalorder %s43, %s45
      %p52 = scmp.eq.s32.totalorder %s14, 1
      %p53 = por %p51, %p52
      %p54 = scmp.ne.s32.totalorder %s45, %s46
      %p55 = scmp.eq.s32.totalorder %s14, 0
      %p56 = por %p54, %p55
      %p57 = scmp.ne.s32.totalorder %s45, %s46
      %p58 = scmp.eq.s32.totalorder %s15, 1
      %p59 = por %p57, %p58
      %p61 = scmp.ne.s32.totalorder %s46, %s60
      %p62 = scmp.eq.s32.totalorder %s15, 0
      %p63 = por %p61, %p62
      %s65 = sadd.s32 %s64, 1
      %p68 = scmp.eq.s32.totalorder %s9, 1
      %p69 = scmp.ne.s32.totalorder %s64, %s66
      %p70 = scmp.eq.s32.totalorder %s9, 0
      %p71 = por %p69, %p70
      %p72 = scmp.ne.s32.totalorder %s64, %s66
      %p73 = scmp.eq.s32.totalorder %s14, 1
      %p74 = por %p72, %p73
      %p75 = scmp.ne.s32.totalorder %s66, %s67
      %p76 = scmp.eq.s32.totalorder %s14, 0
      %p77 = por %p75, %p76
      %p78 = scmp.ne.s32.totalorder %s66, %s67
      %p79 = scmp.eq.s32.totalorder %s15, 1
      %p80 = por %p78, %p79
      %p82 = scmp.ne.s32.totalorder %s67, %s81
      %p83 = scmp.eq.s32.totalorder %s15, 0
      %p84 = por %p82, %p83
      %s85 = ssub.s32 %s9, %s16
      %p86 = scmp.eq.s32.totalorder %s85, 0
      %s88 = sadd.s32 %s87, 1
      %s89 = scalar_select %p86, %s87, %s88
      %p92 = pneg %p86
      %p93 = scmp.eq.s32.totalorder %s9, 1
      %p94 = por %p92, %p93
      %p95 = scmp.ne.s32.totalorder %s87, %s90
      %p96 = scmp.eq.s32.totalorder %s9, 0
      %p97 = por %p95, %p96
      %p98 = scmp.ne.s32.totalorder %s87, %s90
      %p99 = scmp.eq.s32.totalorder %s14, 1
      %p100 = por %p98, %p99
      %p101 = scmp.ne.s32.totalorder %s90, %s91
      %p102 = scmp.eq.s32.totalorder %s14, 0
      %p103 = por %p101, %p102
      %p104 = scmp.ne.s32.totalorder %s90, %s91
      %p105 = scmp.eq.s32.totalorder %s15, 1
      %p106 = por %p104, %p105
      %p108 = scmp.ne.s32.totalorder %s91, %s107
      %p109 = scmp.eq.s32.totalorder %s15, 0
      %p110 = por %p108, %p109
      %p111 = scmp.le.s32.totalorder 1, %s9
      %p112 = scmp.lt.s32.totalorder %s9, 3
      %p113 = pnand %p111, %p112
      %p114 = pneg %p113
      // Predicated region
      $region9: #{block_forward.6} parent=5 // pred_check
        _
      $region10: #{block_forward.6} parent=5 // pred_check_branch
        %116 = sbr.rel (%p113) target = $region12
      $region11: #{block_forward.6} parent=5 // pred_region
        %s117 = ssub.s32 %s9, 1
        // Predicated region
        $region13: #{block_forward.6} parent=11 // pred_check
          %p118 = pneg %p56
        $region14: #{block_forward.6} parent=11 // pred_check_branch
          %120 = sbr.rel (%p118) target = $region16
        $region15: #{block_forward.6} parent=11 // pred_region
          _
        $region16: #{block_forward.6} parent=11 // pred_fallthru
          _
        // Predicated region
        $region17: #{block_forward.6} parent=11 // pred_check
          %p121 = pneg %p77
        $region18: #{block_forward.6} parent=11 // pred_check_branch
          %123 = sbr.rel (%p121) target = $region20
        $region19: #{block_forward.6} parent=11 // pred_region
          _
        $region20: #{block_forward.6} parent=11 // pred_fallthru
          _
      $region12: #{block_forward.6} parent=5 // pred_fallthru
        _
      %p124 = scmp.lt.s32.totalorder %s9, 2
      // Predicated region
      $region21: #{block_forward.6} parent=5 // pred_check
        %p125 = pneg %p124
      $region22: #{block_forward.6} parent=5 // pred_check_branch
        %127 = sbr.rel (%p125) target = $region24
      $region23: #{block_forward.6} parent=5 // pred_region
        // Predicated region
        $region25: #{block_forward.6} parent=23 // pred_check
          %p128 = pneg %p29
        $region26: #{block_forward.6} parent=23 // pred_check_branch
          %130 = sbr.rel (%p128) target = $region28
        $region27: #{block_forward.6} parent=23 // pred_region
          %s131 = sand.u32 %s19, 1
          %s132 = sand.u32 %s19, 1
          %s133 = smul.addr %s132, 32
          %s134 = scalar_lea.vmem [#allocation2], %s133
          %s135 = smul.u32 2, %s9
          %s136 = smul.addr %s135, 8
          %s137 = scalar_lea.vmem %s0, %s136
          // Predicated region
          $region29: #{block_forward.6} parent=27 // pred_check
            _
          $region30: #{block_forward.6} parent=27 // pred_check_branch
            %139 = sbr.rel (0) target = $region32
          $region31: #{block_forward.6} parent=27 // pred_region
            // Predicated region
            $region33: #{block_forward.6} parent=31 // pred_check
              _
            $region34: #{block_forward.6} parent=31 // pred_check_branch
              %141 = sbr.rel (0) target = $region36
            $region35: #{block_forward.6} parent=31 // pred_region
              // Predicated region
              $region48: #{block_forward.6} parent=35 // pred_check
                _
              $region49: #{block_forward.6} parent=35 // pred_check_branch
                %162 = sbr.rel (0) target = $region51
              $region50: #{block_forward.6} parent=35 // pred_region
                loop: start=0, step=1, limit=1
                $region52: #{block_forward.6} parent=50 // loop_pre_header
                  _
                $region53: #{block_forward.6} parent=50 // loop_header
                  %s164 = sphi 0, %s168
                  %p165 = scmp.ge.s32.totalorder %s164, 1
                  %s169 = sphi %s137, %s137
                  %s170 = sphi %s134, %s134
                $region54: #{block_forward.6} parent=50 // loop_header_branch
                  %167 = sbr.rel (%p165) target = $region58
                $region55: #{block_forward.6} parent=50 // loop_body
                  %v171 = vld [vmem:[%s169] sm:$0xff]
                  %172 = vst [vmem:[%s170] sm:$0xff] %v171
                  %v173 = vld [vmem:[%s169 + $0x8] sm:$0xff]
                  %174 = vst [vmem:[%s170 + $0x8] sm:$0xff] %v173
                  %v175 = vld [vmem:[%s169 + $0x20] sm:$0xff]
                  %176 = vst [vmem:[%s170 + $0x10] sm:$0xff] %v175
                  %v177 = vld [vmem:[%s169 + $0x28] sm:$0xff]
                  %178 = vst [vmem:[%s170 + $0x18] sm:$0xff] %v177
                $region56: #{block_forward.6} parent=50 // loop_footer
                  %s168 = sadd.s32 1, %s164
                $region57: #{block_forward.6} parent=50 // loop_footer_branch
                  %163 = sbr.rel target = $region53
                $region58: #{block_forward.6} parent=50 // loop_exit
                  _
              $region51: #{block_forward.6} parent=35 // pred_fallthru
                _
              // Predicated region
              $region59: #{block_forward.6} parent=35 // pred_check
                _
              $region60: #{block_forward.6} parent=35 // pred_check_branch
                %180 = sbr.rel target = $region62
              $region61: #{block_forward.6} parent=35 // pred_region
                _
              $region62: #{block_forward.6} parent=35 // pred_fallthru
                _
            $region36: #{block_forward.6} parent=31 // pred_fallthru
              _
            // Predicated region
            $region37: #{block_forward.6} parent=31 // pred_check
              _
            $region38: #{block_forward.6} parent=31 // pred_check_branch
              %143 = sbr.rel target = $region40
            $region39: #{block_forward.6} parent=31 // pred_region
              loop: start=0, step=1, limit=1
              $region41: #{block_forward.6} parent=39 // loop_pre_header
                _
              $region42: #{block_forward.6} parent=39 // loop_header
                %s146 = sphi 0, %s150
                %p147 = scmp.ge.s32.totalorder %s146, 1
                %s151 = sphi %s137, %s137
                %s152 = sphi %s134, %s134
              $region43: #{block_forward.6} parent=39 // loop_header_branch
                %149 = sbr.rel (%p147) target = $region47
              $region44: #{block_forward.6} parent=39 // loop_body
                %v153 = vld [vmem:[%s151] sm:$0xff]
                %154 = vst [vmem:[%s152] sm:$0xff] %v153
                %v155 = vld [vmem:[%s151 + $0x8] sm:$0xff]
                %156 = vst [vmem:[%s152 + $0x8] sm:$0xff] %v155
                %v157 = vld [vmem:[%s151 + $0x20] sm:$0xff]
                %158 = vst [vmem:[%s152 + $0x10] sm:$0xff] %v157
                %v159 = vld [vmem:[%s151 + $0x28] sm:$0xff]
                %160 = vst [vmem:[%s152 + $0x18] sm:$0xff] %v159
              $region45: #{block_forward.6} parent=39 // loop_footer
                %s150 = sadd.s32 1, %s146
              $region46: #{block_forward.6} parent=39 // loop_footer_branch
                %145 = sbr.rel target = $region42
              $region47: #{block_forward.6} parent=39 // loop_exit
                _
            $region40: #{block_forward.6} parent=31 // pred_fallthru
              _
          $region32: #{block_forward.6} parent=27 // pred_fallthru
            _
          %181 = vnop
        $region28: #{block_forward.6} parent=23 // pred_fallthru
          _
      $region24: #{block_forward.6} parent=5 // pred_fallthru
        _
      %p182 = scmp.le.s32.totalorder 1, %s9
      %p183 = scmp.lt.s32.totalorder %s9, 3
      %p184 = pnand %p182, %p183
      %p185 = pneg %p184
      // Predicated region
      $region63: #{block_forward.6} parent=5 // pred_check
        _
      $region64: #{block_forward.6} parent=5 // pred_check_branch
        %187 = sbr.rel (%p184) target = $region66
      $region65: #{block_forward.6} parent=5 // pred_region
        %s188 = ssub.s32 %s9, 1
        %s189 = sand.u32 %s22, 1
        %s190 = sand.u32 %s22, 1
        %s191 = smul.addr %s190, 32
        %s192 = scalar_lea.vmem [#allocation2], %s191
        // Predicated region
        $region67: #{block_forward.6} parent=65 // pred_check
          %p193 = pneg %p35
        $region68: #{block_forward.6} parent=65 // pred_check_branch
          %195 = sbr.rel (%p193) target = $region70
        $region69: #{block_forward.6} parent=65 // pred_region
          _
        $region70: #{block_forward.6} parent=65 // pred_fallthru
          _
        %s196 = sand.u32 %s22, 1
        %s197 = sand.u32 %s22, 1
        %s198 = smul.addr %s197, 32
        %s199 = scalar_lea.vmem [#allocation2], %s198
        %p200 = pneg %p35
        %p201 = pneg %p32
        %p202 = pneg %p56
        %p203 = pneg %p53
        %p204 = pneg %p77
        %p205 = pneg %p74
        %p206 = pneg %p103
        %p207 = pneg %p100
        %s208 = sand.u32 %s90, 1
        %s209 = sand.u32 %s90, 1
        %s210 = smul.addr %s209, 16
        %s211 = scalar_lea.vmem [#allocation3], %s210
        %s212 = smul.u32 2, %s14
        %s213 = smul.u32 2, %s14
        %v215 = vld [vmem:[%s192] sm:$0xff]
        %v216 = vld [vmem:[%s192 + $0x8] sm:$0xff]
        %v217 = vld [vmem:[%s192 + $0x10] sm:$0xff]
        %v218 = vld [vmem:[%s192 + $0x18] sm:$0xff]
        %v219 = vpack.c.bf16 %v216, %v215
        %v220 = vpack.c.bf16 %v218, %v217
        %v221 = vld [vmem:[%s1] sm:$0xf]
        %v222 = vld [vmem:[%s1 + $0x4] sm:$0xf]
        %v223 = vld [vmem:[%s1 + $0x8] sm:$0xf]
        %v224 = vld [vmem:[%s1 + $0xc] sm:$0xf]
        %v225 = vld [vmem:[%s2] sm:$0x1]
        %v227 = vlaneseq
        %v228 = vshrl.u32 %v227, 7
        %v229 = vsub.s32 0, %v228
        %v230 = vrot.slane %v225, %v229
        %v236 = vunpack.c.l.b16 %v221
        %v237 = vunpack.c.l.b16 %v222
        %v238 = vunpack.c.l.b16 %v223
        %v239 = vunpack.c.l.b16 %v224
        %v240 = vpack.c.b16 %v237, %v236
        %v241 = vpack.c.b16 %v239, %v238
        %vm244 = vcmask 261120
        %v246 = vsel %vm244, %v219, 0
        %v249 = vsel %vm244, %v220, 0
        %251 = vmatprep.subr.bf16.mxu0 0
        %252 = vmatpush1.bf16.msra.mxu0 %v240
        %253 = vmatprep.subr.bf16.mxu0 0
        %254 = vmatpush1.bf16.msra.mxu0 %v241
        %255 = vmatprep.subr.bf16.mxu0 0
        %256 = vmatpush1.bf16.msra.mxu0 0
        %257 = vmatprep.subr.bf16.mxu0 0
        %258 = vmatpush1.bf16.msra.mxu0 0
        %259 = vmatprep.subr.bf16.mxu0 0
        %260 = vmatpush1.bf16.msra.mxu0 0
        %261 = vmatprep.subr.bf16.mxu0 0
        %262 = vmatpush1.bf16.msra.mxu0 0
        %263 = vmatprep.subr.bf16.mxu0 0
        %264 = vmatpush1.bf16.msra.mxu0 0
        %265 = vmatprep.subr.bf16.mxu0 0
        %266 = vmatpush1.bf16.msra.mxu0 0
        %267 = vmatprep.subr.bf16.mxu0 0
        %268 = vmatpush1.bf16.msra.mxu0 0
        %269 = vmatprep.subr.bf16.mxu0 0
        %270 = vmatpush1.bf16.msra.mxu0 0
        %271 = vmatprep.subr.bf16.mxu0 0
        %272 = vmatpush1.bf16.msra.mxu0 0
        %273 = vmatprep.subr.bf16.mxu0 0
        %274 = vmatpush1.bf16.msra.mxu0 0
        %275 = vmatprep.subr.bf16.mxu0 0
        %276 = vmatpush1.bf16.msra.mxu0 0
        %277 = vmatprep.subr.bf16.mxu0 0
        %278 = vmatpush1.bf16.msra.mxu0 0
        %279 = vmatprep.subr.bf16.mxu0 0
        %280 = vmatpush1.bf16.msra.mxu0 0
        %281 = vmatprep.subr.bf16.mxu0 0
        %282 = vmatpush1.bf16.msra.mxu0 0
        %283 = vmatprep.mubr.bf16.mxu0 0
        %284 = vmatmul.mubr.bf16.gmra.mrb[0].mxu0 %v246
        %v285 = vpop.f32.mrb[0].mxu0
        %v286 = vadd.f32 %v230, %v285
        %v287 = vpop.f32.mrb[0].mxu0
        %v288 = vpop.f32.mrb[0].mxu0
        %v289 = vadd.f32 %v230, %v288
        %v290 = vpop.f32.mrb[0].mxu0
        %291 = vmatprep.mubr.bf16.mxu0 0
        %292 = vmatmul.mubr.bf16.gmra.mrb[0].mxu0 %v249
        %v293 = vpop.f32.mrb[0].mxu0
        %v294 = vadd.f32 %v230, %v293
        %v295 = vpop.f32.mrb[0].mxu0
        %v296 = vpop.f32.mrb[0].mxu0
        %v297 = vadd.f32 %v230, %v296
        %v298 = vpop.f32.mrb[0].mxu0
        %299 = vdwg.mxu0
        %v300 = vmul.f32 %v286, 0.5
        %v301 = vmul.f32 %v289, 0.5
        %v302 = vadd.f32 %v300, 0.0
        %v303 = vadd.f32 %v301, 0.0
        %vm304 = vcmp.ge.f32.partialorder %v302, 1.0
        %vm305 = vcmp.ge.f32.partialorder %v303, 1.0
        %v306 = vsel %vm304, 1, 0
        %v307 = vsel %vm305, 1, 0
        %v308 = vcvt.s32.f32 %v306
        %v309 = vcvt.s32.f32 %v307
        %v310 = vsub.f32 1.0, %v308
        %v311 = vsub.f32 1.0, %v309
        %v312 = vmul.f32 %v302, %v310
        %v313 = vmul.f32 %v303, %v311
        %v314 = vpack.c.bf16 %v309, %v308
        %v316 = vunpack.c.l.b16 %v314
        %v317 = vunpack.c.h.b16 %v314
        %v318 = vpack.c.b16 %v316, %v316
        %v319 = vpack.c.b16 %v317, %v317
        %322 = vst [vmem:[%s211] sm:$0xf] %v318
        %323 = vst [vmem:[%s211 + $0x4] sm:$0xf] %v319
        %v324 = vsub.f32 %v294, %v312
        %v325 = vsub.f32 %v297, %v313
        %v326 = vmul.f32 %v324, 0.5
        %v327 = vmul.f32 %v325, 0.5
        %v328 = vadd.f32 %v312, %v326
        %v329 = vadd.f32 %v313, %v327
        %vm330 = vcmp.ge.f32.partialorder %v328, 1.0
        %vm331 = vcmp.ge.f32.partialorder %v329, 1.0
        %v332 = vsel %vm330, 1, 0
        %v333 = vsel %vm331, 1, 0
        %v334 = vcvt.s32.f32 %v332
        %v335 = vcvt.s32.f32 %v333
        %v336 = vpack.c.bf16 %v335, %v334
        %v338 = vunpack.c.l.b16 %v336
        %v339 = vunpack.c.h.b16 %v336
        %v340 = vpack.c.b16 %v338, %v338
        %v341 = vpack.c.b16 %v339, %v339
        %s344 = scalar_lea.vmem %s211, 8 [#allocation3]
        %345 = vst [vmem:[%s344] sm:$0xf] %v340
        %346 = vst [vmem:[%s344 + $0x4] sm:$0xf] %v341
        %s347 = sand.u32 %s90, 1
        %s348 = sand.u32 %s90, 1
        %s349 = smul.addr %s348, 16
        %s350 = scalar_lea.vmem [#allocation3], %s349
        // Predicated region
        $region71: #{block_forward.6} parent=65 // pred_check
          %p351 = pneg %p100
        $region72: #{block_forward.6} parent=65 // pred_check_branch
          %353 = sbr.rel (%p351) target = $region74
        $region73: #{block_forward.6} parent=65 // pred_region
          %s354 = smul.u32 2, %s14
          %s355 = smul.addr %s354, 4
          %s356 = scalar_lea.vmem %s3, %s355
          // Predicated region
          $region75: #{block_forward.6} parent=73 // pred_check
            _
          $region76: #{block_forward.6} parent=73 // pred_check_branch
            %358 = sbr.rel (0) target = $region78
          $region77: #{block_forward.6} parent=73 // pred_region
            // Predicated region
            $region79: #{block_forward.6} parent=77 // pred_check
              _
            $region80: #{block_forward.6} parent=77 // pred_check_branch
              %360 = sbr.rel target = $region82
            $region81: #{block_forward.6} parent=77 // pred_region
              // Predicated region
              $region94: #{block_forward.6} parent=81 // pred_check
                _
              $region95: #{block_forward.6} parent=81 // pred_check_branch
                %381 = sbr.rel (0) target = $region97
              $region96: #{block_forward.6} parent=81 // pred_region
                loop: start=0, step=1, limit=1
                $region98: #{block_forward.6} parent=96 // loop_pre_header
                  _
                $region99: #{block_forward.6} parent=96 // loop_header
                  %s383 = sphi 0, %s387
                  %p384 = scmp.ge.s32.totalorder %s383, 1
                  %s388 = sphi %s350, %s350
                  %s389 = sphi %s356, %s356
                $region100: #{block_forward.6} parent=96 // loop_header_branch
                  %386 = sbr.rel (%p384) target = $region104
                $region101: #{block_forward.6} parent=96 // loop_body
                  _
                $region102: #{block_forward.6} parent=96 // loop_footer
                  %s387 = sadd.s32 1, %s383
                $region103: #{block_forward.6} parent=96 // loop_footer_branch
                  %382 = sbr.rel target = $region99
                $region104: #{block_forward.6} parent=96 // loop_exit
                  _
                loop: start=0, step=1, limit=1
                $region105: #{block_forward.6} parent=96 // loop_pre_header
                  _
                $region106: #{block_forward.6} parent=96 // loop_header
                  %s392 = sphi 0, %s396
                  %p393 = scmp.ge.s32.totalorder %s392, 1
                  %s397 = sphi %s350, %s350
                  %s398 = sphi %s356, %s356
                $region107: #{block_forward.6} parent=96 // loop_header_branch
                  %395 = sbr.rel (%p393) target = $region111
                $region108: #{block_forward.6} parent=96 // loop_body
                  %v399 = vld [vmem:[%s397] sm:$0xf]
                  %400 = vst [vmem:[%s398] sm:$0xf] %v399
                  %v401 = vld [vmem:[%s397 + $0x4] sm:$0xf]
                  %402 = vst [vmem:[%s398 + $0x4] sm:$0xf] %v401
                  %v403 = vld [vmem:[%s397 + $0x8] sm:$0xf]
                  %404 = vst [vmem:[%s398 + $0x10] sm:$0xf] %v403
                  %v405 = vld [vmem:[%s397 + $0xc] sm:$0xf]
                  %406 = vst [vmem:[%s398 + $0x14] sm:$0xf] %v405
                $region109: #{block_forward.6} parent=96 // loop_footer
                  %s396 = sadd.s32 1, %s392
                $region110: #{block_forward.6} parent=96 // loop_footer_branch
                  %391 = sbr.rel target = $region106
                $region111: #{block_forward.6} parent=96 // loop_exit
                  _
              $region97: #{block_forward.6} parent=81 // pred_fallthru
                _
            $region82: #{block_forward.6} parent=77 // pred_fallthru
              _
            // Predicated region
            $region83: #{block_forward.6} parent=77 // pred_check
              _
            $region84: #{block_forward.6} parent=77 // pred_check_branch
              %362 = sbr.rel (0) target = $region86
            $region85: #{block_forward.6} parent=77 // pred_region
              loop: start=0, step=1, limit=1
              $region87: #{block_forward.6} parent=85 // loop_pre_header
                _
              $region88: #{block_forward.6} parent=85 // loop_header
                %s365 = sphi 0, %s369
                %p366 = scmp.ge.s32.totalorder %s365, 1
                %s370 = sphi %s350, %s350
                %s371 = sphi %s356, %s356
              $region89: #{block_forward.6} parent=85 // loop_header_branch
                %368 = sbr.rel (%p366) target = $region93
              $region90: #{block_forward.6} parent=85 // loop_body
                %v372 = vld [vmem:[%s370] sm:$0xf]
                %373 = vst [vmem:[%s371] sm:$0xf] %v372
                %v374 = vld [vmem:[%s370 + $0x4] sm:$0xf]
                %375 = vst [vmem:[%s371 + $0x4] sm:$0xf] %v374
                %v376 = vld [vmem:[%s370 + $0x8] sm:$0xf]
                %377 = vst [vmem:[%s371 + $0x10] sm:$0xf] %v376
                %v378 = vld [vmem:[%s370 + $0xc] sm:$0xf]
                %379 = vst [vmem:[%s371 + $0x14] sm:$0xf] %v378
              $region91: #{block_forward.6} parent=85 // loop_footer
                %s369 = sadd.s32 1, %s365
              $region92: #{block_forward.6} parent=85 // loop_footer_branch
                %364 = sbr.rel target = $region88
              $region93: #{block_forward.6} parent=85 // loop_exit
                _
            $region86: #{block_forward.6} parent=77 // pred_fallthru
              _
          $region78: #{block_forward.6} parent=73 // pred_fallthru
            _
          %407 = vnop
        $region74: #{block_forward.6} parent=65 // pred_fallthru
          _
      $region66: #{block_forward.6} parent=5 // pred_fallthru
        _
      %p408 = scmp.le.s32.totalorder 2, %s9
      // Predicated region
      $region112: #{block_forward.6} parent=5 // pred_check
        %p409 = pneg %p408
      $region113: #{block_forward.6} parent=5 // pred_check_branch
        %411 = sbr.rel (%p409) target = $region115
      $region114: #{block_forward.6} parent=5 // pred_region
        %s412 = ssub.s32 %s9, 2
        // Predicated region
        $region116: #{block_forward.6} parent=114 // pred_check
          %p413 = pneg %p106
        $region117: #{block_forward.6} parent=114 // pred_check_branch
          %415 = sbr.rel (%p413) target = $region119
        $region118: #{block_forward.6} parent=114 // pred_region
          %s416 = sand.u32 %s91, 1
          %s417 = sand.u32 %s91, 1
          %s418 = smul.addr %s417, 16
          %s419 = scalar_lea.vmem [#allocation3], %s418
        $region119: #{block_forward.6} parent=114 // pred_fallthru
          _
      $region115: #{block_forward.6} parent=5 // pred_fallthru
        _
    $region6: #{block_forward.6} parent=1 // loop_footer
      %s13 = sadd.s32 1, %s9
    $region7: #{block_forward.6} parent=1 // loop_footer_branch
      %8 = sbr.rel target = $region3
    $region8: #{block_forward.6} parent=1 // loop_exit
      _

// kernel: block_forward.4
$region0: #{block_forward.4}
  #allocation0 [shape = 'u32[]', space=smem, size = 0x4, offset = 0x4, fixed_abs, tag = 'smem constant byte address 0x4 - core index']
  #allocation1 [shape = 'u32[144,128]{1,0:T(1,128)}', space=vmem, size = 0x12000, scoped, tag = 'internal scratch']
  #allocation2 [shape = 'bf16[2,16,96]{2,1,0:T(16,128)(2,1)}', space=vmem, size = 0x2000, scoped, tag = 'scratch operand']
  #allocation6 [shape = 's32[]', space=sflag, size = 0x4, offset = 0, fixed_abs, tag = 'sflag constant byte address 0x0 - dummy sync flag']
  %s0 = inlined_call_operand.hbm [shape: f32[2,32,32], index: 0, kind: input, shape index: {}]
  %s1 = inlined_call_operand.vmem [shape: bf16[32,96], index: 1, kind: input, shape index: {}]
  %s2 = inlined_call_operand.vmem [shape: f32[1,96], index: 2, kind: input, shape index: {}]
  %s3 = inlined_call_operand.vmem [shape: f32[2,32,32], index: 3, kind: output, shape index: {}]
  %s4 = sld [smem:[#allocation0]]
  $region83: #{block_forward.4} parent=0
    _
  %s6 = ssub.s32 1, %s4
  %s7 = scalar_select 0, %s6, %s4
  $region1: #{block_forward.4} parent=0
    #allocation3 [shape = 'u8[32768]{0}', space=vmem, size = 0x8000, scoped, tag = 'input window, operand 0']
    #allocation4 [shape = 's32[2]{0}', space=sflag, size = 0x8, scoped, tag = 'scoped memory for block_forward.4']
    #allocation5 [shape = 'u8[32768]{0}', space=vmem, size = 0x8000, scoped, tag = 'output window, operand 0']
    %8 = vsyncpa [#allocation4], 0
    %s9 = scalar_lea.sflag [#allocation4], 1
    %10 = vsyncpa %s9, 0
    loop: start=0, step=1, limit=4
    $region2: #{block_forward.4} parent=1 // loop_pre_header
      _
    $region3: #{block_forward.4} parent=1 // loop_header
      %s12 = sphi 0, %s16
      %p13 = scmp.ge.s32.totalorder %s12, 4
      %s22 = sphi 0, %s24
      %s25 = sphi 0, %s22
      %s26 = sphi 0, %s25
      %s42 = sphi 0, %s26
      %s46 = sphi 0, %s46
      %s48 = sphi 0, %s46
      %s49 = sphi 0, %s48
      %s63 = sphi 0, %s49
      %s67 = sphi 0, %s67
      %s69 = sphi 0, %s67
      %s70 = sphi 0, %s69
      %s84 = sphi 0, %s70
      %s90 = sphi 0, %s92
      %s93 = sphi 0, %s90
      %s94 = sphi 0, %s93
      %s110 = sphi 0, %s94
    $region4: #{block_forward.4} parent=1 // loop_header_branch
      %15 = sbr.rel (%p13) target = $region8
    $region5: #{block_forward.4} parent=1 // loop_body
      %s17 = ssub.s32 %s12, 1
      %s18 = ssub.s32 %s12, 2
      %s19 = sadd.s32 %s12, 1
      %s20 = ssub.s32 %s12, %s19
      %p21 = scmp.eq.s32.totalorder %s20, 0
      %s23 = sadd.s32 %s22, 1
      %s24 = scalar_select %p21, %s22, %s23
      %p27 = pneg %p21
      %p28 = scmp.eq.s32.totalorder %s12, 1
      %p29 = por %p27, %p28
      %p30 = scmp.ne.s32.totalorder %s22, %s25
      %p31 = scmp.eq.s32.totalorder %s12, 0
      %p32 = por %p30, %p31
      %p33 = scmp.ne.s32.totalorder %s22, %s25
      %p34 = scmp.eq.s32.totalorder %s17, 1
      %p35 = por %p33, %p34
      %p36 = scmp.ne.s32.totalorder %s25, %s26
      %p37 = scmp.eq.s32.totalorder %s17, 0
      %p38 = por %p36, %p37
      %p39 = scmp.ne.s32.totalorder %s25, %s26
      %p40 = scmp.eq.s32.totalorder %s18, 1
      %p41 = por %p39, %p40
      %p43 = scmp.ne.s32.totalorder %s26, %s42
      %p44 = scmp.eq.s32.totalorder %s18, 0
      %p45 = por %p43, %p44
      %s47 = sadd.s32 %s46, 1
      %p50 = scmp.eq.s32.totalorder %s12, 1
      %p51 = scmp.ne.s32.totalorder %s46, %s48
      %p52 = scmp.eq.s32.totalorder %s12, 0
      %p53 = por %p51, %p52
      %p54 = scmp.ne.s32.totalorder %s46, %s48
      %p55 = scmp.eq.s32.totalorder %s17, 1
      %p56 = por %p54, %p55
      %p57 = scmp.ne.s32.totalorder %s48, %s49
      %p58 = scmp.eq.s32.totalorder %s17, 0
      %p59 = por %p57, %p58
      %p60 = scmp.ne.s32.totalorder %s48, %s49
      %p61 = scmp.eq.s32.totalorder %s18, 1
      %p62 = por %p60, %p61
      %p64 = scmp.ne.s32.totalorder %s49, %s63
      %p65 = scmp.eq.s32.totalorder %s18, 0
      %p66 = por %p64, %p65
      %s68 = sadd.s32 %s67, 1
      %p71 = scmp.eq.s32.totalorder %s12, 1
      %p72 = scmp.ne.s32.totalorder %s67, %s69
      %p73 = scmp.eq.s32.totalorder %s12, 0
      %p74 = por %p72, %p73
      %p75 = scmp.ne.s32.totalorder %s67, %s69
      %p76 = scmp.eq.s32.totalorder %s17, 1
      %p77 = por %p75, %p76
      %p78 = scmp.ne.s32.totalorder %s69, %s70
      %p79 = scmp.eq.s32.totalorder %s17, 0
      %p80 = por %p78, %p79
      %p81 = scmp.ne.s32.totalorder %s69, %s70
      %p82 = scmp.eq.s32.totalorder %s18, 1
      %p83 = por %p81, %p82
      %p85 = scmp.ne.s32.totalorder %s70, %s84
      %p86 = scmp.eq.s32.totalorder %s18, 0
      %p87 = por %p85, %p86
      %s88 = ssub.s32 %s12, %s19
      %p89 = scmp.eq.s32.totalorder %s88, 0
      %s91 = sadd.s32 %s90, 1
      %s92 = scalar_select %p89, %s90, %s91
      %p95 = pneg %p89
      %p96 = scmp.eq.s32.totalorder %s12, 1
      %p97 = por %p95, %p96
      %p98 = scmp.ne.s32.totalorder %s90, %s93
      %p99 = scmp.eq.s32.totalorder %s12, 0
      %p100 = por %p98, %p99
      %p101 = scmp.ne.s32.totalorder %s90, %s93
      %p102 = scmp.eq.s32.totalorder %s17, 1
      %p103 = por %p101, %p102
      %p104 = scmp.ne.s32.totalorder %s93, %s94
      %p105 = scmp.eq.s32.totalorder %s17, 0
      %p106 = por %p104, %p105
      %p107 = scmp.ne.s32.totalorder %s93, %s94
      %p108 = scmp.eq.s32.totalorder %s18, 1
      %p109 = por %p107, %p108
      %p111 = scmp.ne.s32.totalorder %s94, %s110
      %p112 = scmp.eq.s32.totalorder %s18, 0
      %p113 = por %p111, %p112
      %p114 = scmp.le.s32.totalorder 1, %s12
      %p115 = scmp.lt.s32.totalorder %s12, 3
      %p116 = pnand %p114, %p115
      %p117 = pneg %p116
      // Predicated region
      $region9: #{block_forward.4} parent=5 // pred_check
        _
      $region10: #{block_forward.4} parent=5 // pred_check_branch
        %119 = sbr.rel (%p116) target = $region12
      $region11: #{block_forward.4} parent=5 // pred_region
        %s120 = ssub.s32 %s12, 1
        // Predicated region
        $region13: #{block_forward.4} parent=11 // pred_check
          %p121 = pneg %p59
        $region14: #{block_forward.4} parent=11 // pred_check_branch
          %123 = sbr.rel (%p121) target = $region16
        $region15: #{block_forward.4} parent=11 // pred_region
          _
        $region16: #{block_forward.4} parent=11 // pred_fallthru
          _
        // Predicated region
        $region17: #{block_forward.4} parent=11 // pred_check
          %p124 = pneg %p80
        $region18: #{block_forward.4} parent=11 // pred_check_branch
          %126 = sbr.rel (%p124) target = $region20
        $region19: #{block_forward.4} parent=11 // pred_region
          _
        $region20: #{block_forward.4} parent=11 // pred_fallthru
          _
      $region12: #{block_forward.4} parent=5 // pred_fallthru
        _
      %p127 = scmp.lt.s32.totalorder %s12, 2
      // Predicated region
      $region21: #{block_forward.4} parent=5 // pred_check
        %p128 = pneg %p127
      $region22: #{block_forward.4} parent=5 // pred_check_branch
        %130 = sbr.rel (%p128) target = $region24
      $region23: #{block_forward.4} parent=5 // pred_region
        // Predicated region
        $region25: #{block_forward.4} parent=23 // pred_check
          %p131 = pneg %p32
        $region26: #{block_forward.4} parent=23 // pred_check_branch
          %133 = sbr.rel (%p131) target = $region28
        $region27: #{block_forward.4} parent=23 // pred_region
          #allocation7 [shape = 'u32[6]{0}', space=smem, size = 0x18, scoped, tag = 'DMA stride descriptor']
          %s134 = sand.u32 %s22, 1
          %s135 = scalar_lea.sflag [#allocation4], %s134
          %s136 = sand.u32 %s22, 1
          %s137 = smul.addr %s136, 32
          %s138 = scalar_lea.vmem [#allocation3], %s137
          %s139 = smul.u32 2, %s12
          %s141 = ssub.s32 512, 512
          %142 = vsyncadd %s135, %s141
          %s143 = smul.addr %s139, 128
          %s144 = scalar_lea.hbm %s0, %s143
          %s146 = sshll.u32 1, 14
          %s147 = sxor.u32 4294967295, %s146
          %s149 = sld [smem:[#allocation0]]
          %s150 = sadd.s32 2, %s149
          %s152 = sshll.u32 7, 26
          %s153 = sxor.u32 4294967295, %s152
          %s154 = sand.u32 0, %s153
          %s155 = sshll.u32 %s150, 26
          %s156 = sor.u32 %s154, %s155
          %s157 = sshll.u32 %s138, 4
          %s158 = int_to_ptr.vmem [resolvable:$true] %s157
          %164 = sst [smem:[#allocation7]] 512
          %s165 = scalar_lea.smem [#allocation7], 1
          %166 = sst [smem:[%s165]] 256
          %s167 = scalar_lea.smem [#allocation7], 2
          %168 = sst [smem:[%s167]] 2
          %s169 = scalar_lea.smem [#allocation7], 3
          %170 = sst [smem:[%s169]] 128
          %s171 = scalar_lea.smem [#allocation7], 4
          %172 = sst [smem:[%s171]] 128
          %s173 = scalar_lea.smem [#allocation7], 5
          %174 = sst [smem:[%s173]] 8
          %176 = dma.general %s144, 512, %s158, %s135, [#allocation6], [#allocation7], %s156, 0
        $region28: #{block_forward.4} parent=23 // pred_fallthru
          _
      $region24: #{block_forward.4} parent=5 // pred_fallthru
        _
      %p177 = scmp.le.s32.totalorder 1, %s12
      %p178 = scmp.lt.s32.totalorder %s12, 3
      %p179 = pnand %p177, %p178
      %p180 = pneg %p179
      // Predicated region
      $region29: #{block_forward.4} parent=5 // pred_check
        _
      $region30: #{block_forward.4} parent=5 // pred_check_branch
        %182 = sbr.rel (%p179) target = $region32
      $region31: #{block_forward.4} parent=5 // pred_region
        %s183 = ssub.s32 %s12, 1
        %s184 = sand.u32 %s25, 1
        %s185 = scalar_lea.sflag [#allocation4], %s184
        %s186 = sand.u32 %s25, 1
        %s187 = smul.addr %s186, 32
        %s188 = scalar_lea.vmem [#allocation3], %s187
        // Predicated region
        $region33: #{block_forward.4} parent=31 // pred_check
          %p189 = pneg %p38
        $region34: #{block_forward.4} parent=31 // pred_check_branch
          %191 = sbr.rel (%p189) target = $region36
        $region35: #{block_forward.4} parent=31 // pred_region
          %192 = dma.done %s185, 512
        $region36: #{block_forward.4} parent=31 // pred_fallthru
          _
        %s193 = sand.u32 %s25, 1
        %s194 = scalar_lea.sflag [#allocation4], %s193
        %s195 = sand.u32 %s25, 1
        %s196 = smul.addr %s195, 32
        %s197 = scalar_lea.vmem [#allocation3], %s196
        %p198 = pneg %p38
        %p199 = pneg %p35
        %p200 = pneg %p59
        %p201 = pneg %p56
        %p202 = pneg %p80
        %p203 = pneg %p77
        %p204 = pneg %p106
        %p205 = pneg %p103
        %s206 = sand.u32 %s93, 1
        %s207 = sand.u32 %s93, 1
        %s208 = smul.addr %s207, 32
        %s209 = scalar_lea.vmem [#allocation5], %s208
        %s210 = smul.u32 2, %s17
        %s211 = smul.u32 2, %s17
        %v213 = vld [vmem:[%s188] sm:$0xff]
        %v214 = vld [vmem:[%s188 + $0x8] sm:$0xff]
        %v215 = vld [vmem:[%s188 + $0x10] sm:$0xff]
        %v216 = vld [vmem:[%s188 + $0x18] sm:$0xff]
        %v217 = vpack.c.bf16 %v214, %v213
        %v218 = vpack.c.bf16 %v216, %v215
        %v219 = vld [vmem:[%s1] sm:$0xf]
        %v220 = vld [vmem:[%s1 + $0x4] sm:$0xf]
        %v221 = vld [vmem:[%s1 + $0x8] sm:$0xf]
        %v222 = vld [vmem:[%s1 + $0xc] sm:$0xf]
        %v223 = vld [vmem:[%s2] sm:$0x1]
        %v225 = vlaneseq
        %v226 = vshrl.u32 %v225, 7
        %v227 = vsub.s32 0, %v226
        %v228 = vrot.slane %v223, %v227
        %v234 = vunpack.c.l.b16 %v219
        %v235 = vunpack.c.l.b16 %v220
        %v236 = vunpack.c.l.b16 %v221
        %v237 = vunpack.c.l.b16 %v222
        %v238 = vpack.c.b16 %v235, %v234
        %v239 = vpack.c.b16 %v237, %v236
        %vm242 = vcmask 261120
        %v244 = vsel %vm242, %v217, 0
        %v247 = vsel %vm242, %v218, 0
        %249 = vmatprep.subr.bf16.mxu0 0
        %250 = vmatpush1.bf16.msra.mxu0 %v238
        %251 = vmatprep.subr.bf16.mxu0 0
        %252 = vmatpush1.bf16.msra.mxu0 %v239
        %253 = vmatprep.subr.bf16.mxu0 0
        %254 = vmatpush1.bf16.msra.mxu0 0
        %255 = vmatprep.subr.bf16.mxu0 0
        %256 = vmatpush1.bf16.msra.mxu0 0
        %257 = vmatprep.subr.bf16.mxu0 0
        %258 = vmatpush1.bf16.msra.mxu0 0
        %259 = vmatprep.subr.bf16.mxu0 0
        %260 = vmatpush1.bf16.msra.mxu0 0
        %261 = vmatprep.subr.bf16.mxu0 0
        %262 = vmatpush1.bf16.msra.mxu0 0
        %263 = vmatprep.subr.bf16.mxu0 0
        %264 = vmatpush1.bf16.msra.mxu0 0
        %265 = vmatprep.subr.bf16.mxu0 0
        %266 = vmatpush1.bf16.msra.mxu0 0
        %267 = vmatprep.subr.bf16.mxu0 0
        %268 = vmatpush1.bf16.msra.mxu0 0
        %269 = vmatprep.subr.bf16.mxu0 0
        %270 = vmatpush1.bf16.msra.mxu0 0
        %271 = vmatprep.subr.bf16.mxu0 0
        %272 = vmatpush1.bf16.msra.mxu0 0
        %273 = vmatprep.subr.bf16.mxu0 0
        %274 = vmatpush1.bf16.msra.mxu0 0
        %275 = vmatprep.subr.bf16.mxu0 0
        %276 = vmatpush1.bf16.msra.mxu0 0
        %277 = vmatprep.subr.bf16.mxu0 0
        %278 = vmatpush1.bf16.msra.mxu0 0
        %279 = vmatprep.subr.bf16.mxu0 0
        %280 = vmatpush1.bf16.msra.mxu0 0
        %281 = vmatprep.mubr.bf16.mxu0 0
        %282 = vmatmul.mubr.bf16.gmra.mrb[0].mxu0 %v244
        %v283 = vpop.f32.mrb[0].mxu0
        %v284 = vadd.f32 %v228, %v283
        %v285 = vpop.f32.mrb[0].mxu0
        %v286 = vpop.f32.mrb[0].mxu0
        %v287 = vadd.f32 %v228, %v286
        %v288 = vpop.f32.mrb[0].mxu0
        %289 = vmatprep.mubr.bf16.mxu0 0
        %290 = vmatmul.mubr.bf16.gmra.mrb[0].mxu0 %v247
        %v291 = vpop.f32.mrb[0].mxu0
        %v292 = vadd.f32 %v228, %v291
        %v293 = vpop.f32.mrb[0].mxu0
        %v294 = vpop.f32.mrb[0].mxu0
        %v295 = vadd.f32 %v228, %v294
        %v296 = vpop.f32.mrb[0].mxu0
        %297 = vdwg.mxu0
        %v298 = vmul.f32 %v284, 0.5
        %v299 = vmul.f32 %v287, 0.5
        %v300 = vadd.f32 %v298, 0.0
        %v301 = vadd.f32 %v299, 0.0
        %vm302 = vcmp.ge.f32.partialorder %v300, 1.0
        %vm303 = vcmp.ge.f32.partialorder %v301, 1.0
        %v304 = vsel %vm302, 1, 0
        %v305 = vsel %vm303, 1, 0
        %v306 = vcvt.s32.f32 %v304
        %v307 = vcvt.s32.f32 %v305
        %v308 = vsub.f32 1.0, %v306
        %v309 = vsub.f32 1.0, %v307
        %v310 = vmul.f32 %v300, %v308
        %v311 = vmul.f32 %v301, %v309
        %v312 = vpack.c.bf16 %v307, %v306
        %vm313 = vcmask 785408
        %314 = vst.msk [vmem:[#allocation2] sm:$0xff] %vm313, %v312
        %v315 = vsub.f32 %v292, %v310
        %v316 = vsub.f32 %v295, %v311
        %v317 = vmul.f32 %v315, 0.5
        %v318 = vmul.f32 %v316, 0.5
        %v319 = vadd.f32 %v310, %v317
        %v320 = vadd.f32 %v311, %v318
        %vm321 = vcmp.ge.f32.partialorder %v319, 1.0
        %vm322 = vcmp.ge.f32.partialorder %v320, 1.0
        %v323 = vsel %vm321, 1, 0
        %v324 = vsel %vm322, 1, 0
        %v325 = vcvt.s32.f32 %v323
        %v326 = vcvt.s32.f32 %v324
        %v327 = vpack.c.bf16 %v326, %v325
        %s328 = scalar_lea.vmem [#allocation2], 8
        %329 = vst.msk [vmem:[%s328] sm:$0xff] %vm313, %v327
        %v330 = vld [vmem:[#allocation2] sm:$0xff]
        %v331 = vld [vmem:[#allocation2 + $0x8] sm:$0xff]
        %333 = vrot.lane.b32.xlu0 %v330, 96
        %v334 = vpop.permute.xlu0 %333
        %336 = vxpose.xlu0.c.b16.start [1/8] %v334, 128
        %337 = vxpose.xlu0.c.b16.cont [2/8] 0, 128
        %338 = vxpose.xlu0.c.b16.cont [3/8] 0, 128
        %339 = vxpose.xlu0.c.b16.cont [4/8] 0, 128
        %340 = vxpose.xlu0.c.b16.cont [5/8] 0, 128
        %341 = vxpose.xlu0.c.b16.cont [6/8] 0, 128
        %342 = vxpose.xlu0.c.b16.cont [7/8] 0, 128
        %343 = vxpose.xlu0.c.b16.end [8/8] 0, 128
        %v344 = vpop.trf.xlu0
        %v345 = vpop.trf.xlu0
        %v346 = vpop.trf.xlu0
        %v347 = vpop.trf.xlu0
        %v348 = vpop.trf.xlu0
        %v349 = vpop.trf.xlu0
        %v350 = vpop.trf.xlu0
        %v351 = vpop.trf.xlu0
        %352 = vrot.lane.b32.xlu0 %v330, 64
        %v353 = vpop.permute.xlu0 %352
        %vm355 = vcmask 130048
        %v357 = vsel %vm355, %v344, 0
        %359 = vmatprep.subr.bf16.mxu0 0
        %360 = vmatpush1.bf16.msra.mxu0 %v353
        %361 = vmatprep.subr.bf16.mxu0 0
        %362 = vmatpush1.bf16.msra.mxu0 0
        %363 = vmatprep.subr.bf16.mxu0 0
        %364 = vmatpush1.bf16.msra.mxu0 0
        %365 = vmatprep.subr.bf16.mxu0 0
        %366 = vmatpush1.bf16.msra.mxu0 0
        %367 = vmatprep.subr.bf16.mxu0 0
        %368 = vmatpush1.bf16.msra.mxu0 0
        %369 = vmatprep.subr.bf16.mxu0 0
        %370 = vmatpush1.bf16.msra.mxu0 0
        %371 = vmatprep.subr.bf16.mxu0 0
        %372 = vmatpush1.bf16.msra.mxu0 0
        %373 = vmatprep.subr.bf16.mxu0 0
        %374 = vmatpush1.bf16.msra.mxu0 0
        %375 = vmatprep.subr.bf16.mxu0 0
        %376 = vmatpush1.bf16.msra.mxu0 0
        %377 = vmatprep.subr.bf16.mxu0 0
        %378 = vmatpush1.bf16.msra.mxu0 0
        %379 = vmatprep.subr.bf16.mxu0 0
        %380 = vmatpush1.bf16.msra.mxu0 0
        %381 = vmatprep.subr.bf16.mxu0 0
        %382 = vmatpush1.bf16.msra.mxu0 0
        %383 = vmatprep.subr.bf16.mxu0 0
        %384 = vmatpush1.bf16.msra.mxu0 0
        %385 = vmatprep.subr.bf16.mxu0 0
        %386 = vmatpush1.bf16.msra.mxu0 0
        %387 = vmatprep.subr.bf16.mxu0 0
        %388 = vmatpush1.bf16.msra.mxu0 0
        %389 = vmatprep.subr.bf16.mxu0 0
        %390 = vmatpush1.bf16.msra.mxu0 0
        %391 = vmatprep.mubr.bf16.mxu0 0
        %392 = vmatmul.mubr.bf16.gmra.mrb[0].mxu0 %v357
        %v393 = vpop.f32.mrb[0].mxu0
        %v394 = vadd.f32 0.0, %v393
        %v395 = vpop.f32.mrb[0].mxu0
        %v396 = vpop.f32.mrb[0].mxu0
        %v397 = vpop.f32.mrb[0].mxu0
        %398 = vdwg.mxu0
        %400 = vrot.lane.b32.xlu0 %v331, 96
        %v401 = vpop.permute.xlu0 %400
        %403 = vxpose.xlu0.c.b16.start [1/8] %v401, 128
        %404 = vxpose.xlu0.c.b16.cont [2/8] 0, 128
        %405 = vxpose.xlu0.c.b16.cont [3/8] 0, 128
        %406 = vxpose.xlu0.c.b16.cont [4/8] 0, 128
        %407 = vxpose.xlu0.c.b16.cont [5/8] 0, 128
        %408 = vxpose.xlu0.c.b16.cont [6/8] 0, 128
        %409 = vxpose.xlu0.c.b16.cont [7/8] 0, 128
        %410 = vxpose.xlu0.c.b16.end [8/8] 0, 128
        %v411 = vpop.trf.xlu0
        %v412 = vpop.trf.xlu0
        %v413 = vpop.trf.xlu0
        %v414 = vpop.trf.xlu0
        %v415 = vpop.trf.xlu0
        %v416 = vpop.trf.xlu0
        %v417 = vpop.trf.xlu0
        %v418 = vpop.trf.xlu0
        %419 = vrot.lane.b32.xlu0 %v331, 64
        %v420 = vpop.permute.xlu0 %419
        %v423 = vsel %vm355, %v411, 0
        %425 = vmatprep.subr.bf16.mxu0 0
        %426 = vmatpush1.bf16.msra.mxu0 %v420
        %427 = vmatprep.subr.bf16.mxu0 0
        %428 = vmatpush1.bf16.msra.mxu0 0
        %429 = vmatprep.subr.bf16.mxu0 0
        %430 = vmatpush1.bf16.msra.mxu0 0
        %431 = vmatprep.subr.bf16.mxu0 0
        %432 = vmatpush1.bf16.msra.mxu0 0
        %433 = vmatprep.subr.bf16.mxu0 0
        %434 = vmatpush1.bf16.msra.mxu0 0
        %435 = vmatprep.subr.bf16.mxu0 0
        %436 = vmatpush1.bf16.msra.mxu0 0
        %437 = vmatprep.subr.bf16.mxu0 0
        %438 = vmatpush1.bf16.msra.mxu0 0
        %439 = vmatprep.subr.bf16.mxu0 0
        %440 = vmatpush1.bf16.msra.mxu0 0
        %441 = vmatprep.subr.bf16.mxu0 0
        %442 = vmatpush1.bf16.msra.mxu0 0
        %443 = vmatprep.subr.bf16.mxu0 0
        %444 = vmatpush1.bf16.msra.mxu0 0
        %445 = vmatprep.subr.bf16.mxu0 0
        %446 = vmatpush1.bf16.msra.mxu0 0
        %447 = vmatprep.subr.bf16.mxu0 0
        %448 = vmatpush1.bf16.msra.mxu0 0
        %449 = vmatprep.subr.bf16.mxu0 0
        %450 = vmatpush1.bf16.msra.mxu0 0
        %451 = vmatprep.subr.bf16.mxu0 0
        %452 = vmatpush1.bf16.msra.mxu0 0
        %453 = vmatprep.subr.bf16.mxu0 0
        %454 = vmatpush1.bf16.msra.mxu0 0
        %455 = vmatprep.subr.bf16.mxu0 0
        %456 = vmatpush1.bf16.msra.mxu0 0
        %457 = vmatprep.mubr.bf16.mxu0 0
        %458 = vmatmul.mubr.bf16.gmra.mrb[0].mxu0 %v423
        %v459 = vpop.f32.mrb[0].mxu0
        %v460 = vadd.f32 0.0, %v459
        %v461 = vpop.f32.mrb[0].mxu0
        %v462 = vpop.f32.mrb[0].mxu0
        %v463 = vpop.f32.mrb[0].mxu0
        %464 = vdwg.mxu0
        %v465 = vmul.f32 %v394, 0.125
        %v466 = vmul.f32 %v460, 0.125
        %v467 = vpack.c.bf16 %v465, %v465
        %v468 = vpack.c.bf16 %v466, %v466
        %vm469 = vcmask 64512
        %v471 = vsel %vm469, %v330, 0
        %vm473 = vcmask 1043456
        %v475 = vsel %vm473, %v467, 0
        %477 = vmatprep.subr.bf16.mxu0 0
        %478 = vmatpush1.bf16.msra.mxu0 %v475
        %479 = vmatprep.subr.bf16.mxu0 0
        %480 = vmatpush1.bf16.msra.mxu0 0
        %481 = vmatprep.subr.bf16.mxu0 0
        %482 = vmatpush1.bf16.msra.mxu0 0
        %483 = vmatprep.subr.bf16.mxu0 0
        %484 = vmatpush1.bf16.msra.mxu0 0
        %485 = vmatprep.subr.bf16.mxu0 0
        %486 = vmatpush1.bf16.msra.mxu0 0
        %487 = vmatprep.subr.bf16.mxu0 0
        %488 = vmatpush1.bf16.msra.mxu0 0
        %489 = vmatprep.subr.bf16.mxu0 0
        %490 = vmatpush1.bf16.msra.mxu0 0
        %491 = vmatprep.subr.bf16.mxu0 0
        %492 = vmatpush1.bf16.msra.mxu0 0
        %493 = vmatprep.subr.bf16.mxu0 0
        %494 = vmatpush1.bf16.msra.mxu0 0
        %495 = vmatprep.subr.bf16.mxu0 0
        %496 = vmatpush1.bf16.msra.mxu0 0
        %497 = vmatprep.subr.bf16.mxu0 0
        %498 = vmatpush1.bf16.msra.mxu0 0
        %499 = vmatprep.subr.bf16.mxu0 0
        %500 = vmatpush1.bf16.msra.mxu0 0
        %501 = vmatprep.subr.bf16.mxu0 0
        %502 = vmatpush1.bf16.msra.mxu0 0
        %503 = vmatprep.subr.bf16.mxu0 0
        %504 = vmatpush1.bf16.msra.mxu0 0
        %505 = vmatprep.subr.bf16.mxu0 0
        %506 = vmatpush1.bf16.msra.mxu0 0
        %507 = vmatprep.subr.bf16.mxu0 0
        %508 = vmatpush1.bf16.msra.mxu0 0
        %509 = vmatprep.mubr.bf16.mxu0 0
        %510 = vmatmul.mubr.bf16.gmra.mrb[0].mxu0 %v471
        %v511 = vpop.f32.mrb[0].mxu0
        %v512 = vadd.f32 0.0, %v511
        %v513 = vpop.f32.mrb[0].mxu0
        %v514 = vpop.f32.mrb[0].mxu0
        %v515 = vadd.f32 0.0, %v514
        %v516 = vpop.f32.mrb[0].mxu0
        %517 = vdwg.mxu0
        %v519 = vsel %vm469, %v331, 0
        %v522 = vsel %vm473, %v468, 0
        %524 = vmatprep.subr.bf16.mxu0 0
        %525 = vmatpush1.bf16.msra.mxu0 %v522
        %526 = vmatprep.subr.bf16.mxu0 0
        %527 = vmatpush1.bf16.msra.mxu0 0
        %528 = vmatprep.subr.bf16.mxu0 0
        %529 = vmatpush1.bf16.msra.mxu0 0
        %530 = vmatprep.subr.bf16.mxu0 0
        %531 = vmatpush1.bf16.msra.mxu0 0
        %532 = vmatprep.subr.bf16.mxu0 0
        %533 = vmatpush1.bf16.msra.mxu0 0
        %534 = vmatprep.subr.bf16.mxu0 0
        %535 = vmatpush1.bf16.msra.mxu0 0
        %536 = vmatprep.subr.bf16.mxu0 0
        %537 = vmatpush1.bf16.msra.mxu0 0
        %538 = vmatprep.subr.bf16.mxu0 0
        %539 = vmatpush1.bf16.msra.mxu0 0
        %540 = vmatprep.subr.bf16.mxu0 0
        %541 = vmatpush1.bf16.msra.mxu0 0
        %542 = vmatprep.subr.bf16.mxu0 0
        %543 = vmatpush1.bf16.msra.mxu0 0
        %544 = vmatprep.subr.bf16.mxu0 0
        %545 = vmatpush1.bf16.msra.mxu0 0
        %546 = vmatprep.subr.bf16.mxu0 0
        %547 = vmatpush1.bf16.msra.mxu0 0
        %548 = vmatprep.subr.bf16.mxu0 0
        %549 = vmatpush1.bf16.msra.mxu0 0
        %550 = vmatprep.subr.bf16.mxu0 0
        %551 = vmatpush1.bf16.msra.mxu0 0
        %552 = vmatprep.subr.bf16.mxu0 0
        %553 = vmatpush1.bf16.msra.mxu0 0
        %554 = vmatprep.subr.bf16.mxu0 0
        %555 = vmatpush1.bf16.msra.mxu0 0
        %556 = vmatprep.mubr.bf16.mxu0 0
        %557 = vmatmul.mubr.bf16.gmra.mrb[0].mxu0 %v519
        %v558 = vpop.f32.mrb[0].mxu0
        %v559 = vadd.f32 0.0, %v558
        %v560 = vpop.f32.mrb[0].mxu0
        %v561 = vpop.f32.mrb[0].mxu0
        %v562 = vadd.f32 0.0, %v561
        %v563 = vpop.f32.mrb[0].mxu0
        %564 = vdwg.mxu0
        %565 = vst.msk [vmem:[%s209] sm:$0xff] %vm469, %v512
        %566 = vst.msk [vmem:[%s209 + $0x8] sm:$0xff] %vm469, %v515
        %567 = vst.msk [vmem:[%s209 + $0x10] sm:$0xff] %vm469, %v559
        %568 = vst.msk [vmem:[%s209 + $0x18] sm:$0xff] %vm469, %v562
        %v569 = vld [vmem:[#allocation2] sm:$0xff]
        %v570 = vld [vmem:[#allocation2 + $0x8] sm:$0xff]
        %572 = vrot.lane.b32.xlu0 %v569, 88
        %v573 = vpop.permute.xlu0 %572
        %575 = vxpose.xlu0.c.b16.start [1/8] %v573, 128
        %576 = vxpose.xlu0.c.b16.cont [2/8] 0, 128
        %577 = vxpose.xlu0.c.b16.cont [3/8] 0, 128
        %578 = vxpose.xlu0.c.b16.cont [4/8] 0, 128
        %579 = vxpose.xlu0.c.b16.cont [5/8] 0, 128
        %580 = vxpose.xlu0.c.b16.cont [6/8] 0, 128
        %581 = vxpose.xlu0.c.b16.cont [7/8] 0, 128
        %582 = vxpose.xlu0.c.b16.end [8/8] 0, 128
        %v583 = vpop.trf.xlu0
        %v584 = vpop.trf.xlu0
        %v585 = vpop.trf.xlu0
        %v586 = vpop.trf.xlu0
        %v587 = vpop.trf.xlu0
        %v588 = vpop.trf.xlu0
        %v589 = vpop.trf.xlu0
        %v590 = vpop.trf.xlu0
        %591 = vrot.lane.b32.xlu0 %v569, 56
        %v592 = vpop.permute.xlu0 %591
        %v595 = vsel %vm355, %v583, 0
        %597 = vmatprep.subr.bf16.mxu0 0
        %598 = vmatpush1.bf16.msra.mxu0 %v592
        %599 = vmatprep.subr.bf16.mxu0 0
        %600 = vmatpush1.bf16.msra.mxu0 0
        %601 = vmatprep.subr.bf16.mxu0 0
        %602 = vmatpush1.bf16.msra.mxu0 0
        %603 = vmatprep.subr.bf16.mxu0 0
        %604 = vmatpush1.bf16.msra.mxu0 0
        %605 = vmatprep.subr.bf16.mxu0 0
        %606 = vmatpush1.bf16.msra.mxu0 0
        %607 = vmatprep.subr.bf16.mxu0 0
        %608 = vmatpush1.bf16.msra.mxu0 0
        %609 = vmatprep.subr.bf16.mxu0 0
        %610 = vmatpush1.bf16.msra.mxu0 0
        %611 = vmatprep.subr.bf16.mxu0 0
        %612 = vmatpush1.bf16.msra.mxu0 0
        %613 = vmatprep.subr.bf16.mxu0 0
        %614 = vmatpush1.bf16.msra.mxu0 0
        %615 = vmatprep.subr.bf16.mxu0 0
        %616 = vmatpush1.bf16.msra.mxu0 0
        %617 = vmatprep.subr.bf16.mxu0 0
        %618 = vmatpush1.bf16.msra.mxu0 0
        %619 = vmatprep.subr.bf16.mxu0 0
        %620 = vmatpush1.bf16.msra.mxu0 0
        %621 = vmatprep.subr.bf16.mxu0 0
        %622 = vmatpush1.bf16.msra.mxu0 0
        %623 = vmatprep.subr.bf16.mxu0 0
        %624 = vmatpush1.bf16.msra.mxu0 0
        %625 = vmatprep.subr.bf16.mxu0 0
        %626 = vmatpush1.bf16.msra.mxu0 0
        %627 = vmatprep.subr.bf16.mxu0 0
        %628 = vmatpush1.bf16.msra.mxu0 0
        %629 = vmatprep.mubr.bf16.mxu0 0
        %630 = vmatmul.mubr.bf16.gmra.mrb[0].mxu0 %v595
        %v631 = vpop.f32.mrb[0].mxu0
        %v632 = vadd.f32 0.0, %v631
        %v633 = vpop.f32.mrb[0].mxu0
        %v634 = vpop.f32.mrb[0].mxu0
        %v635 = vpop.f32.mrb[0].mxu0
        %636 = vdwg.mxu0
        %638 = vrot.lane.b32.xlu0 %v570, 88
        %v639 = vpop.permute.xlu0 %638
        %641 = vxpose.xlu0.c.b16.start [1/8] %v639, 128
        %642 = vxpose.xlu0.c.b16.cont [2/8] 0, 128
        %643 = vxpose.xlu0.c.b16.cont [3/8] 0, 128
        %644 = vxpose.xlu0.c.b16.cont [4/8] 0, 128
        %645 = vxpose.xlu0.c.b16.cont [5/8] 0, 128
        %646 = vxpose.xlu0.c.b16.cont [6/8] 0, 128
        %647 = vxpose.xlu0.c.b16.cont [7/8] 0, 128
        %648 = vxpose.xlu0.c.b16.end [8/8] 0, 128
        %v649 = vpop.trf.xlu0
        %v650 = vpop.trf.xlu0
        %v651 = vpop.trf.xlu0
        %v652 = vpop.trf.xlu0
        %v653 = vpop.trf.xlu0
        %v654 = vpop.trf.xlu0
        %v655 = vpop.trf.xlu0
        %v656 = vpop.trf.xlu0
        %657 = vrot.lane.b32.xlu0 %v570, 56
        %v658 = vpop.permute.xlu0 %657
        %v661 = vsel %vm355, %v649, 0
        %663 = vmatprep.subr.bf16.mxu0 0
        %664 = vmatpush1.bf16.msra.mxu0 %v658
        %665 = vmatprep.subr.bf16.mxu0 0
        %666 = vmatpush1.bf16.msra.mxu0 0
        %667 = vmatprep.subr.bf16.mxu0 0
        %668 = vmatpush1.bf16.msra.mxu0 0
        %669 = vmatprep.subr.bf16.mxu0 0
        %670 = vmatpush1.bf16.msra.mxu0 0
        %671 = vmatprep.subr.bf16.mxu0 0
        %672 = vmatpush1.bf16.msra.mxu0 0
        %673 = vmatprep.subr.bf16.mxu0 0
        %674 = vmatpush1.bf16.msra.mxu0 0
        %675 = vmatprep.subr.bf16.mxu0 0
        %676 = vmatpush1.bf16.msra.mxu0 0
        %677 = vmatprep.subr.bf16.mxu0 0
        %678 = vmatpush1.bf16.msra.mxu0 0
        %679 = vmatprep.subr.bf16.mxu0 0
        %680 = vmatpush1.bf16.msra.mxu0 0
        %681 = vmatprep.subr.bf16.mxu0 0
        %682 = vmatpush1.bf16.msra.mxu0 0
        %683 = vmatprep.subr.bf16.mxu0 0
        %684 = vmatpush1.bf16.msra.mxu0 0
        %685 = vmatprep.subr.bf16.mxu0 0
        %686 = vmatpush1.bf16.msra.mxu0 0
        %687 = vmatprep.subr.bf16.mxu0 0
        %688 = vmatpush1.bf16.msra.mxu0 0
        %689 = vmatprep.subr.bf16.mxu0 0
        %690 = vmatpush1.bf16.msra.mxu0 0
        %691 = vmatprep.subr.bf16.mxu0 0
        %692 = vmatpush1.bf16.msra.mxu0 0
        %693 = vmatprep.subr.bf16.mxu0 0
        %694 = vmatpush1.bf16.msra.mxu0 0
        %695 = vmatprep.mubr.bf16.mxu0 0
        %696 = vmatmul.mubr.bf16.gmra.mrb[0].mxu0 %v661
        %v697 = vpop.f32.mrb[0].mxu0
        %v698 = vadd.f32 0.0, %v697
        %v699 = vpop.f32.mrb[0].mxu0
        %v700 = vpop.f32.mrb[0].mxu0
        %v701 = vpop.f32.mrb[0].mxu0
        %702 = vdwg.mxu0
        %v703 = vmul.f32 %v632, 0.125
        %v704 = vmul.f32 %v698, 0.125
        %v705 = vpack.c.bf16 %v703, %v703
        %v706 = vpack.c.bf16 %v704, %v704
        %707 = vrot.lane.b32.xlu0 %v569, 120
        %v708 = vpop.permute.xlu0 %707
        %v710 = vsel %vm469, %v708, 0
        %v713 = vsel %vm473, %v705, 0
        %715 = vmatprep.subr.bf16.mxu0 0
        %716 = vmatpush1.bf16.msra.mxu0 %v713
        %717 = vmatprep.subr.bf16.mxu0 0
        %718 = vmatpush1.bf16.msra.mxu0 0
        %719 = vmatprep.subr.bf16.mxu0 0
        %720 = vmatpush1.bf16.msra.mxu0 0
        %721 = vmatprep.subr.bf16.mxu0 0
        %722 = vmatpush1.bf16.msra.mxu0 0
        %723 = vmatprep.subr.bf16.mxu0 0
        %724 = vmatpush1.bf16.msra.mxu0 0
        %725 = vmatprep.subr.bf16.mxu0 0
        %726 = vmatpush1.bf16.msra.mxu0 0
        %727 = vmatprep.subr.bf16.mxu0 0
        %728 = vmatpush1.bf16.msra.mxu0 0
        %729 = vmatprep.subr.bf16.mxu0 0
        %730 = vmatpush1.bf16.msra.mxu0 0
        %731 = vmatprep.subr.bf16.mxu0 0
        %732 = vmatpush1.bf16.msra.mxu0 0
        %733 = vmatprep.subr.bf16.mxu0 0
        %734 = vmatpush1.bf16.msra.mxu0 0
        %735 = vmatprep.subr.bf16.mxu0 0
        %736 = vmatpush1.bf16.msra.mxu0 0
        %737 = vmatprep.subr.bf16.mxu0 0
        %738 = vmatpush1.bf16.msra.mxu0 0
        %739 = vmatprep.subr.bf16.mxu0 0
        %740 = vmatpush1.bf16.msra.mxu0 0
        %741 = vmatprep.subr.bf16.mxu0 0
        %742 = vmatpush1.bf16.msra.mxu0 0
        %743 = vmatprep.subr.bf16.mxu0 0
        %744 = vmatpush1.bf16.msra.mxu0 0
        %745 = vmatprep.subr.bf16.mxu0 0
        %746 = vmatpush1.bf16.msra.mxu0 0
        %747 = vmatprep.mubr.bf16.mxu0 0
        %748 = vmatmul.mubr.bf16.gmra.mrb[0].mxu0 %v710
        %v749 = vpop.f32.mrb[0].mxu0
        %v750 = vadd.f32 0.0, %v749
        %v751 = vpop.f32.mrb[0].mxu0
        %v752 = vpop.f32.mrb[0].mxu0
        %v753 = vadd.f32 0.0, %v752
        %v754 = vpop.f32.mrb[0].mxu0
        %755 = vdwg.mxu0
        %756 = vrot.lane.b32.xlu0 %v570, 120
        %v757 = vpop.permute.xlu0 %756
        %v759 = vsel %vm469, %v757, 0
        %v762 = vsel %vm473, %v706, 0
        %764 = vmatprep.subr.bf16.mxu0 0
        %765 = vmatpush1.bf16.msra.mxu0 %v762
        %766 = vmatprep.subr.bf16.mxu0 0
        %767 = vmatpush1.bf16.msra.mxu0 0
        %768 = vmatprep.subr.bf16.mxu0 0
        %769 = vmatpush1.bf16.msra.mxu0 0
        %770 = vmatprep.subr.bf16.mxu0 0
        %771 = vmatpush1.bf16.msra.mxu0 0
        %772 = vmatprep.subr.bf16.mxu0 0
        %773 = vmatpush1.bf16.msra.mxu0 0
        %774 = vmatprep.subr.bf16.mxu0 0
        %775 = vmatpush1.bf16.msra.mxu0 0
        %776 = vmatprep.subr.bf16.mxu0 0
        %777 = vmatpush1.bf16.msra.mxu0 0
        %778 = vmatprep.subr.bf16.mxu0 0
        %779 = vmatpush1.bf16.msra.mxu0 0
        %780 = vmatprep.subr.bf16.mxu0 0
        %781 = vmatpush1.bf16.msra.mxu0 0
        %782 = vmatprep.subr.bf16.mxu0 0
        %783 = vmatpush1.bf16.msra.mxu0 0
        %784 = vmatprep.subr.bf16.mxu0 0
        %785 = vmatpush1.bf16.msra.mxu0 0
        %786 = vmatprep.subr.bf16.mxu0 0
        %787 = vmatpush1.bf16.msra.mxu0 0
        %788 = vmatprep.subr.bf16.mxu0 0
        %789 = vmatpush1.bf16.msra.mxu0 0
        %790 = vmatprep.subr.bf16.mxu0 0
        %791 = vmatpush1.bf16.msra.mxu0 0
        %792 = vmatprep.subr.bf16.mxu0 0
        %793 = vmatpush1.bf16.msra.mxu0 0
        %794 = vmatprep.subr.bf16.mxu0 0
        %795 = vmatpush1.bf16.msra.mxu0 0
        %796 = vmatprep.mubr.bf16.mxu0 0
        %797 = vmatmul.mubr.bf16.gmra.mrb[0].mxu0 %v759
        %v798 = vpop.f32.mrb[0].mxu0
        %v799 = vadd.f32 0.0, %v798
        %v800 = vpop.f32.mrb[0].mxu0
        %v801 = vpop.f32.mrb[0].mxu0
        %v802 = vadd.f32 0.0, %v801
        %v803 = vpop.f32.mrb[0].mxu0
        %804 = vdwg.mxu0
        %809 = vrot.lane.b32.xlu0 %v750, 8
        %v810 = vpop.permute.xlu0 %809
        %811 = vrot.lane.b32.xlu0 %v753, 8
        %v812 = vpop.permute.xlu0 %811
        %813 = vrot.lane.b32.xlu0 %v799, 8
        %v814 = vpop.permute.xlu0 %813
        %815 = vrot.lane.b32.xlu0 %v802, 8
        %v816 = vpop.permute.xlu0 %815
        %vm821 = vcmask 130112
        %822 = vst.msk [vmem:[%s209] sm:$0xff] %vm821, %v810
        %823 = vst.msk [vmem:[%s209 + $0x8] sm:$0xff] %vm821, %v812
        %824 = vst.msk [vmem:[%s209 + $0x10] sm:$0xff] %vm821, %v814
        %825 = vst.msk [vmem:[%s209 + $0x18] sm:$0xff] %vm821, %v816
        %v826 = vld [vmem:[#allocation2] sm:$0xff]
        %v827 = vld [vmem:[#allocation2 + $0x8] sm:$0xff]
        %829 = vrot.lane.b32.xlu0 %v826, 80
        %v830 = vpop.permute.xlu0 %829
        %832 = vxpose.xlu0.c.b16.start [1/8] %v830, 128
        %833 = vxpose.xlu0.c.b16.cont [2/8] 0, 128
        %834 = vxpose.xlu0.c.b16.cont [3/8] 0, 128
        %835 = vxpose.xlu0.c.b16.cont [4/8] 0, 128
        %836 = vxpose.xlu0.c.b16.cont [5/8] 0, 128
        %837 = vxpose.xlu0.c.b16.cont [6/8] 0, 128
        %838 = vxpose.xlu0.c.b16.cont [7/8] 0, 128
        %839 = vxpose.xlu0.c.b16.end [8/8] 0, 128
        %v840 = vpop.trf.xlu0
        %v841 = vpop.trf.xlu0
        %v842 = vpop.trf.xlu0
        %v843 = vpop.trf.xlu0
        %v844 = vpop.trf.xlu0
        %v845 = vpop.trf.xlu0
        %v846 = vpop.trf.xlu0
        %v847 = vpop.trf.xlu0
        %848 = vrot.lane.b32.xlu0 %v826, 48
        %v849 = vpop.permute.xlu0 %848
        %v852 = vsel %vm355, %v840, 0
        %854 = vmatprep.subr.bf16.mxu0 0
        %855 = vmatpush1.bf16.msra.mxu0 %v849
        %856 = vmatprep.subr.bf16.mxu0 0
        %857 = vmatpush1.bf16.msra.mxu0 0
        %858 = vmatprep.subr.bf16.mxu0 0
        %859 = vmatpush1.bf16.msra.mxu0 0
        %860 = vmatprep.subr.bf16.mxu0 0
        %861 = vmatpush1.bf16.msra.mxu0 0
        %862 = vmatprep.subr.bf16.mxu0 0
        %863 = vmatpush1.bf16.msra.mxu0 0
        %864 = vmatprep.subr.bf16.mxu0 0
        %865 = vmatpush1.bf16.msra.mxu0 0
        %866 = vmatprep.subr.bf16.mxu0 0
        %867 = vmatpush1.bf16.msra.mxu0 0
        %868 = vmatprep.subr.bf16.mxu0 0
        %869 = vmatpush1.bf16.msra.mxu0 0
        %870 = vmatprep.subr.bf16.mxu0 0
        %871 = vmatpush1.bf16.msra.mxu0 0
        %872 = vmatprep.subr.bf16.mxu0 0
        %873 = vmatpush1.bf16.msra.mxu0 0
        %874 = vmatprep.subr.bf16.mxu0 0
        %875 = vmatpush1.bf16.msra.mxu0 0
        %876 = vmatprep.subr.bf16.mxu0 0
        %877 = vmatpush1.bf16.msra.mxu0 0
        %878 = vmatprep.subr.bf16.mxu0 0
        %879 = vmatpush1.bf16.msra.mxu0 0
        %880 = vmatprep.subr.bf16.mxu0 0
        %881 = vmatpush1.bf16.msra.mxu0 0
        %882 = vmatprep.subr.bf16.mxu0 0
        %883 = vmatpush1.bf16.msra.mxu0 0
        %884 = vmatprep.subr.bf16.mxu0 0
        %885 = vmatpush1.bf16.msra.mxu0 0
        %886 = vmatprep.mubr.bf16.mxu0 0
        %887 = vmatmul.mubr.bf16.gmra.mrb[0].mxu0 %v852
        %v888 = vpop.f32.mrb[0].mxu0
        %v889 = vadd.f32 0.0, %v888
        %v890 = vpop.f32.mrb[0].mxu0
        %v891 = vpop.f32.mrb[0].mxu0
        %v892 = vpop.f32.mrb[0].mxu0
        %893 = vdwg.mxu0
        %895 = vrot.lane.b32.xlu0 %v827, 80
        %v896 = vpop.permute.xlu0 %895
        %898 = vxpose.xlu0.c.b16.start [1/8] %v896, 128
        %899 = vxpose.xlu0.c.b16.cont [2/8] 0, 128
        %900 = vxpose.xlu0.c.b16.cont [3/8] 0, 128
        %901 = vxpose.xlu0.c.b16.cont [4/8] 0, 128
        %902 = vxpose.xlu0.c.b16.cont [5/8] 0, 128
        %903 = vxpose.xlu0.c.b16.cont [6/8] 0, 128
        %904 = vxpose.xlu0.c.b16.cont [7/8] 0, 128
        %905 = vxpose.xlu0.c.b16.end [8/8] 0, 128
        %v906 = vpop.trf.xlu0
        %v907 = vpop.trf.xlu0
        %v908 = vpop.trf.xlu0
        %v909 = vpop.trf.xlu0
        %v910 = vpop.trf.xlu0
        %v911 = vpop.trf.xlu0
        %v912 = vpop.trf.xlu0
        %v913 = vpop.trf.xlu0
        %914 = vrot.lane.b32.xlu0 %v827, 48
        %v915 = vpop.permute.xlu0 %914
        %v918 = vsel %vm355, %v906, 0
        %920 = vmatprep.subr.bf16.mxu0 0
        %921 = vmatpush1.bf16.msra.mxu0 %v915
        %922 = vmatprep.subr.bf16.mxu0 0
        %923 = vmatpush1.bf16.msra.mxu0 0
        %924 = vmatprep.subr.bf16.mxu0 0
        %925 = vmatpush1.bf16.msra.mxu0 0
        %926 = vmatprep.subr.bf16.mxu0 0
        %927 = vmatpush1.bf16.msra.mxu0 0
        %928 = vmatprep.subr.bf16.mxu0 0
        %929 = vmatpush1.bf16.msra.mxu0 0
        %930 = vmatprep.subr.bf16.mxu0 0
        %931 = vmatpush1.bf16.msra.mxu0 0
        %932 = vmatprep.subr.bf16.mxu0 0
        %933 = vmatpush1.bf16.msra.mxu0 0
        %934 = vmatprep.subr.bf16.mxu0 0
        %935 = vmatpush1.bf16.msra.mxu0 0
        %936 = vmatprep.subr.bf16.mxu0 0
        %937 = vmatpush1.bf16.msra.mxu0 0
        %938 = vmatprep.subr.bf16.mxu0 0
        %939 = vmatpush1.bf16.msra.mxu0 0
        %940 = vmatprep.subr.bf16.mxu0 0
        %941 = vmatpush1.bf16.msra.mxu0 0
        %942 = vmatprep.subr.bf16.mxu0 0
        %943 = vmatpush1.bf16.msra.mxu0 0
        %944 = vmatprep.subr.bf16.mxu0 0
        %945 = vmatpush1.bf16.msra.mxu0 0
        %946 = vmatprep.subr.bf16.mxu0 0
        %947 = vmatpush1.bf16.msra.mxu0 0
        %948 = vmatprep.subr.bf16.mxu0 0
        %949 = vmatpush1.bf16.msra.mxu0 0
        %950 = vmatprep.subr.bf16.mxu0 0
        %951 = vmatpush1.bf16.msra.mxu0 0
        %952 = vmatprep.mubr.bf16.mxu0 0
        %953 = vmatmul.mubr.bf16.gmra.mrb[0].mxu0 %v918
        %v954 = vpop.f32.mrb[0].mxu0
        %v955 = vadd.f32 0.0, %v954
        %v956 = vpop.f32.mrb[0].mxu0
        %v957 = vpop.f32.mrb[0].mxu0
        %v958 = vpop.f32.mrb[0].mxu0
        %959 = vdwg.mxu0
        %v960 = vmul.f32 %v889, 0.125
        %v961 = vmul.f32 %v955, 0.125
        %v962 = vpack.c.bf16 %v960, %v960
        %v963 = vpack.c.bf16 %v961, %v961
        %964 = vrot.lane.b32.xlu0 %v826, 112
        %v965 = vpop.permute.xlu0 %964
        %v967 = vsel %vm469, %v965, 0
        %v970 = vsel %vm473, %v962, 0
        %972 = vmatprep.subr.bf16.mxu0 0
        %973 = vmatpush1.bf16.msra.mxu0 %v970
        %974 = vmatprep.subr.bf16.mxu0 0
        %975 = vmatpush1.bf16.msra.mxu0 0
        %976 = vmatprep.subr.bf16.mxu0 0
        %977 = vmatpush1.bf16.msra.mxu0 0
        %978 = vmatprep.subr.bf16.mxu0 0
        %979 = vmatpush1.bf16.msra.mxu0 0
        %980 = vmatprep.subr.bf16.mxu0 0
        %981 = vmatpush1.bf16.msra.mxu0 0
        %982 = vmatprep.subr.bf16.mxu0 0
        %983 = vmatpush1.bf16.msra.mxu0 0
        %984 = vmatprep.subr.bf16.mxu0 0
        %985 = vmatpush1.bf16.msra.mxu0 0
        %986 = vmatprep.subr.bf16.mxu0 0
        %987 = vmatpush1.bf16.msra.mxu0 0
        %988 = vmatprep.subr.bf16.mxu0 0
        %989 = vmatpush1.bf16.msra.mxu0 0
        %990 = vmatprep.subr.bf16.mxu0 0
        %991 = vmatpush1.bf16.msra.mxu0 0
        %992 = vmatprep.subr.bf16.mxu0 0
        %993 = vmatpush1.bf16.msra.mxu0 0
        %994 = vmatprep.subr.bf16.mxu0 0
        %995 = vmatpush1.bf16.msra.mxu0 0
        %996 = vmatprep.subr.bf16.mxu0 0
        %997 = vmatpush1.bf16.msra.mxu0 0
        %998 = vmatprep.subr.bf16.mxu0 0
        %999 = vmatpush1.bf16.msra.mxu0 0
        %1000 = vmatprep.subr.bf16.mxu0 0
        %1001 = vmatpush1.bf16.msra.mxu0 0
        %1002 = vmatprep.subr.bf16.mxu0 0
        %1003 = vmatpush1.bf16.msra.mxu0 0
        %1004 = vmatprep.mubr.bf16.mxu0 0
        %1005 = vmatmul.mubr.bf16.gmra.mrb[0].mxu0 %v967
        %v1006 = vpop.f32.mrb[0].mxu0
        %v1007 = vadd.f32 0.0, %v1006
        %v1008 = vpop.f32.mrb[0].mxu0
        %v1009 = vpop.f32.mrb[0].mxu0
        %v1010 = vadd.f32 0.0, %v1009
        %v1011 = vpop.f32.mrb[0].mxu0
        %1012 = vdwg.mxu0
        %1013 = vrot.lane.b32.xlu0 %v827, 112
        %v1014 = vpop.permute.xlu0 %1013
        %v1016 = vsel %vm469, %v1014, 0
        %v1019 = vsel %vm473, %v963, 0
        %1021 = vmatprep.subr.bf16.mxu0 0
        %1022 = vmatpush1.bf16.msra.mxu0 %v1019
        %1023 = vmatprep.subr.bf16.mxu0 0
        %1024 = vmatpush1.bf16.msra.mxu0 0
        %1025 = vmatprep.subr.bf16.mxu0 0
        %1026 = vmatpush1.bf16.msra.mxu0 0
        %1027 = vmatprep.subr.bf16.mxu0 0
        %1028 = vmatpush1.bf16.msra.mxu0 0
        %1029 = vmatprep.subr.bf16.mxu0 0
        %1030 = vmatpush1.bf16.msra.mxu0 0
        %1031 = vmatprep.subr.bf16.mxu0 0
        %1032 = vmatpush1.bf16.msra.mxu0 0
        %1033 = vmatprep.subr.bf16.mxu0 0
        %1034 = vmatpush1.bf16.msra.mxu0 0
        %1035 = vmatprep.subr.bf16.mxu0 0
        %1036 = vmatpush1.bf16.msra.mxu0 0
        %1037 = vmatprep.subr.bf16.mxu0 0
        %1038 = vmatpush1.bf16.msra.mxu0 0
        %1039 = vmatprep.subr.bf16.mxu0 0
        %1040 = vmatpush1.bf16.msra.mxu0 0
        %1041 = vmatprep.subr.bf16.mxu0 0
        %1042 = vmatpush1.bf16.msra.mxu0 0
        %1043 = vmatprep.subr.bf16.mxu0 0
        %1044 = vmatpush1.bf16.msra.mxu0 0
        %1045 = vmatprep.subr.bf16.mxu0 0
        %1046 = vmatpush1.bf16.msra.mxu0 0
        %1047 = vmatprep.subr.bf16.mxu0 0
        %1048 = vmatpush1.bf16.msra.mxu0 0
        %1049 = vmatprep.subr.bf16.mxu0 0
        %1050 = vmatpush1.bf16.msra.mxu0 0
        %1051 = vmatprep.subr.bf16.mxu0 0
        %1052 = vmatpush1.bf16.msra.mxu0 0
        %1053 = vmatprep.mubr.bf16.mxu0 0
        %1054 = vmatmul.mubr.bf16.gmra.mrb[0].mxu0 %v1016
        %v1055 = vpop.f32.mrb[0].mxu0
        %v1056 = vadd.f32 0.0, %v1055
        %v1057 = vpop.f32.mrb[0].mxu0
        %v1058 = vpop.f32.mrb[0].mxu0
        %v1059 = vadd.f32 0.0, %v1058
        %v1060 = vpop.f32.mrb[0].mxu0
        %1061 = vdwg.mxu0
        %1066 = vrot.lane.b32.xlu0 %v1007, 16
        %v1067 = vpop.permute.xlu0 %1066
        %1068 = vrot.lane.b32.xlu0 %v1010, 16
        %v1069 = vpop.permute.xlu0 %1068
        %1070 = vrot.lane.b32.xlu0 %v1056, 16
        %v1071 = vpop.permute.xlu0 %1070
        %1072 = vrot.lane.b32.xlu0 %v1059, 16
        %v1073 = vpop.permute.xlu0 %1072
        %vm1078 = vcmask 195712
        %1079 = vst.msk [vmem:[%s209] sm:$0xff] %vm1078, %v1067
        %1080 = vst.msk [vmem:[%s209 + $0x8] sm:$0xff] %vm1078, %v1069
        %1081 = vst.msk [vmem:[%s209 + $0x10] sm:$0xff] %vm1078, %v1071
        %1082 = vst.msk [vmem:[%s209 + $0x18] sm:$0xff] %vm1078, %v1073
        %v1083 = vld [vmem:[#allocation2] sm:$0xff]
        %v1084 = vld [vmem:[#allocation2 + $0x8] sm:$0xff]
        %1086 = vrot.lane.b32.xlu0 %v1083, 72
        %v1087 = vpop.permute.xlu0 %1086
        %1089 = vxpose.xlu0.c.b16.start [1/8] %v1087, 128
        %1090 = vxpose.xlu0.c.b16.cont [2/8] 0, 128
        %1091 = vxpose.xlu0.c.b16.cont [3/8] 0, 128
        %1092 = vxpose.xlu0.c.b16.cont [4/8] 0, 128
        %1093 = vxpose.xlu0.c.b16.cont [5/8] 0, 128
        %1094 = vxpose.xlu0.c.b16.cont [6/8] 0, 128
        %1095 = vxpose.xlu0.c.b16.cont [7/8] 0, 128
        %1096 = vxpose.xlu0.c.b16.end [8/8] 0, 128
        %v1097 = vpop.trf.xlu0
        %v1098 = vpop.trf.xlu0
        %v1099 = vpop.trf.xlu0
        %v1100 = vpop.trf.xlu0
        %v1101 = vpop.trf.xlu0
        %v1102 = vpop.trf.xlu0
        %v1103 = vpop.trf.xlu0
        %v1104 = vpop.trf.xlu0
        %1105 = vrot.lane.b32.xlu0 %v1083, 40
        %v1106 = vpop.permute.xlu0 %1105
        %v1109 = vsel %vm355, %v1097, 0
        %1111 = vmatprep.subr.bf16.mxu0 0
        %1112 = vmatpush1.bf16.msra.mxu0 %v1106
        %1113 = vmatprep.subr.bf16.mxu0 0
        %1114 = vmatpush1.bf16.msra.mxu0 0
        %1115 = vmatprep.subr.bf16.mxu0 0
        %1116 = vmatpush1.bf16.msra.mxu0 0
        %1117 = vmatprep.subr.bf16.mxu0 0
        %1118 = vmatpush1.bf16.msra.mxu0 0
        %1119 = vmatprep.subr.bf16.mxu0 0
        %1120 = vmatpush1.bf16.msra.mxu0 0
        %1121 = vmatprep.subr.bf16.mxu0 0
        %1122 = vmatpush1.bf16.msra.mxu0 0
        %1123 = vmatprep.subr.bf16.mxu0 0
        %1124 = vmatpush1.bf16.msra.mxu0 0
        %1125 = vmatprep.subr.bf16.mxu0 0
        %1126 = vmatpush1.bf16.msra.mxu0 0
        %1127 = vmatprep.subr.bf16.mxu0 0
        %1128 = vmatpush1.bf16.msra.mxu0 0
        %1129 = vmatprep.subr.bf16.mxu0 0
        %1130 = vmatpush1.bf16.msra.mxu0 0
        %1131 = vmatprep.subr.bf16.mxu0 0
        %1132 = vmatpush1.bf16.msra.mxu0 0
        %1133 = vmatprep.subr.bf16.mxu0 0
        %1134 = vmatpush1.bf16.msra.mxu0 0
        %1135 = vmatprep.subr.bf16.mxu0 0
        %1136 = vmatpush1.bf16.msra.mxu0 0
        %1137 = vmatprep.subr.bf16.mxu0 0
        %1138 = vmatpush1.bf16.msra.mxu0 0
        %1139 = vmatprep.subr.bf16.mxu0 0
        %1140 = vmatpush1.bf16.msra.mxu0 0
        %1141 = vmatprep.subr.bf16.mxu0 0
        %1142 = vmatpush1.bf16.msra.mxu0 0
        %1143 = vmatprep.mubr.bf16.mxu0 0
        %1144 = vmatmul.mubr.bf16.gmra.mrb[0].mxu0 %v1109
        %v1145 = vpop.f32.mrb[0].mxu0
        %v1146 = vadd.f32 0.0, %v1145
        %v1147 = vpop.f32.mrb[0].mxu0
        %v1148 = vpop.f32.mrb[0].mxu0
        %v1149 = vpop.f32.mrb[0].mxu0
        %1150 = vdwg.mxu0
        %1152 = vrot.lane.b32.xlu0 %v1084, 72
        %v1153 = vpop.permute.xlu0 %1152
        %1155 = vxpose.xlu0.c.b16.start [1/8] %v1153, 128
        %1156 = vxpose.xlu0.c.b16.cont [2/8] 0, 128
        %1157 = vxpose.xlu0.c.b16.cont [3/8] 0, 128
        %1158 = vxpose.xlu0.c.b16.cont [4/8] 0, 128
        %1159 = vxpose.xlu0.c.b16.cont [5/8] 0, 128
        %1160 = vxpose.xlu0.c.b16.cont [6/8] 0, 128
        %1161 = vxpose.xlu0.c.b16.cont [7/8] 0, 128
        %1162 = vxpose.xlu0.c.b16.end [8/8] 0, 128
        %v1163 = vpop.trf.xlu0
        %v1164 = vpop.trf.xlu0
        %v1165 = vpop.trf.xlu0
        %v1166 = vpop.trf.xlu0
        %v1167 = vpop.trf.xlu0
        %v1168 = vpop.trf.xlu0
        %v1169 = vpop.trf.xlu0
        %v1170 = vpop.trf.xlu0
        %1171 = vrot.lane.b32.xlu0 %v1084, 40
        %v1172 = vpop.permute.xlu0 %1171
        %v1175 = vsel %vm355, %v1163, 0
        %1177 = vmatprep.subr.bf16.mxu0 0
        %1178 = vmatpush1.bf16.msra.mxu0 %v1172
        %1179 = vmatprep.subr.bf16.mxu0 0
        %1180 = vmatpush1.bf16.msra.mxu0 0
        %1181 = vmatprep.subr.bf16.mxu0 0
        %1182 = vmatpush1.bf16.msra.mxu0 0
        %1183 = vmatprep.subr.bf16.mxu0 0
        %1184 = vmatpush1.bf16.msra.mxu0 0
        %1185 = vmatprep.subr.bf16.mxu0 0
        %1186 = vmatpush1.bf16.msra.mxu0 0
        %1187 = vmatprep.subr.bf16.mxu0 0
        %1188 = vmatpush1.bf16.msra.mxu0 0
        %1189 = vmatprep.subr.bf16.mxu0 0
        %1190 = vmatpush1.bf16.msra.mxu0 0
        %1191 = vmatprep.subr.bf16.mxu0 0
        %1192 = vmatpush1.bf16.msra.mxu0 0
        %1193 = vmatprep.subr.bf16.mxu0 0
        %1194 = vmatpush1.bf16.msra.mxu0 0
        %1195 = vmatprep.subr.bf16.mxu0 0
        %1196 = vmatpush1.bf16.msra.mxu0 0
        %1197 = vmatprep.subr.bf16.mxu0 0
        %1198 = vmatpush1.bf16.msra.mxu0 0
        %1199 = vmatprep.subr.bf16.mxu0 0
        %1200 = vmatpush1.bf16.msra.mxu0 0
        %1201 = vmatprep.subr.bf16.mxu0 0
        %1202 = vmatpush1.bf16.msra.mxu0 0
        %1203 = vmatprep.subr.bf16.mxu0 0
        %1204 = vmatpush1.bf16.msra.mxu0 0
        %1205 = vmatprep.subr.bf16.mxu0 0
        %1206 = vmatpush1.bf16.msra.mxu0 0
        %1207 = vmatprep.subr.bf16.mxu0 0
        %1208 = vmatpush1.bf16.msra.mxu0 0
        %1209 = vmatprep.mubr.bf16.mxu0 0
        %1210 = vmatmul.mubr.bf16.gmra.mrb[0].mxu0 %v1175
        %v1211 = vpop.f32.mrb[0].mxu0
        %v1212 = vadd.f32 0.0, %v1211
        %v1213 = vpop.f32.mrb[0].mxu0
        %v1214 = vpop.f32.mrb[0].mxu0
        %v1215 = vpop.f32.mrb[0].mxu0
        %1216 = vdwg.mxu0
        %v1217 = vmul.f32 %v1146, 0.125
        %v1218 = vmul.f32 %v1212, 0.125
        %v1219 = vpack.c.bf16 %v1217, %v1217
        %v1220 = vpack.c.bf16 %v1218, %v1218
        %1221 = vrot.lane.b32.xlu0 %v1083, 104
        %v1222 = vpop.permute.xlu0 %1221
        %v1224 = vsel %vm469, %v1222, 0
        %v1227 = vsel %vm473, %v1219, 0
        %1229 = vmatprep.subr.bf16.mxu0 0
        %1230 = vmatpush1.bf16.msra.mxu0 %v1227
        %1231 = vmatprep.subr.bf16.mxu0 0
        %1232 = vmatpush1.bf16.msra.mxu0 0
        %1233 = vmatprep.subr.bf16.mxu0 0
        %1234 = vmatpush1.bf16.msra.mxu0 0
        %1235 = vmatprep.subr.bf16.mxu0 0
        %1236 = vmatpush1.bf16.msra.mxu0 0
        %1237 = vmatprep.subr.bf16.mxu0 0
        %1238 = vmatpush1.bf16.msra.mxu0 0
        %1239 = vmatprep.subr.bf16.mxu0 0
        %1240 = vmatpush1.bf16.msra.mxu0 0
        %1241 = vmatprep.subr.bf16.mxu0 0
        %1242 = vmatpush1.bf16.msra.mxu0 0
        %1243 = vmatprep.subr.bf16.mxu0 0
        %1244 = vmatpush1.bf16.msra.mxu0 0
        %1245 = vmatprep.subr.bf16.mxu0 0
        %1246 = vmatpush1.bf16.msra.mxu0 0
        %1247 = vmatprep.subr.bf16.mxu0 0
        %1248 = vmatpush1.bf16.msra.mxu0 0
        %1249 = vmatprep.subr.bf16.mxu0 0
        %1250 = vmatpush1.bf16.msra.mxu0 0
        %1251 = vmatprep.subr.bf16.mxu0 0
        %1252 = vmatpush1.bf16.msra.mxu0 0
        %1253 = vmatprep.subr.bf16.mxu0 0
        %1254 = vmatpush1.bf16.msra.mxu0 0
        %1255 = vmatprep.subr.bf16.mxu0 0
        %1256 = vmatpush1.bf16.msra.mxu0 0
        %1257 = vmatprep.subr.bf16.mxu0 0
        %1258 = vmatpush1.bf16.msra.mxu0 0
        %1259 = vmatprep.subr.bf16.mxu0 0
        %1260 = vmatpush1.bf16.msra.mxu0 0
        %1261 = vmatprep.mubr.bf16.mxu0 0
        %1262 = vmatmul.mubr.bf16.gmra.mrb[0].mxu0 %v1224
        %v1263 = vpop.f32.mrb[0].mxu0
        %v1264 = vadd.f32 0.0, %v1263
        %v1265 = vpop.f32.mrb[0].mxu0
        %v1266 = vpop.f32.mrb[0].mxu0
        %v1267 = vadd.f32 0.0, %v1266
        %v1268 = vpop.f32.mrb[0].mxu0
        %1269 = vdwg.mxu0
        %1270 = vrot.lane.b32.xlu0 %v1084, 104
        %v1271 = vpop.permute.xlu0 %1270
        %v1273 = vsel %vm469, %v1271, 0
        %v1276 = vsel %vm473, %v1220, 0
        %1278 = vmatprep.subr.bf16.mxu0 0
        %1279 = vmatpush1.bf16.msra.mxu0 %v1276
        %1280 = vmatprep.subr.bf16.mxu0 0
        %1281 = vmatpush1.bf16.msra.mxu0 0
        %1282 = vmatprep.subr.bf16.mxu0 0
        %1283 = vmatpush1.bf16.msra.mxu0 0
        %1284 = vmatprep.subr.bf16.mxu0 0
        %1285 = vmatpush1.bf16.msra.mxu0 0
        %1286 = vmatprep.subr.bf16.mxu0 0
        %1287 = vmatpush1.bf16.msra.mxu0 0
        %1288 = vmatprep.subr.bf16.mxu0 0
        %1289 = vmatpush1.bf16.msra.mxu0 0
        %1290 = vmatprep.subr.bf16.mxu0 0
        %1291 = vmatpush1.bf16.msra.mxu0 0
        %1292 = vmatprep.subr.bf16.mxu0 0
        %1293 = vmatpush1.bf16.msra.mxu0 0
        %1294 = vmatprep.subr.bf16.mxu0 0
        %1295 = vmatpush1.bf16.msra.mxu0 0
        %1296 = vmatprep.subr.bf16.mxu0 0
        %1297 = vmatpush1.bf16.msra.mxu0 0
        %1298 = vmatprep.subr.bf16.mxu0 0
        %1299 = vmatpush1.bf16.msra.mxu0 0
        %1300 = vmatprep.subr.bf16.mxu0 0
        %1301 = vmatpush1.bf16.msra.mxu0 0
        %1302 = vmatprep.subr.bf16.mxu0 0
        %1303 = vmatpush1.bf16.msra.mxu0 0
        %1304 = vmatprep.subr.bf16.mxu0 0
        %1305 = vmatpush1.bf16.msra.mxu0 0
        %1306 = vmatprep.subr.bf16.mxu0 0
        %1307 = vmatpush1.bf16.msra.mxu0 0
        %1308 = vmatprep.subr.bf16.mxu0 0
        %1309 = vmatpush1.bf16.msra.mxu0 0
        %1310 = vmatprep.mubr.bf16.mxu0 0
        %1311 = vmatmul.mubr.bf16.gmra.mrb[0].mxu0 %v1273
        %v1312 = vpop.f32.mrb[0].mxu0
        %v1313 = vadd.f32 0.0, %v1312
        %v1314 = vpop.f32.mrb[0].mxu0
        %v1315 = vpop.f32.mrb[0].mxu0
        %v1316 = vadd.f32 0.0, %v1315
        %v1317 = vpop.f32.mrb[0].mxu0
        %1318 = vdwg.mxu0
        %1323 = vrot.lane.b32.xlu0 %v1264, 24
        %v1324 = vpop.permute.xlu0 %1323
        %1325 = vrot.lane.b32.xlu0 %v1267, 24
        %v1326 = vpop.permute.xlu0 %1325
        %1327 = vrot.lane.b32.xlu0 %v1313, 24
        %v1328 = vpop.permute.xlu0 %1327
        %1329 = vrot.lane.b32.xlu0 %v1316, 24
        %v1330 = vpop.permute.xlu0 %1329
        %vm1335 = vcmask 261312
        %1336 = vst.msk [vmem:[%s209] sm:$0xff] %vm1335, %v1324
        %1337 = vst.msk [vmem:[%s209 + $0x8] sm:$0xff] %vm1335, %v1326
        %1338 = vst.msk [vmem:[%s209 + $0x10] sm:$0xff] %vm1335, %v1328
        %1339 = vst.msk [vmem:[%s209 + $0x18] sm:$0xff] %vm1335, %v1330
        %s1340 = sand.u32 %s93, 1
        %s1341 = sand.u32 %s93, 1
        %s1342 = smul.addr %s1341, 32
        %s1343 = scalar_lea.vmem [#allocation5], %s1342
        // Predicated region
        $region37: #{block_forward.4} parent=31 // pred_check
          %p1344 = pneg %p103
        $region38: #{block_forward.4} parent=31 // pred_check_branch
          %1346 = sbr.rel (%p1344) target = $region40
        $region39: #{block_forward.4} parent=31 // pred_region
          %s1347 = smul.u32 2, %s17
          %s1348 = smul.addr %s1347, 8
          %s1349 = scalar_lea.vmem %s3, %s1348
          // Predicated region
          $region41: #{block_forward.4} parent=39 // pred_check
            _
          $region42: #{block_forward.4} parent=39 // pred_check_branch
            %1351 = sbr.rel (0) target = $region44
          $region43: #{block_forward.4} parent=39 // pred_region
            // Predicated region
            $region45: #{block_forward.4} parent=43 // pred_check
              _
            $region46: #{block_forward.4} parent=43 // pred_check_branch
              %1353 = sbr.rel (0) target = $region48
            $region47: #{block_forward.4} parent=43 // pred_region
              // Predicated region
              $region60: #{block_forward.4} parent=47 // pred_check
                _
              $region61: #{block_forward.4} parent=47 // pred_check_branch
                %1374 = sbr.rel (0) target = $region63
              $region62: #{block_forward.4} parent=47 // pred_region
                loop: start=0, step=1, limit=1
                $region64: #{block_forward.4} parent=62 // loop_pre_header
                  _
                $region65: #{block_forward.4} parent=62 // loop_header
                  %s1376 = sphi 0, %s1380
                  %p1377 = scmp.ge.s32.totalorder %s1376, 1
                  %s1381 = sphi %s1343, %s1343
                  %s1382 = sphi %s1349, %s1349
                $region66: #{block_forward.4} parent=62 // loop_header_branch
                  %1379 = sbr.rel (%p1377) target = $region70
                $region67: #{block_forward.4} parent=62 // loop_body
                  %v1383 = vld [vmem:[%s1381] sm:$0xff]
                  %1384 = vst [vmem:[%s1382] sm:$0xff] %v1383
                  %v1385 = vld [vmem:[%s1381 + $0x8] sm:$0xff]
                  %1386 = vst [vmem:[%s1382 + $0x8] sm:$0xff] %v1385
                  %v1387 = vld [vmem:[%s1381 + $0x10] sm:$0xff]
                  %1388 = vst [vmem:[%s1382 + $0x20] sm:$0xff] %v1387
                  %v1389 = vld [vmem:[%s1381 + $0x18] sm:$0xff]
                  %1390 = vst [vmem:[%s1382 + $0x28] sm:$0xff] %v1389
                $region68: #{block_forward.4} parent=62 // loop_footer
                  %s1380 = sadd.s32 1, %s1376
                $region69: #{block_forward.4} parent=62 // loop_footer_branch
                  %1375 = sbr.rel target = $region65
                $region70: #{block_forward.4} parent=62 // loop_exit
                  _
              $region63: #{block_forward.4} parent=47 // pred_fallthru
                _
              // Predicated region
              $region71: #{block_forward.4} parent=47 // pred_check
                _
              $region72: #{block_forward.4} parent=47 // pred_check_branch
                %1392 = sbr.rel target = $region74
              $region73: #{block_forward.4} parent=47 // pred_region
                _
              $region74: #{block_forward.4} parent=47 // pred_fallthru
                _
            $region48: #{block_forward.4} parent=43 // pred_fallthru
              _
            // Predicated region
            $region49: #{block_forward.4} parent=43 // pred_check
              _
            $region50: #{block_forward.4} parent=43 // pred_check_branch
              %1355 = sbr.rel target = $region52
            $region51: #{block_forward.4} parent=43 // pred_region
              loop: start=0, step=1, limit=1
              $region53: #{block_forward.4} parent=51 // loop_pre_header
                _
              $region54: #{block_forward.4} parent=51 // loop_header
                %s1358 = sphi 0, %s1362
                %p1359 = scmp.ge.s32.totalorder %s1358, 1
                %s1363 = sphi %s1343, %s1343
                %s1364 = sphi %s1349, %s1349
              $region55: #{block_forward.4} parent=51 // loop_header_branch
                %1361 = sbr.rel (%p1359) target = $region59
              $region56: #{block_forward.4} parent=51 // loop_body
                %v1365 = vld [vmem:[%s1363] sm:$0xff]
                %1366 = vst [vmem:[%s1364] sm:$0xff] %v1365
                %v1367 = vld [vmem:[%s1363 + $0x8] sm:$0xff]
                %1368 = vst [vmem:[%s1364 + $0x8] sm:$0xff] %v1367
                %v1369 = vld [vmem:[%s1363 + $0x10] sm:$0xff]
                %1370 = vst [vmem:[%s1364 + $0x20] sm:$0xff] %v1369
                %v1371 = vld [vmem:[%s1363 + $0x18] sm:$0xff]
                %1372 = vst [vmem:[%s1364 + $0x28] sm:$0xff] %v1371
              $region57: #{block_forward.4} parent=51 // loop_footer
                %s1362 = sadd.s32 1, %s1358
              $region58: #{block_forward.4} parent=51 // loop_footer_branch
                %1357 = sbr.rel target = $region54
              $region59: #{block_forward.4} parent=51 // loop_exit
                _
            $region52: #{block_forward.4} parent=43 // pred_fallthru
              _
          $region44: #{block_forward.4} parent=39 // pred_fallthru
            _
          %1393 = vnop
        $region40: #{block_forward.4} parent=31 // pred_fallthru
          _
      $region32: #{block_forward.4} parent=5 // pred_fallthru
        _
      %p1394 = scmp.le.s32.totalorder 2, %s12
      // Predicated region
      $region75: #{block_forward.4} parent=5 // pred_check
        %p1395 = pneg %p1394
      $region76: #{block_forward.4} parent=5 // pred_check_branch
        %1397 = sbr.rel (%p1395) target = $region78
      $region77: #{block_forward.4} parent=5 // pred_region
        %s1398 = ssub.s32 %s12, 2
        // Predicated region
        $region79: #{block_forward.4} parent=77 // pred_check
          %p1399 = pneg %p109
        $region80: #{block_forward.4} parent=77 // pred_check_branch
          %1401 = sbr.rel (%p1399) target = $region82
        $region81: #{block_forward.4} parent=77 // pred_region
          %s1402 = sand.u32 %s94, 1
          %s1403 = sand.u32 %s94, 1
          %s1404 = smul.addr %s1403, 32
          %s1405 = scalar_lea.vmem [#allocation5], %s1404
        $region82: #{block_forward.4} parent=77 // pred_fallthru
          _
      $region78: #{block_forward.4} parent=5 // pred_fallthru
        _
    $region6: #{block_forward.4} parent=1 // loop_footer
      %s16 = sadd.s32 1, %s12
    $region7: #{block_forward.4} parent=1 // loop_footer_branch
      %11 = sbr.rel target = $region3
    $region8: #{block_forward.4} parent=1 // loop_exit
      _
    %1406 = vsyncpa [#allocation4], 1
    %s1407 = scalar_lea.sflag [#allocation4], 1
    %1408 = vsyncpa %s1407, 1

// kernel: block_forward.7
$region0: #{block_forward.7}
  #allocation0 [shape = 'u32[]', space=smem, size = 0x4, offset = 0x4, fixed_abs, tag = 'smem constant byte address 0x4 - core index']
  #allocation1 [shape = 'u32[144,128]{1,0:T(1,128)}', space=vmem, size = 0x12000, scoped, tag = 'internal scratch']
  #allocation6 [shape = 's32[]', space=sflag, size = 0x4, offset = 0, fixed_abs, tag = 'sflag constant byte address 0x0 - dummy sync flag']
  %s0 = inlined_call_operand.vmem [shape: bf16[2,32,128], index: 0, kind: input, shape index: {}]
  %s1 = inlined_call_operand.vmem [shape: bf16[128,32], index: 1, kind: input, shape index: {}]
  %s2 = inlined_call_operand.vmem [shape: f32[1,32], index: 2, kind: input, shape index: {}]
  %s3 = inlined_call_operand.vmem [shape: f32[2,32,32], index: 3, kind: input, shape index: {}]
  %s4 = inlined_call_operand.hbm [shape: f32[2,32,32], index: 4, kind: output, shape index: {}]
  %s5 = sld [smem:[#allocation0]]
  $region128: #{block_forward.7} parent=0
    _
  %s7 = ssub.s32 1, %s5
  %s8 = scalar_select 0, %s7, %s5
  $region1: #{block_forward.7} parent=0
    #allocation2 [shape = 'u8[16384]{0}', space=vmem, size = 0x4000, scoped, tag = 'input window, operand 0']
    #allocation3 [shape = 'u8[32768]{0}', space=vmem, size = 0x8000, scoped, tag = 'input window, operand 3']
    #allocation4 [shape = 'u8[32768]{0}', space=vmem, size = 0x8000, scoped, tag = 'output window, operand 0']
    #allocation5 [shape = 's32[2]{0}', space=sflag, size = 0x8, scoped, tag = 'scoped memory for block_forward.7']
    %9 = vsyncpa [#allocation5], 0
    %s10 = scalar_lea.sflag [#allocation5], 1
    %11 = vsyncpa %s10, 0
    loop: start=0, step=1, limit=4
    $region2: #{block_forward.7} parent=1 // loop_pre_header
      _
    $region3: #{block_forward.7} parent=1 // loop_header
      %s13 = sphi 0, %s17
      %p14 = scmp.ge.s32.totalorder %s13, 4
      %s23 = sphi 0, %s25
      %s26 = sphi 0, %s23
      %s27 = sphi 0, %s26
      %s43 = sphi 0, %s27
      %s47 = sphi 0, %s47
      %s49 = sphi 0, %s47
      %s50 = sphi 0, %s49
      %s64 = sphi 0, %s50
      %s68 = sphi 0, %s68
      %s70 = sphi 0, %s68
      %s71 = sphi 0, %s70
      %s85 = sphi 0, %s71
      %s91 = sphi 0, %s93
      %s94 = sphi 0, %s91
      %s95 = sphi 0, %s94
      %s111 = sphi 0, %s95
      %s117 = sphi 0, %s119
      %s120 = sphi 0, %s117
      %s121 = sphi 0, %s120
      %s137 = sphi 0, %s121
    $region4: #{block_forward.7} parent=1 // loop_header_branch
      %16 = sbr.rel (%p14) target = $region8
    $region5: #{block_forward.7} parent=1 // loop_body
      %s18 = ssub.s32 %s13, 1
      %s19 = ssub.s32 %s13, 2
      %s20 = sadd.s32 %s13, 1
      %s21 = ssub.s32 %s13, %s20
      %p22 = scmp.eq.s32.totalorder %s21, 0
      %s24 = sadd.s32 %s23, 1
      %s25 = scalar_select %p22, %s23, %s24
      %p28 = pneg %p22
      %p29 = scmp.eq.s32.totalorder %s13, 1
      %p30 = por %p28, %p29
      %p31 = scmp.ne.s32.totalorder %s23, %s26
      %p32 = scmp.eq.s32.totalorder %s13, 0
      %p33 = por %p31, %p32
      %p34 = scmp.ne.s32.totalorder %s23, %s26
      %p35 = scmp.eq.s32.totalorder %s18, 1
      %p36 = por %p34, %p35
      %p37 = scmp.ne.s32.totalorder %s26, %s27
      %p38 = scmp.eq.s32.totalorder %s18, 0
      %p39 = por %p37, %p38
      %p40 = scmp.ne.s32.totalorder %s26, %s27
      %p41 = scmp.eq.s32.totalorder %s19, 1
      %p42 = por %p40, %p41
      %p44 = scmp.ne.s32.totalorder %s27, %s43
      %p45 = scmp.eq.s32.totalorder %s19, 0
      %p46 = por %p44, %p45
      %s48 = sadd.s32 %s47, 1
      %p51 = scmp.eq.s32.totalorder %s13, 1
      %p52 = scmp.ne.s32.totalorder %s47, %s49
      %p53 = scmp.eq.s32.totalorder %s13, 0
      %p54 = por %p52, %p53
      %p55 = scmp.ne.s32.totalorder %s47, %s49
      %p56 = scmp.eq.s32.totalorder %s18, 1
      %p57 = por %p55, %p56
      %p58 = scmp.ne.s32.totalorder %s49, %s50
      %p59 = scmp.eq.s32.totalorder %s18, 0
      %p60 = por %p58, %p59
      %p61 = scmp.ne.s32.totalorder %s49, %s50
      %p62 = scmp.eq.s32.totalorder %s19, 1
      %p63 = por %p61, %p62
      %p65 = scmp.ne.s32.totalorder %s50, %s64
      %p66 = scmp.eq.s32.totalorder %s19, 0
      %p67 = por %p65, %p66
      %s69 = sadd.s32 %s68, 1
      %p72 = scmp.eq.s32.totalorder %s13, 1
      %p73 = scmp.ne.s32.totalorder %s68, %s70
      %p74 = scmp.eq.s32.totalorder %s13, 0
      %p75 = por %p73, %p74
      %p76 = scmp.ne.s32.totalorder %s68, %s70
      %p77 = scmp.eq.s32.totalorder %s18, 1
      %p78 = por %p76, %p77
      %p79 = scmp.ne.s32.totalorder %s70, %s71
      %p80 = scmp.eq.s32.totalorder %s18, 0
      %p81 = por %p79, %p80
      %p82 = scmp.ne.s32.totalorder %s70, %s71
      %p83 = scmp.eq.s32.totalorder %s19, 1
      %p84 = por %p82, %p83
      %p86 = scmp.ne.s32.totalorder %s71, %s85
      %p87 = scmp.eq.s32.totalorder %s19, 0
      %p88 = por %p86, %p87
      %s89 = ssub.s32 %s13, %s20
      %p90 = scmp.eq.s32.totalorder %s89, 0
      %s92 = sadd.s32 %s91, 1
      %s93 = scalar_select %p90, %s91, %s92
      %p96 = pneg %p90
      %p97 = scmp.eq.s32.totalorder %s13, 1
      %p98 = por %p96, %p97
      %p99 = scmp.ne.s32.totalorder %s91, %s94
      %p100 = scmp.eq.s32.totalorder %s13, 0
      %p101 = por %p99, %p100
      %p102 = scmp.ne.s32.totalorder %s91, %s94
      %p103 = scmp.eq.s32.totalorder %s18, 1
      %p104 = por %p102, %p103
      %p105 = scmp.ne.s32.totalorder %s94, %s95
      %p106 = scmp.eq.s32.totalorder %s18, 0
      %p107 = por %p105, %p106
      %p108 = scmp.ne.s32.totalorder %s94, %s95
      %p109 = scmp.eq.s32.totalorder %s19, 1
      %p110 = por %p108, %p109
      %p112 = scmp.ne.s32.totalorder %s95, %s111
      %p113 = scmp.eq.s32.totalorder %s19, 0
      %p114 = por %p112, %p113
      %s115 = ssub.s32 %s13, %s20
      %p116 = scmp.eq.s32.totalorder %s115, 0
      %s118 = sadd.s32 %s117, 1
      %s119 = scalar_select %p116, %s117, %s118
      %p122 = pneg %p116
      %p123 = scmp.eq.s32.totalorder %s13, 1
      %p124 = por %p122, %p123
      %p125 = scmp.ne.s32.totalorder %s117, %s120
      %p126 = scmp.eq.s32.totalorder %s13, 0
      %p127 = por %p125, %p126
      %p128 = scmp.ne.s32.totalorder %s117, %s120
      %p129 = scmp.eq.s32.totalorder %s18, 1
      %p130 = por %p128, %p129
      %p131 = scmp.ne.s32.totalorder %s120, %s121
      %p132 = scmp.eq.s32.totalorder %s18, 0
      %p133 = por %p131, %p132
      %p134 = scmp.ne.s32.totalorder %s120, %s121
      %p135 = scmp.eq.s32.totalorder %s19, 1
      %p136 = por %p134, %p135
      %p138 = scmp.ne.s32.totalorder %s121, %s137
      %p139 = scmp.eq.s32.totalorder %s19, 0
      %p140 = por %p138, %p139
      %p141 = scmp.le.s32.totalorder 1, %s13
      %p142 = scmp.lt.s32.totalorder %s13, 3
      %p143 = pnand %p141, %p142
      %p144 = pneg %p143
      // Predicated region
      $region9: #{block_forward.7} parent=5 // pred_check
        _
      $region10: #{block_forward.7} parent=5 // pred_check_branch
        %146 = sbr.rel (%p143) target = $region12
      $region11: #{block_forward.7} parent=5 // pred_region
        %s147 = ssub.s32 %s13, 1
        // Predicated region
        $region13: #{block_forward.7} parent=11 // pred_check
          %p148 = pneg %p60
        $region14: #{block_forward.7} parent=11 // pred_check_branch
          %150 = sbr.rel (%p148) target = $region16
        $region15: #{block_forward.7} parent=11 // pred_region
          _
        $region16: #{block_forward.7} parent=11 // pred_fallthru
          _
        // Predicated region
        $region17: #{block_forward.7} parent=11 // pred_check
          %p151 = pneg %p81
        $region18: #{block_forward.7} parent=11 // pred_check_branch
          %153 = sbr.rel (%p151) target = $region20
        $region19: #{block_forward.7} parent=11 // pred_region
          _
        $region20: #{block_forward.7} parent=11 // pred_fallthru
          _
      $region12: #{block_forward.7} parent=5 // pred_fallthru
        _
      %p154 = scmp.lt.s32.totalorder %s13, 2
      // Predicated region
      $region21: #{block_forward.7} parent=5 // pred_check
        %p155 = pneg %p154
      $region22: #{block_forward.7} parent=5 // pred_check_branch
        %157 = sbr.rel (%p155) target = $region24
      $region23: #{block_forward.7} parent=5 // pred_region
        // Predicated region
        $region25: #{block_forward.7} parent=23 // pred_check
          %p158 = pneg %p33
        $region26: #{block_forward.7} parent=23 // pred_check_branch
          %160 = sbr.rel (%p158) target = $region28
        $region27: #{block_forward.7} parent=23 // pred_region
          %s161 = sand.u32 %s23, 1
          %s162 = sand.u32 %s23, 1
          %s163 = smul.addr %s162, 16
          %s164 = scalar_lea.vmem [#allocation2], %s163
          %s165 = smul.u32 2, %s13
          %s166 = smul.addr %s165, 4
          %s167 = scalar_lea.vmem %s0, %s166
          // Predicated region
          $region29: #{block_forward.7} parent=27 // pred_check
            _
          $region30: #{block_forward.7} parent=27 // pred_check_branch
            %169 = sbr.rel (0) target = $region32
          $region31: #{block_forward.7} parent=27 // pred_region
            // Predicated region
            $region33: #{block_forward.7} parent=31 // pred_check
              _
            $region34: #{block_forward.7} parent=31 // pred_check_branch
              %171 = sbr.rel target = $region36
            $region35: #{block_forward.7} parent=31 // pred_region
              // Predicated region
              $region48: #{block_forward.7} parent=35 // pred_check
                _
              $region49: #{block_forward.7} parent=35 // pred_check_branch
                %192 = sbr.rel (0) target = $region51
              $region50: #{block_forward.7} parent=35 // pred_region
                loop: start=0, step=1, limit=1
                $region52: #{block_forward.7} parent=50 // loop_pre_header
                  _
                $region53: #{block_forward.7} parent=50 // loop_header
                  %s194 = sphi 0, %s198
                  %p195 = scmp.ge.s32.totalorder %s194, 1
                  %s199 = sphi %s167, %s167
                  %s200 = sphi %s164, %s164
                $region54: #{block_forward.7} parent=50 // loop_header_branch
                  %197 = sbr.rel (%p195) target = $region58
                $region55: #{block_forward.7} parent=50 // loop_body
                  _
                $region56: #{block_forward.7} parent=50 // loop_footer
                  %s198 = sadd.s32 1, %s194
                $region57: #{block_forward.7} parent=50 // loop_footer_branch
                  %193 = sbr.rel target = $region53
                $region58: #{block_forward.7} parent=50 // loop_exit
                  _
                loop: start=0, step=1, limit=1
                $region59: #{block_forward.7} parent=50 // loop_pre_header
                  _
                $region60: #{block_forward.7} parent=50 // loop_header
                  %s203 = sphi 0, %s207
                  %p204 = scmp.ge.s32.totalorder %s203, 1
                  %s208 = sphi %s167, %s167
                  %s209 = sphi %s164, %s164
                $region61: #{block_forward.7} parent=50 // loop_header_branch
                  %206 = sbr.rel (%p204) target = $region65
                $region62: #{block_forward.7} parent=50 // loop_body
                  %v210 = vld [vmem:[%s208] sm:$0xf]
                  %211 = vst [vmem:[%s209] sm:$0xf] %v210
                  %v212 = vld [vmem:[%s208 + $0x4] sm:$0xf]
                  %213 = vst [vmem:[%s209 + $0x4] sm:$0xf] %v212
                  %v214 = vld [vmem:[%s208 + $0x10] sm:$0xf]
                  %215 = vst [vmem:[%s209 + $0x8] sm:$0xf] %v214
                  %v216 = vld [vmem:[%s208 + $0x14] sm:$0xf]
                  %217 = vst [vmem:[%s209 + $0xc] sm:$0xf] %v216
                $region63: #{block_forward.7} parent=50 // loop_footer
                  %s207 = sadd.s32 1, %s203
                $region64: #{block_forward.7} parent=50 // loop_footer_branch
                  %202 = sbr.rel target = $region60
                $region65: #{block_forward.7} parent=50 // loop_exit
                  _
              $region51: #{block_forward.7} parent=35 // pred_fallthru
                _
            $region36: #{block_forward.7} parent=31 // pred_fallthru
              _
            // Predicated region
            $region37: #{block_forward.7} parent=31 // pred_check
              _
            $region38: #{block_forward.7} parent=31 // pred_check_branch
              %173 = sbr.rel (0) target = $region40
            $region39: #{block_forward.7} parent=31 // pred_region
              loop: start=0, step=1, limit=1
              $region41: #{block_forward.7} parent=39 // loop_pre_header
                _
              $region42: #{block_forward.7} parent=39 // loop_header
                %s176 = sphi 0, %s180
                %p177 = scmp.ge.s32.totalorder %s176, 1
                %s181 = sphi %s167, %s167
                %s182 = sphi %s164, %s164
              $region43: #{block_forward.7} parent=39 // loop_header_branch
                %179 = sbr.rel (%p177) target = $region47
              $region44: #{block_forward.7} parent=39 // loop_body
                %v183 = vld [vmem:[%s181] sm:$0xf]
                %184 = vst [vmem:[%s182] sm:$0xf] %v183
                %v185 = vld [vmem:[%s181 + $0x4] sm:$0xf]
                %186 = vst [vmem:[%s182 + $0x4] sm:$0xf] %v185
                %v187 = vld [vmem:[%s181 + $0x10] sm:$0xf]
                %188 = vst [vmem:[%s182 + $0x8] sm:$0xf] %v187
                %v189 = vld [vmem:[%s181 + $0x14] sm:$0xf]
                %190 = vst [vmem:[%s182 + $0xc] sm:$0xf] %v189
              $region45: #{block_forward.7} parent=39 // loop_footer
                %s180 = sadd.s32 1, %s176
              $region46: #{block_forward.7} parent=39 // loop_footer_branch
                %175 = sbr.rel target = $region42
              $region47: #{block_forward.7} parent=39 // loop_exit
                _
            $region40: #{block_forward.7} parent=31 // pred_fallthru
              _
          $region32: #{block_forward.7} parent=27 // pred_fallthru
            _
          %218 = vnop
        $region28: #{block_forward.7} parent=23 // pred_fallthru
          _
        // Predicated region
        $region66: #{block_forward.7} parent=23 // pred_check
          %p219 = pneg %p101
        $region67: #{block_forward.7} parent=23 // pred_check_branch
          %221 = sbr.rel (%p219) target = $region69
        $region68: #{block_forward.7} parent=23 // pred_region
          %s222 = sand.u32 %s91, 1
          %s223 = sand.u32 %s91, 1
          %s224 = smul.addr %s223, 32
          %s225 = scalar_lea.vmem [#allocation3], %s224
          %s226 = smul.u32 2, %s13
          %s227 = smul.addr %s226, 8
          %s228 = scalar_lea.vmem %s3, %s227
          // Predicated region
          $region70: #{block_forward.7} parent=68 // pred_check
            _
          $region71: #{block_forward.7} parent=68 // pred_check_branch
            %230 = sbr.rel (0) target = $region73
          $region72: #{block_forward.7} parent=68 // pred_region
            // Predicated region
            $region74: #{block_forward.7} parent=72 // pred_check
              _
            $region75: #{block_forward.7} parent=72 // pred_check_branch
              %232 = sbr.rel (0) target = $region77
            $region76: #{block_forward.7} parent=72 // pred_region
              // Predicated region
              $region89: #{block_forward.7} parent=76 // pred_check
                _
              $region90: #{block_forward.7} parent=76 // pred_check_branch
                %253 = sbr.rel (0) target = $region92
              $region91: #{block_forward.7} parent=76 // pred_region
                loop: start=0, step=1, limit=1
                $region93: #{block_forward.7} parent=91 // loop_pre_header
                  _
                $region94: #{block_forward.7} parent=91 // loop_header
                  %s255 = sphi 0, %s259
                  %p256 = scmp.ge.s32.totalorder %s255, 1
                  %s260 = sphi %s228, %s228
                  %s261 = sphi %s225, %s225
                $region95: #{block_forward.7} parent=91 // loop_header_branch
                  %258 = sbr.rel (%p256) target = $region99
                $region96: #{block_forward.7} parent=91 // loop_body
                  %v262 = vld [vmem:[%s260] sm:$0xff]
                  %263 = vst [vmem:[%s261] sm:$0xff] %v262
                  %v264 = vld [vmem:[%s260 + $0x8] sm:$0xff]
                  %265 = vst [vmem:[%s261 + $0x8] sm:$0xff] %v264
                  %v266 = vld [vmem:[%s260 + $0x20] sm:$0xff]
                  %267 = vst [vmem:[%s261 + $0x10] sm:$0xff] %v266
                  %v268 = vld [vmem:[%s260 + $0x28] sm:$0xff]
                  %269 = vst [vmem:[%s261 + $0x18] sm:$0xff] %v268
                $region97: #{block_forward.7} parent=91 // loop_footer
                  %s259 = sadd.s32 1, %s255
                $region98: #{block_forward.7} parent=91 // loop_footer_branch
                  %254 = sbr.rel target = $region94
                $region99: #{block_forward.7} parent=91 // loop_exit
                  _
              $region92: #{block_forward.7} parent=76 // pred_fallthru
                _
              // Predicated region
              $region100: #{block_forward.7} parent=76 // pred_check
                _
              $region101: #{block_forward.7} parent=76 // pred_check_branch
                %271 = sbr.rel target = $region103
              $region102: #{block_forward.7} parent=76 // pred_region
                _
              $region103: #{block_forward.7} parent=76 // pred_fallthru
                _
            $region77: #{block_forward.7} parent=72 // pred_fallthru
              _
            // Predicated region
            $region78: #{block_forward.7} parent=72 // pred_check
              _
            $region79: #{block_forward.7} parent=72 // pred_check_branch
              %234 = sbr.rel target = $region81
            $region80: #{block_forward.7} parent=72 // pred_region
              loop: start=0, step=1, limit=1
              $region82: #{block_forward.7} parent=80 // loop_pre_header
                _
              $region83: #{block_forward.7} parent=80 // loop_header
                %s237 = sphi 0, %s241
                %p238 = scmp.ge.s32.totalorder %s237, 1
                %s242 = sphi %s228, %s228
                %s243 = sphi %s225, %s225
              $region84: #{block_forward.7} parent=80 // loop_header_branch
                %240 = sbr.rel (%p238) target = $region88
              $region85: #{block_forward.7} parent=80 // loop_body
                %v244 = vld [vmem:[%s242] sm:$0xff]
                %245 = vst [vmem:[%s243] sm:$0xff] %v244
                %v246 = vld [vmem:[%s242 + $0x8] sm:$0xff]
                %247 = vst [vmem:[%s243 + $0x8] sm:$0xff] %v246
                %v248 = vld [vmem:[%s242 + $0x20] sm:$0xff]
                %249 = vst [vmem:[%s243 + $0x10] sm:$0xff] %v248
                %v250 = vld [vmem:[%s242 + $0x28] sm:$0xff]
                %251 = vst [vmem:[%s243 + $0x18] sm:$0xff] %v250
              $region86: #{block_forward.7} parent=80 // loop_footer
                %s241 = sadd.s32 1, %s237
              $region87: #{block_forward.7} parent=80 // loop_footer_branch
                %236 = sbr.rel target = $region83
              $region88: #{block_forward.7} parent=80 // loop_exit
                _
            $region81: #{block_forward.7} parent=72 // pred_fallthru
              _
          $region73: #{block_forward.7} parent=68 // pred_fallthru
            _
          %272 = vnop
        $region69: #{block_forward.7} parent=23 // pred_fallthru
          _
      $region24: #{block_forward.7} parent=5 // pred_fallthru
        _
      %p273 = scmp.le.s32.totalorder 1, %s13
      %p274 = scmp.lt.s32.totalorder %s13, 3
      %p275 = pnand %p273, %p274
      %p276 = pneg %p275
      // Predicated region
      $region104: #{block_forward.7} parent=5 // pred_check
        _
      $region105: #{block_forward.7} parent=5 // pred_check_branch
        %278 = sbr.rel (%p275) target = $region107
      $region106: #{block_forward.7} parent=5 // pred_region
        %s279 = ssub.s32 %s13, 1
        %s280 = sand.u32 %s26, 1
        %s281 = sand.u32 %s26, 1
        %s282 = smul.addr %s281, 16
        %s283 = scalar_lea.vmem [#allocation2], %s282
        // Predicated region
        $region108: #{block_forward.7} parent=106 // pred_check
          %p284 = pneg %p39
        $region109: #{block_forward.7} parent=106 // pred_check_branch
          %286 = sbr.rel (%p284) target = $region111
        $region110: #{block_forward.7} parent=106 // pred_region
          _
        $region111: #{block_forward.7} parent=106 // pred_fallthru
          _
        %s287 = sand.u32 %s94, 1
        %s288 = sand.u32 %s94, 1
        %s289 = smul.addr %s288, 32
        %s290 = scalar_lea.vmem [#allocation3], %s289
        // Predicated region
        $region112: #{block_forward.7} parent=106 // pred_check
          %p291 = pneg %p107
        $region113: #{block_forward.7} parent=106 // pred_check_branch
          %293 = sbr.rel (%p291) target = $region115
        $region114: #{block_forward.7} parent=106 // pred_region
          _
        $region115: #{block_forward.7} parent=106 // pred_fallthru
          _
        %s294 = sand.u32 %s26, 1
        %s295 = sand.u32 %s26, 1
        %s296 = smul.addr %s295, 16
        %s297 = scalar_lea.vmem [#allocation2], %s296
        %p298 = pneg %p39
        %p299 = pneg %p36
        %p300 = pneg %p60
        %p301 = pneg %p57
        %p302 = pneg %p81
        %p303 = pneg %p78
        %s304 = sand.u32 %s94, 1
        %s305 = sand.u32 %s94, 1
        %s306 = smul.addr %s305, 32
        %s307 = scalar_lea.vmem [#allocation3], %s306
        %p308 = pneg %p107
        %p309 = pneg %p104
        %p310 = pneg %p133
        %p311 = pneg %p130
        %s312 = sand.u32 %s120, 1
        %s313 = scalar_lea.sflag [#allocation5], %s312
        %s314 = sand.u32 %s120, 1
        %s315 = smul.addr %s314, 32
        %s316 = scalar_lea.vmem [#allocation4], %s315
        %s317 = smul.u32 2, %s18
        %s318 = smul.u32 2, %s18
        %s319 = smul.u32 2, %s18
        %v321 = vld [vmem:[%s283] sm:$0xf]
        %v322 = vld [vmem:[%s283 + $0x4] sm:$0xf]
        %v323 = vld [vmem:[%s283 + $0x8] sm:$0xf]
        %v324 = vld [vmem:[%s283 + $0xc] sm:$0xf]
        %v325 = vld [vmem:[%s1] sm:$0xf]
        %v326 = vld [vmem:[%s1 + $0x4] sm:$0xf]
        %v327 = vld [vmem:[%s1 + $0x8] sm:$0xf]
        %v328 = vld [vmem:[%s1 + $0xc] sm:$0xf]
        %v329 = vld [vmem:[%s1 + $0x10] sm:$0xf]
        %v330 = vld [vmem:[%s1 + $0x14] sm:$0xf]
        %v331 = vld [vmem:[%s1 + $0x18] sm:$0xf]
        %v332 = vld [vmem:[%s1 + $0x1c] sm:$0xf]
        %v333 = vld [vmem:[%s1 + $0x20] sm:$0xf]
        %v334 = vld [vmem:[%s1 + $0x24] sm:$0xf]
        %v335 = vld [vmem:[%s1 + $0x28] sm:$0xf]
        %v336 = vld [vmem:[%s1 + $0x2c] sm:$0xf]
        %v337 = vld [vmem:[%s1 + $0x30] sm:$0xf]
        %v338 = vld [vmem:[%s1 + $0x34] sm:$0xf]
        %v339 = vld [vmem:[%s1 + $0x38] sm:$0xf]
        %v340 = vld [vmem:[%s1 + $0x3c] sm:$0xf]
        %v341 = vld [vmem:[%s2] sm:$0x1]
        %v343 = vlaneseq
        %v344 = vshrl.u32 %v343, 7
        %v345 = vsub.s32 0, %v344
        %v346 = vrot.slane %v341, %v345
        %v352 = vunpack.c.l.b16 %v321
        %v353 = vunpack.c.l.b16 %v322
        %v354 = vunpack.c.l.b16 %v323
        %v355 = vunpack.c.l.b16 %v324
        %v356 = vpack.c.b16 %v353, %v352
        %v357 = vpack.c.b16 %v355, %v354
        %v376 = vunpack.c.l.b16 %v325
        %v377 = vunpack.c.l.b16 %v326
        %v378 = vunpack.c.l.b16 %v327
        %v379 = vunpack.c.l.b16 %v328
        %v380 = vunpack.c.l.b16 %v329
        %v381 = vunpack.c.l.b16 %v330
        %v382 = vunpack.c.l.b16 %v331
        %v383 = vunpack.c.l.b16 %v332
        %v384 = vunpack.c.l.b16 %v333
        %v385 = vunpack.c.l.b16 %v334
        %v386 = vunpack.c.l.b16 %v335
        %v387 = vunpack.c.l.b16 %v336
        %v388 = vunpack.c.l.b16 %v337
        %v389 = vunpack.c.l.b16 %v338
        %v390 = vunpack.c.l.b16 %v339
        %v391 = vunpack.c.l.b16 %v340
        %v392 = vpack.c.b16 %v377, %v376
        %v393 = vpack.c.b16 %v379, %v378
        %v394 = vpack.c.b16 %v381, %v380
        %v395 = vpack.c.b16 %v383, %v382
        %v396 = vpack.c.b16 %v385, %v384
        %v397 = vpack.c.b16 %v387, %v386
        %v398 = vpack.c.b16 %v389, %v388
        %v399 = vpack.c.b16 %v391, %v390
        %408 = vmatprep.subr.bf16.mxu0 0
        %409 = vmatpush1.bf16.msra.mxu0 %v392
        %410 = vmatprep.subr.bf16.mxu0 0
        %411 = vmatpush1.bf16.msra.mxu0 %v393
        %412 = vmatprep.subr.bf16.mxu0 0
        %413 = vmatpush1.bf16.msra.mxu0 %v394
        %414 = vmatprep.subr.bf16.mxu0 0
        %415 = vmatpush1.bf16.msra.mxu0 %v395
        %416 = vmatprep.subr.bf16.mxu0 0
        %417 = vmatpush1.bf16.msra.mxu0 %v396
        %418 = vmatprep.subr.bf16.mxu0 0
        %419 = vmatpush1.bf16.msra.mxu0 %v397
        %420 = vmatprep.subr.bf16.mxu0 0
        %421 = vmatpush1.bf16.msra.mxu0 %v398
        %422 = vmatprep.subr.bf16.mxu0 0
        %423 = vmatpush1.bf16.msra.mxu0 %v399
        %424 = vmatprep.subr.bf16.mxu0 0
        %425 = vmatpush1.bf16.msra.mxu0 0
        %426 = vmatprep.subr.bf16.mxu0 0
        %427 = vmatpush1.bf16.msra.mxu0 0
        %428 = vmatprep.subr.bf16.mxu0 0
        %429 = vmatpush1.bf16.msra.mxu0 0
        %430 = vmatprep.subr.bf16.mxu0 0
        %431 = vmatpush1.bf16.msra.mxu0 0
        %432 = vmatprep.subr.bf16.mxu0 0
        %433 = vmatpush1.bf16.msra.mxu0 0
        %434 = vmatprep.subr.bf16.mxu0 0
        %435 = vmatpush1.bf16.msra.mxu0 0
        %436 = vmatprep.subr.bf16.mxu0 0
        %437 = vmatpush1.bf16.msra.mxu0 0
        %438 = vmatprep.subr.bf16.mxu0 0
        %439 = vmatpush1.bf16.msra.mxu0 0
        %440 = vmatprep.mubr.bf16.mxu0 0
        %441 = vmatmul.mubr.bf16.gmra.mrb[0].mxu0 %v356
        %v442 = vpop.f32.mrb[0].mxu0
        %v443 = vadd.f32 %v346, %v442
        %v444 = vpop.f32.mrb[0].mxu0
        %v445 = vpop.f32.mrb[0].mxu0
        %v446 = vadd.f32 %v346, %v445
        %v447 = vpop.f32.mrb[0].mxu0
        %448 = vmatprep.mubr.bf16.mxu0 0
        %449 = vmatmul.mubr.bf16.gmra.mrb[0].mxu0 %v357
        %v450 = vpop.f32.mrb[0].mxu0
        %v451 = vadd.f32 %v346, %v450
        %v452 = vpop.f32.mrb[0].mxu0
        %v453 = vpop.f32.mrb[0].mxu0
        %v454 = vadd.f32 %v346, %v453
        %v455 = vpop.f32.mrb[0].mxu0
        %456 = vdwg.mxu0
        %v457 = vmul.f32 %v443, 0.5
        %v458 = vmul.f32 %v446, 0.5
        %v459 = vadd.f32 %v457, 0.0
        %v460 = vadd.f32 %v458, 0.0
        %vm461 = vcmp.ge.f32.partialorder %v459, 1.0
        %vm462 = vcmp.ge.f32.partialorder %v460, 1.0
        %v463 = vsel %vm461, 1, 0
        %v464 = vsel %vm462, 1, 0
        %v465 = vcvt.s32.f32 %v463
        %v466 = vcvt.s32.f32 %v464
        %v467 = vsub.f32 1.0, %v465
        %v468 = vsub.f32 1.0, %v466
        %v469 = vmul.f32 %v459, %v467
        %v470 = vmul.f32 %v460, %v468
        %v471 = vld [vmem:[%s290] sm:$0xff]
        %v472 = vld [vmem:[%s290 + $0x8] sm:$0xff]
        %v473 = vadd.f32 %v465, %v471
        %v474 = vadd.f32 %v466, %v472
        %vm475 = vcmask 261120
        %476 = vst.msk [vmem:[%s316] sm:$0xff] %vm475, %v473
        %477 = vst.msk [vmem:[%s316 + $0x8] sm:$0xff] %vm475, %v474
        %v478 = vsub.f32 %v451, %v469
        %v479 = vsub.f32 %v454, %v470
        %v480 = vmul.f32 %v478, 0.5
        %v481 = vmul.f32 %v479, 0.5
        %v482 = vadd.f32 %v469, %v480
        %v483 = vadd.f32 %v470, %v481
        %vm484 = vcmp.ge.f32.partialorder %v482, 1.0
        %vm485 = vcmp.ge.f32.partialorder %v483, 1.0
        %v486 = vsel %vm484, 1, 0
        %v487 = vsel %vm485, 1, 0
        %v488 = vcvt.s32.f32 %v486
        %v489 = vcvt.s32.f32 %v487
        %s490 = scalar_lea.vmem %s290, 16 [#allocation3]
        %v491 = vld [vmem:[%s490] sm:$0xff]
        %v492 = vld [vmem:[%s490 + $0x8] sm:$0xff]
        %v493 = vadd.f32 %v488, %v491
        %v494 = vadd.f32 %v489, %v492
        %s495 = scalar_lea.vmem %s316, 16 [#allocation4]
        %496 = vst.msk [vmem:[%s495] sm:$0xff] %vm475, %v493
        %497 = vst.msk [vmem:[%s495 + $0x8] sm:$0xff] %vm475, %v494
        %s498 = sand.u32 %s120, 1
        %s499 = scalar_lea.sflag [#allocation5], %s498
        %s500 = sand.u32 %s120, 1
        %s501 = smul.addr %s500, 32
        %s502 = scalar_lea.vmem [#allocation4], %s501
        // Predicated region
        $region116: #{block_forward.7} parent=106 // pred_check
          %p503 = pneg %p130
        $region117: #{block_forward.7} parent=106 // pred_check_branch
          %505 = sbr.rel (%p503) target = $region119
        $region118: #{block_forward.7} parent=106 // pred_region
          #allocation7 [shape = 'u32[6]{0}', space=smem, size = 0x18, scoped, tag = 'DMA stride descriptor']
          %s506 = smul.u32 2, %s18
          %s508 = ssub.s32 512, 512
          %509 = vsyncadd %s499, %s508
          %s510 = smul.addr %s506, 128
          %s511 = scalar_lea.hbm %s4, %s510
          %s513 = sshll.u32 1, 14
          %s514 = sxor.u32 4294967295, %s513
          %s517 = sshll.u32 7, 18
          %s518 = sxor.u32 4294967295, %s517
          %s519 = sand.u32 0, %s518
          %s521 = sor.u32 %s519, 0
          %s523 = sshll.u32 3, 24
          %s524 = sxor.u32 4294967295, %s523
          %s525 = sand.u32 %s521, %s524
          %s527 = sor.u32 %s525, 0
          %s528 = sshll.u32 %s502, 4
          %s529 = int_to_ptr.vmem [resolvable:$true] %s528
          %535 = sst [smem:[#allocation7]] 256
          %s536 = scalar_lea.smem [#allocation7], 1
          %537 = sst [smem:[%s536]] 512
          %s538 = scalar_lea.smem [#allocation7], 2
          %539 = sst [smem:[%s538]] 2
          %s540 = scalar_lea.smem [#allocation7], 3
          %541 = sst [smem:[%s540]] 128
          %s542 = scalar_lea.smem [#allocation7], 4
          %543 = sst [smem:[%s542]] 128
          %s544 = scalar_lea.smem [#allocation7], 5
          %545 = sst [smem:[%s544]] 8
          %547 = dma.general %s529, 512, %s511, %s499, [#allocation6], [#allocation7], %s527, 0
        $region119: #{block_forward.7} parent=106 // pred_fallthru
          _
      $region107: #{block_forward.7} parent=5 // pred_fallthru
        _
      %p548 = scmp.le.s32.totalorder 2, %s13
      // Predicated region
      $region120: #{block_forward.7} parent=5 // pred_check
        %p549 = pneg %p548
      $region121: #{block_forward.7} parent=5 // pred_check_branch
        %551 = sbr.rel (%p549) target = $region123
      $region122: #{block_forward.7} parent=5 // pred_region
        %s552 = ssub.s32 %s13, 2
        // Predicated region
        $region124: #{block_forward.7} parent=122 // pred_check
          %p553 = pneg %p136
        $region125: #{block_forward.7} parent=122 // pred_check_branch
          %555 = sbr.rel (%p553) target = $region127
        $region126: #{block_forward.7} parent=122 // pred_region
          %s556 = sand.u32 %s121, 1
          %s557 = scalar_lea.sflag [#allocation5], %s556
          %s558 = sand.u32 %s121, 1
          %s559 = smul.addr %s558, 32
          %s560 = scalar_lea.vmem [#allocation4], %s559
          %561 = dma.done %s557, 512
        $region127: #{block_forward.7} parent=122 // pred_fallthru
          _
      $region123: #{block_forward.7} parent=5 // pred_fallthru
        _
    $region6: #{block_forward.7} parent=1 // loop_footer
      %s17 = sadd.s32 1, %s13
    $region7: #{block_forward.7} parent=1 // loop_footer_branch
      %12 = sbr.rel target = $region3
    $region8: #{block_forward.7} parent=1 // loop_exit
      _
    %562 = vsyncpa [#allocation5], 1
    %s563 = scalar_lea.sflag [#allocation5], 1
    %564 = vsyncpa %s563, 1

</llo_original>
